<compile_context>
chip_gen: v7x
topology: tpu7x:2x2x1
jax: 0.10.0
libtpu: 0.0.40
codegen_flags: <defaults>
</compile_context>

<pallas_src>
import functools
import math

import jax
import jax.numpy as jnp
from jax.experimental import pallas as pl
from jax.experimental.pallas import tpu as pltpu

# ---------------------------------------------------------------------------
# model hyper-parameters (small, consistent with the module defaults)
# ---------------------------------------------------------------------------
N_LAYERS = 2
FEATS_INPUT_DIM = 8
FEATS_DIM = 32
POS_DIM = 3
M_DIM = 16
N_GRAPHS = 2
LN_EPS = 1e-5

PER_LAYER_REFS = 15  # number of weight tensors passed per EGNN layer


def _silu(x):
    # sigmoid via tanh: stays on the EUP slot, avoids VALU divide / exp overflow.
    return x * (0.5 * jnp.tanh(0.5 * x) + 0.5)


# ---------------------------------------------------------------------------
# fused Pallas kernel: emblin + N_LAYERS EGNN-sparse layers
# ---------------------------------------------------------------------------
def fused_egnn_kernel(
    z_ref, temb_ref, coors_ref, idx_ref, batch_ref,
    emb_w_ref, emb_b_ref, *rest,
    n_nodes, n_edges, n_graphs, n_layers, feats_dim, pos_dim, m_dim, eps,
):
    f32 = jnp.float32
    F = feats_dim
    P = pos_dim
    E = n_edges
    contract0 = (((0,), (0,)), ((), ()))  # contract dim 0 of both operands

    out_ref = rest[-1]
    layer_refs = rest[:-1]

    # ---- embedding linear + time-embedding add --------------------------------
    feats = (
        jnp.dot(z_ref[...], emb_w_ref[...], preferred_element_type=f32)
        + emb_b_ref[...]
        + temb_ref[...]
    )                                                   # (N, F)
    coors = coors_ref[...]                              # (N, P)

    idx_both = idx_ref[...]                             # (2E, 1) int32 [src; dst]
    batch = batch_ref[...]                              # (N, 1) int32

    # one stacked one-hot gather matrix (built once, reused by every layer)
    node_iota = jax.lax.broadcasted_iota(jnp.int32, (2 * E, n_nodes), 1)
    onehot_both = (idx_both == node_iota).astype(f32)   # (2E, N) = [src one-hot; dst one-hot]
    onehot_dst = onehot_both[E:, :]                     # (E, N) static, tile-aligned slice

    # per-graph masks + LayerNorm denominators (VPU, computed once)
    graph_info = []
    for g in range(n_graphs):
        mk = (batch == g).astype(f32)                   # (N, 1)
        cnt = jnp.sum(mk, axis=0, keepdims=True)        # (1, 1)
        denom = jnp.maximum(cnt, 1.0) * float(F)        # (1, 1)
        graph_info.append((mk, denom))

    for l in range(n_layers):
        (we1_xi, we1_xj, we1_rd, be1, we2, be2,
         wc1, bc1, wc2_row, bc2,
         wn1_x, wn1_m, bn1, wn2, bn2) = layer_refs[
            l * PER_LAYER_REFS:(l + 1) * PER_LAYER_REFS]

        # ---- single packed gather of [feats | coors] for both endpoints --------
        packed = jnp.concatenate([feats, coors], axis=-1)                   # (N, F+P)
        g_both = jnp.dot(onehot_both, packed, preferred_element_type=f32)   # (2E, F+P)
        g_src = g_both[:E]                                                  # x_j / c_j rows
        g_dst = g_both[E:]                                                  # x_i / c_i rows
        x_j = g_src[:, :F]
        c_j = g_src[:, F:]
        x_i = g_dst[:, :F]
        c_i = g_dst[:, F:]

        rel_coors = c_j - c_i                                               # (E, P)
        rel_dist = jnp.sum(rel_coors * rel_coors, axis=-1, keepdims=True)   # (E, 1)

        # ---- edge MLP (message); first matmul split per operand, no concat ----
        e1 = (
            jnp.dot(x_i, we1_xi[...], preferred_element_type=f32)
            + jnp.dot(x_j, we1_xj[...], preferred_element_type=f32)
            + rel_dist * we1_rd[...]
            + be1[...]
        )                                                                   # (E, 2*(2F+1))
        h1 = _silu(e1)
        m_ij = _silu(jnp.dot(h1, we2[...], preferred_element_type=f32) + be2[...])  # (E, m)

        # ---- coordinate update; 1-column projection done on the VPU -----------
        c1 = _silu(jnp.dot(m_ij, wc1[...], preferred_element_type=f32) + bc1[...])  # (E, 4m)
        coor_w = jnp.sum(c1 * wc2_row[...], axis=-1, keepdims=True) + bc2[...]      # (E, 1)
        weighted_rel = coor_w * rel_coors                                            # (E, P)

        # ---- single packed scatter-add over target nodes -----------------------
        scat_vals = jnp.concatenate([m_ij, weighted_rel], axis=-1)          # (E, m+P)
        scattered = jax.lax.dot_general(onehot_dst, scat_vals, contract0,
                                        preferred_element_type=f32)         # (N, m+P)
        m_i = scattered[:, :m_dim]                                          # (N, m)
        mhat = scattered[:, m_dim:]                                         # (N, P)
        coors = coors + mhat

        # ---- graph-mode LayerNorm (torch_geometric), VPU masked reductions -----
        # (affine weight/bias pre-folded into wn1_x / bn1 in the wrapper)
        mean_n = jnp.zeros((n_nodes, 1), f32)
        for mk, denom in graph_info:
            s = jnp.sum(jnp.sum(feats * mk, axis=-1, keepdims=True),
                        axis=0, keepdims=True)                              # (1, 1)
            mean_n = mean_n + mk * (s / denom)
        centered = feats - mean_n
        var_n = jnp.zeros((n_nodes, 1), f32)
        for mk, denom in graph_info:
            v = jnp.sum(jnp.sum(centered * centered * mk, axis=-1, keepdims=True),
                        axis=0, keepdims=True)                              # (1, 1)
            var_n = var_n + mk * (v / denom)
        normed = centered * jax.lax.rsqrt(var_n + eps)                      # (N, F)

        # ---- node MLP (split first matmul, no concat) + residual ----------------
        n1 = _silu(
            jnp.dot(normed, wn1_x[...], preferred_element_type=f32)
            + jnp.dot(m_i, wn1_m[...], preferred_element_type=f32)
            + bn1[...]
        )                                                                   # (N, 2F)
        delta = jnp.dot(n1, wn2[...], preferred_element_type=f32) + bn2[...]
        feats = feats + delta

    # ---- one packed lane-contiguous output slab: [feats | coors] ----------------
    out_ref[...] = jnp.concatenate([feats, coors], axis=-1)


# ---------------------------------------------------------------------------
# wrapper
# ---------------------------------------------------------------------------
_VMEM = pl.BlockSpec(memory_space=pltpu.MemorySpace.VMEM)


def _split_layer_params(lp):
    """Reorder / pre-split one layer's params into the kernel's 15-ref layout.

    Also folds the graph LayerNorm affine (lnw, lnb) into the node MLP's first
    linear (exact rewrite: (x*lnw + lnb) @ W == x @ (diag(lnw) W) + lnb @ W).
    """
    (we1, be1, we2, be2, wc1, bc1, wc2, bc2,
     wn1, bn1, wn2, bn2, lnw, lnb) = lp
    F = FEATS_DIM
    we1_xi = we1[:F]                       # rows acting on x_i
    we1_xj = we1[F:2 * F]                  # rows acting on x_j
    we1_rd = we1[2 * F:2 * F + 1]          # row acting on rel_dist  (1, 2*(2F+1))
    wc2_row = wc2.T                        # (1, 4m) for VPU reduce
    wn1_x = lnw.reshape(F, 1) * wn1[:F]    # LN weight folded into feats rows
    wn1_m = wn1[F:]                        # rows acting on aggregated messages
    bn1_f = bn1 + lnb @ wn1[:F]            # LN bias folded into node-MLP bias
    return [we1_xi, we1_xj, we1_rd, be1, we2, be2,
            wc1, bc1, wc2_row, bc2,
            wn1_x, wn1_m, bn1_f, wn2, bn2]


def egnn_network_forward(z, pos, edge_index, batch, params):
    # z: (N, feats_input_dim + feats_dim), pos: (N, pos_dim), edge_index: (2, E)
    n = z.shape[0]
    e = edge_index.shape[1]

    z_in = z[:, :FEATS_INPUT_DIM].astype(jnp.float32)
    temb = z[:, FEATS_INPUT_DIM:].astype(jnp.float32)
    coors = pos.astype(jnp.float32)
    # stacked [src; dst] index column: src = edge_index[0] (x_j), dst = edge_index[1]
    # (x_i, also the aggregation target for aggr='add')
    idx_both = jnp.concatenate(
        [edge_index[0], edge_index[1]], axis=0).reshape(2 * e, 1).astype(jnp.int32)
    batch2 = batch.reshape(n, 1).astype(jnp.int32)

    flat_weights = []
    for lp in params["layers"]:
        flat_weights.extend(_split_layer_params(lp))

    inputs = [z_in, temb, coors, idx_both, batch2,
              params["emblin_w"], params["emblin_b"]] + flat_weights

    kernel = functools.partial(
        fused_egnn_kernel,
        n_nodes=n, n_edges=e, n_graphs=N_GRAPHS, n_layers=N_LAYERS,
        feats_dim=FEATS_DIM, pos_dim=POS_DIM, m_dim=M_DIM, eps=LN_EPS,
    )

    out = pl.pallas_call(
        kernel,
        out_shape=jax.ShapeDtypeStruct((n, FEATS_DIM + POS_DIM), jnp.float32),
        in_specs=[_VMEM] * len(inputs),
        out_specs=_VMEM,
    )(*inputs)

    feats_out = out[:, :FEATS_DIM]
    coors_out = out[:, FEATS_DIM:]
    return feats_out, coors_out


# ---------------------------------------------------------------------------
# parameter initialization (deterministic, mimics xavier_normal_ / zeros)
# ---------------------------------------------------------------------------
def _init_linear(key, fan_in, fan_out):
    std = math.sqrt(2.0 / (fan_in + fan_out))
    w = jax.random.normal(key, (fan_in, fan_out), jnp.float32) * std
    b = jnp.zeros((1, fan_out), jnp.float32)
    return w, b


def init_layer_params(key, feats_dim, m_dim):
    din = 2 * feats_dim + 1  # edge_input_dim = feats_dim*2 + 1 (no edge_attr/fourier)
    k = jax.random.split(key, 6)
    we1, be1 = _init_linear(k[0], din, din * 2)
    we2, be2 = _init_linear(k[1], din * 2, m_dim)
    wc1, bc1 = _init_linear(k[2], m_dim, m_dim * 4)
    wc2, bc2 = _init_linear(k[3], m_dim * 4, 1)
    wn1, bn1 = _init_linear(k[4], feats_dim + m_dim, feats_dim * 2)
    wn2, bn2 = _init_linear(k[5], feats_dim * 2, feats_dim)
    lnw = jnp.ones((1, feats_dim), jnp.float32)
    lnb = jnp.zeros((1, feats_dim), jnp.float32)
    return [we1, be1, we2, be2, wc1, bc1, wc2, bc2,
            wn1, bn1, wn2, bn2, lnw, lnb]


def init_network_params(key):
    keys = jax.random.split(key, N_LAYERS + 1)
    emblin_w, emblin_b = _init_linear(keys[0], FEATS_INPUT_DIM, FEATS_DIM)
    layers = [init_layer_params(keys[i + 1], FEATS_DIM, M_DIM) for i in range(N_LAYERS)]
    return {"emblin_w": emblin_w, "emblin_b": emblin_b, "layers": layers}


# ---------------------------------------------------------------------------
# main
# ---------------------------------------------------------------------------
if __name__ == "__main__":
    key = jax.random.PRNGKey(0)
    k_z, k_pos, k_src, k_dst = jax.random.split(key, 4)

    N_NODES = 16
    N_EDGES = 48
    nodes_per_graph = N_NODES // N_GRAPHS

    z = jax.random.normal(k_z, (N_NODES, FEATS_INPUT_DIM + FEATS_DIM), jnp.float32)
    pos = jax.random.normal(k_pos, (N_NODES, POS_DIM), jnp.float32)
    batch = jnp.repeat(jnp.arange(N_GRAPHS, dtype=jnp.int32), nodes_per_graph)

    # random edges, kept within each graph (half of the edges per graph)
    half = N_EDGES // 2
    src0 = jax.random.randint(k_src, (N_EDGES,), 0, nodes_per_graph)
    dst0 = jax.random.randint(k_dst, (N_EDGES,), 0, nodes_per_graph)
    src = jnp.concatenate([src0[:half], src0[half:] + nodes_per_graph]).astype(jnp.int32)
    dst = jnp.concatenate([dst0[:half], dst0[half:] + nodes_per_graph]).astype(jnp.int32)
    edge_index = jnp.stack([src, dst], axis=0)

    params = init_network_params(jax.random.PRNGKey(42))

    fwd = jax.jit(lambda z_, pos_, ei_, b_: egnn_network_forward(z_, pos_, ei_, b_, params))
    feats_out, coors_out = fwd(z, pos, edge_index, batch)
    jax.block_until_ready((feats_out, coors_out))

    assert feats_out.shape == (N_NODES, FEATS_DIM)
    assert coors_out.shape == (N_NODES, POS_DIM)
    assert bool(jnp.all(jnp.isfinite(feats_out))) and bool(jnp.all(jnp.isfinite(coors_out)))
    print("KERNEL_OK")
</pallas_src>

<mosaic_0001>
module attributes {stable_mosaic.version = 11 : i64} {
  func.func @fused_egnn_kernel(%arg0: memref<16x8xf32, #tpu.memory_space<vmem>>, %arg1: memref<16x32xf32, #tpu.memory_space<vmem>>, %arg2: memref<16x3xf32, #tpu.memory_space<vmem>>, %arg3: memref<96x1xi32, #tpu.memory_space<vmem>>, %arg4: memref<16x1xi32, #tpu.memory_space<vmem>>, %arg5: memref<8x32xf32, #tpu.memory_space<vmem>>, %arg6: memref<1x32xf32, #tpu.memory_space<vmem>>, %arg7: memref<32x130xf32, #tpu.memory_space<vmem>>, %arg8: memref<32x130xf32, #tpu.memory_space<vmem>>, %arg9: memref<1x130xf32, #tpu.memory_space<vmem>>, %arg10: memref<1x130xf32, #tpu.memory_space<vmem>>, %arg11: memref<130x16xf32, #tpu.memory_space<vmem>>, %arg12: memref<1x16xf32, #tpu.memory_space<vmem>>, %arg13: memref<16x64xf32, #tpu.memory_space<vmem>>, %arg14: memref<1x64xf32, #tpu.memory_space<vmem>>, %arg15: memref<1x64xf32, #tpu.memory_space<vmem>>, %arg16: memref<1x1xf32, #tpu.memory_space<vmem>>, %arg17: memref<32x64xf32, #tpu.memory_space<vmem>>, %arg18: memref<16x64xf32, #tpu.memory_space<vmem>>, %arg19: memref<1x64xf32, #tpu.memory_space<vmem>>, %arg20: memref<64x32xf32, #tpu.memory_space<vmem>>, %arg21: memref<1x32xf32, #tpu.memory_space<vmem>>, %arg22: memref<32x130xf32, #tpu.memory_space<vmem>>, %arg23: memref<32x130xf32, #tpu.memory_space<vmem>>, %arg24: memref<1x130xf32, #tpu.memory_space<vmem>>, %arg25: memref<1x130xf32, #tpu.memory_space<vmem>>, %arg26: memref<130x16xf32, #tpu.memory_space<vmem>>, %arg27: memref<1x16xf32, #tpu.memory_space<vmem>>, %arg28: memref<16x64xf32, #tpu.memory_space<vmem>>, %arg29: memref<1x64xf32, #tpu.memory_space<vmem>>, %arg30: memref<1x64xf32, #tpu.memory_space<vmem>>, %arg31: memref<1x1xf32, #tpu.memory_space<vmem>>, %arg32: memref<32x64xf32, #tpu.memory_space<vmem>>, %arg33: memref<16x64xf32, #tpu.memory_space<vmem>>, %arg34: memref<1x64xf32, #tpu.memory_space<vmem>>, %arg35: memref<64x32xf32, #tpu.memory_space<vmem>>, %arg36: memref<1x32xf32, #tpu.memory_space<vmem>>, %arg37: memref<16x35xf32, #tpu.memory_space<vmem>>) attributes {dimension_semantics = [], scalar_prefetch = 0 : i64, scratch_operands = 0 : i64, tpu.core_type = #tpu.core_type<tc>} {
    %c0 = arith.constant 0 : index
    %c0_0 = arith.constant 0 : index
    %0 = vector.load %arg0[%c0, %c0_0] : memref<16x8xf32, #tpu.memory_space<vmem>>, vector<16x8xf32>
    %c0_1 = arith.constant 0 : index
    %c0_2 = arith.constant 0 : index
    %1 = vector.load %arg5[%c0_1, %c0_2] : memref<8x32xf32, #tpu.memory_space<vmem>>, vector<8x32xf32>
    %cst = arith.constant dense<0.000000e+00> : vector<16x32xf32>
    %2 = tpu.matmul %0, %1, %cst {dimension_numbers = #tpu.dot_dimension_numbers<[1], [0], [0], [1], [0, 0, 1, 1], [], []>} : vector<16x8xf32>, vector<8x32xf32>, vector<16x32xf32> -> vector<16x32xf32>
    %c0_3 = arith.constant 0 : index
    %c0_4 = arith.constant 0 : index
    %3 = vector.load %arg6[%c0_3, %c0_4] : memref<1x32xf32, #tpu.memory_space<vmem>>, vector<1x32xf32>
    %4 = vector.broadcast %3 : vector<1x32xf32> to vector<16x32xf32>
    %5 = arith.addf %2, %4 : vector<16x32xf32>
    %c0_5 = arith.constant 0 : index
    %c0_6 = arith.constant 0 : index
    %6 = vector.load %arg1[%c0_5, %c0_6] : memref<16x32xf32, #tpu.memory_space<vmem>>, vector<16x32xf32>
    %7 = arith.addf %5, %6 : vector<16x32xf32>
    %c0_7 = arith.constant 0 : index
    %c0_8 = arith.constant 0 : index
    %8 = vector.load %arg2[%c0_7, %c0_8] : memref<16x3xf32, #tpu.memory_space<vmem>>, vector<16x3xf32>
    %c0_9 = arith.constant 0 : index
    %c0_10 = arith.constant 0 : index
    %9 = vector.load %arg3[%c0_9, %c0_10] : memref<96x1xi32, #tpu.memory_space<vmem>>, vector<96x1xi32>
    %c0_11 = arith.constant 0 : index
    %c0_12 = arith.constant 0 : index
    %10 = vector.load %arg4[%c0_11, %c0_12] : memref<16x1xi32, #tpu.memory_space<vmem>>, vector<16x1xi32>
    %11 = tpu.iota {dimensions = array<i32: 1>} : vector<96x16xi32>
    %12 = vector.broadcast %9 : vector<96x1xi32> to vector<96x16xi32>
    %13 = arith.cmpi eq, %12, %11 : vector<96x16xi32>
    %14 = arith.extui %13 : vector<96x16xi1> to vector<96x16xi32>
    %15 = arith.sitofp %14 : vector<96x16xi32> to vector<96x16xf32>
    %16 = vector.extract_strided_slice %15 {offsets = [48, 0], sizes = [48, 16], strides = [1, 1]} : vector<96x16xf32> to vector<48x16xf32>
    %c0_i32 = arith.constant 0 : i32
    %17 = vector.broadcast %c0_i32 : i32 to vector<16x1xi32>
    %18 = arith.cmpi eq, %10, %17 : vector<16x1xi32>
    %19 = arith.extui %18 : vector<16x1xi1> to vector<16x1xi32>
    %20 = arith.sitofp %19 : vector<16x1xi32> to vector<16x1xf32>
    %cst_13 = arith.constant dense<0.000000e+00> : vector<1xf32>
    %21 = vector.multi_reduction <add>, %20, %cst_13 [0] : vector<16x1xf32> to vector<1xf32>
    %22 = vector.shape_cast %21 : vector<1xf32> to vector<1x1xf32>
    %cst_14 = arith.constant 1.000000e+00 : f32
    %23 = vector.broadcast %cst_14 : f32 to vector<1x1xf32>
    %24 = arith.maximumf %22, %23 : vector<1x1xf32>
    %cst_15 = arith.constant 3.200000e+01 : f32
    %25 = vector.broadcast %cst_15 : f32 to vector<1x1xf32>
    %26 = arith.mulf %24, %25 : vector<1x1xf32>
    %c1_i32 = arith.constant 1 : i32
    %27 = vector.broadcast %c1_i32 : i32 to vector<16x1xi32>
    %28 = arith.cmpi eq, %10, %27 : vector<16x1xi32>
    %29 = arith.extui %28 : vector<16x1xi1> to vector<16x1xi32>
    %30 = arith.sitofp %29 : vector<16x1xi32> to vector<16x1xf32>
    %cst_16 = arith.constant dense<0.000000e+00> : vector<1xf32>
    %31 = vector.multi_reduction <add>, %30, %cst_16 [0] : vector<16x1xf32> to vector<1xf32>
    %32 = vector.shape_cast %31 : vector<1xf32> to vector<1x1xf32>
    %cst_17 = arith.constant 1.000000e+00 : f32
    %33 = vector.broadcast %cst_17 : f32 to vector<1x1xf32>
    %34 = arith.maximumf %32, %33 : vector<1x1xf32>
    %cst_18 = arith.constant 3.200000e+01 : f32
    %35 = vector.broadcast %cst_18 : f32 to vector<1x1xf32>
    %36 = arith.mulf %34, %35 : vector<1x1xf32>
    %37 = tpu.concatenate %7, %8 in 1 : vector<16x32xf32>, vector<16x3xf32> -> vector<16x35xf32>
    %cst_19 = arith.constant dense<0.000000e+00> : vector<96x35xf32>
    %38 = tpu.matmul %15, %37, %cst_19 {dimension_numbers = #tpu.dot_dimension_numbers<[1], [0], [0], [1], [0, 0, 1, 1], [], []>} : vector<96x16xf32>, vector<16x35xf32>, vector<96x35xf32> -> vector<96x35xf32>
    %39 = vector.extract_strided_slice %38 {offsets = [0, 0], sizes = [48, 35], strides = [1, 1]} : vector<96x35xf32> to vector<48x35xf32>
    %40 = vector.extract_strided_slice %38 {offsets = [48, 0], sizes = [48, 35], strides = [1, 1]} : vector<96x35xf32> to vector<48x35xf32>
    %41 = vector.extract_strided_slice %39 {offsets = [0, 0], sizes = [48, 32], strides = [1, 1]} : vector<48x35xf32> to vector<48x32xf32>
    %42 = vector.extract_strided_slice %39 {offsets = [0, 32], sizes = [48, 3], strides = [1, 1]} : vector<48x35xf32> to vector<48x3xf32>
    %43 = vector.extract_strided_slice %40 {offsets = [0, 0], sizes = [48, 32], strides = [1, 1]} : vector<48x35xf32> to vector<48x32xf32>
    %44 = vector.extract_strided_slice %40 {offsets = [0, 32], sizes = [48, 3], strides = [1, 1]} : vector<48x35xf32> to vector<48x3xf32>
    %45 = arith.subf %42, %44 : vector<48x3xf32>
    %46 = arith.mulf %45, %45 : vector<48x3xf32>
    %cst_20 = arith.constant dense<0.000000e+00> : vector<48xf32>
    %47 = vector.multi_reduction <add>, %46, %cst_20 [1] : vector<48x3xf32> to vector<48xf32>
    %48 = vector.shape_cast %47 : vector<48xf32> to vector<48x1xf32>
    %c0_21 = arith.constant 0 : index
    %c0_22 = arith.constant 0 : index
    %49 = vector.load %arg7[%c0_21, %c0_22] : memref<32x130xf32, #tpu.memory_space<vmem>>, vector<32x130xf32>
    %cst_23 = arith.constant dense<0.000000e+00> : vector<48x130xf32>
    %50 = tpu.matmul %43, %49, %cst_23 {dimension_numbers = #tpu.dot_dimension_numbers<[1], [0], [0], [1], [0, 0, 1, 1], [], []>} : vector<48x32xf32>, vector<32x130xf32>, vector<48x130xf32> -> vector<48x130xf32>
    %c0_24 = arith.constant 0 : index
    %c0_25 = arith.constant 0 : index
    %51 = vector.load %arg8[%c0_24, %c0_25] : memref<32x130xf32, #tpu.memory_space<vmem>>, vector<32x130xf32>
    %cst_26 = arith.constant dense<0.000000e+00> : vector<48x130xf32>
    %52 = tpu.matmul %41, %51, %cst_26 {dimension_numbers = #tpu.dot_dimension_numbers<[1], [0], [0], [1], [0, 0, 1, 1], [], []>} : vector<48x32xf32>, vector<32x130xf32>, vector<48x130xf32> -> vector<48x130xf32>
    %53 = arith.addf %50, %52 : vector<48x130xf32>
    %c0_27 = arith.constant 0 : index
    %c0_28 = arith.constant 0 : index
    %54 = vector.load %arg9[%c0_27, %c0_28] : memref<1x130xf32, #tpu.memory_space<vmem>>, vector<1x130xf32>
    %55 = vector.broadcast %48 : vector<48x1xf32> to vector<48x130xf32>
    %56 = vector.broadcast %54 : vector<1x130xf32> to vector<48x130xf32>
    %57 = arith.mulf %55, %56 : vector<48x130xf32>
    %58 = arith.addf %53, %57 : vector<48x130xf32>
    %c0_29 = arith.constant 0 : index
    %c0_30 = arith.constant 0 : index
    %59 = vector.load %arg10[%c0_29, %c0_30] : memref<1x130xf32, #tpu.memory_space<vmem>>, vector<1x130xf32>
    %60 = vector.broadcast %59 : vector<1x130xf32> to vector<48x130xf32>
    %61 = arith.addf %58, %60 : vector<48x130xf32>
    %cst_31 = arith.constant 5.000000e-01 : f32
    %62 = vector.broadcast %cst_31 : f32 to vector<48x130xf32>
    %63 = arith.mulf %62, %61 : vector<48x130xf32>
    %64 = math.tanh %63 : vector<48x130xf32>
    %cst_32 = arith.constant 5.000000e-01 : f32
    %65 = vector.broadcast %cst_32 : f32 to vector<48x130xf32>
    %66 = arith.mulf %65, %64 : vector<48x130xf32>
    %cst_33 = arith.constant 5.000000e-01 : f32
    %67 = vector.broadcast %cst_33 : f32 to vector<48x130xf32>
    %68 = arith.addf %66, %67 : vector<48x130xf32>
    %69 = arith.mulf %61, %68 : vector<48x130xf32>
    %c0_34 = arith.constant 0 : index
    %c0_35 = arith.constant 0 : index
    %70 = vector.load %arg11[%c0_34, %c0_35] : memref<130x16xf32, #tpu.memory_space<vmem>>, vector<130x16xf32>
    %cst_36 = arith.constant dense<0.000000e+00> : vector<48x16xf32>
    %71 = tpu.matmul %69, %70, %cst_36 {dimension_numbers = #tpu.dot_dimension_numbers<[1], [0], [0], [1], [0, 0, 1, 1], [], []>} : vector<48x130xf32>, vector<130x16xf32>, vector<48x16xf32> -> vector<48x16xf32>
    %c0_37 = arith.constant 0 : index
    %c0_38 = arith.constant 0 : index
    %72 = vector.load %arg12[%c0_37, %c0_38] : memref<1x16xf32, #tpu.memory_space<vmem>>, vector<1x16xf32>
    %73 = vector.broadcast %72 : vector<1x16xf32> to vector<48x16xf32>
    %74 = arith.addf %71, %73 : vector<48x16xf32>
    %cst_39 = arith.constant 5.000000e-01 : f32
    %75 = vector.broadcast %cst_39 : f32 to vector<48x16xf32>
    %76 = arith.mulf %75, %74 : vector<48x16xf32>
    %77 = math.tanh %76 : vector<48x16xf32>
    %cst_40 = arith.constant 5.000000e-01 : f32
    %78 = vector.broadcast %cst_40 : f32 to vector<48x16xf32>
    %79 = arith.mulf %78, %77 : vector<48x16xf32>
    %cst_41 = arith.constant 5.000000e-01 : f32
    %80 = vector.broadcast %cst_41 : f32 to vector<48x16xf32>
    %81 = arith.addf %79, %80 : vector<48x16xf32>
    %82 = arith.mulf %74, %81 : vector<48x16xf32>
    %c0_42 = arith.constant 0 : index
    %c0_43 = arith.constant 0 : index
    %83 = vector.load %arg13[%c0_42, %c0_43] : memref<16x64xf32, #tpu.memory_space<vmem>>, vector<16x64xf32>
    %cst_44 = arith.constant dense<0.000000e+00> : vector<48x64xf32>
    %84 = tpu.matmul %82, %83, %cst_44 {dimension_numbers = #tpu.dot_dimension_numbers<[1], [0], [0], [1], [0, 0, 1, 1], [], []>} : vector<48x16xf32>, vector<16x64xf32>, vector<48x64xf32> -> vector<48x64xf32>
    %c0_45 = arith.constant 0 : index
    %c0_46 = arith.constant 0 : index
    %85 = vector.load %arg14[%c0_45, %c0_46] : memref<1x64xf32, #tpu.memory_space<vmem>>, vector<1x64xf32>
    %86 = vector.broadcast %85 : vector<1x64xf32> to vector<48x64xf32>
    %87 = arith.addf %84, %86 : vector<48x64xf32>
    %cst_47 = arith.constant 5.000000e-01 : f32
    %88 = vector.broadcast %cst_47 : f32 to vector<48x64xf32>
    %89 = arith.mulf %88, %87 : vector<48x64xf32>
    %90 = math.tanh %89 : vector<48x64xf32>
    %cst_48 = arith.constant 5.000000e-01 : f32
    %91 = vector.broadcast %cst_48 : f32 to vector<48x64xf32>
    %92 = arith.mulf %91, %90 : vector<48x64xf32>
    %cst_49 = arith.constant 5.000000e-01 : f32
    %93 = vector.broadcast %cst_49 : f32 to vector<48x64xf32>
    %94 = arith.addf %92, %93 : vector<48x64xf32>
    %95 = arith.mulf %87, %94 : vector<48x64xf32>
    %c0_50 = arith.constant 0 : index
    %c0_51 = arith.constant 0 : index
    %96 = vector.load %arg15[%c0_50, %c0_51] : memref<1x64xf32, #tpu.memory_space<vmem>>, vector<1x64xf32>
    %97 = vector.broadcast %96 : vector<1x64xf32> to vector<48x64xf32>
    %98 = arith.mulf %95, %97 : vector<48x64xf32>
    %cst_52 = arith.constant dense<0.000000e+00> : vector<48xf32>
    %99 = vector.multi_reduction <add>, %98, %cst_52 [1] : vector<48x64xf32> to vector<48xf32>
    %100 = vector.shape_cast %99 : vector<48xf32> to vector<48x1xf32>
    %c0_53 = arith.constant 0 : index
    %c0_54 = arith.constant 0 : index
    %101 = vector.load %arg16[%c0_53, %c0_54] : memref<1x1xf32, #tpu.memory_space<vmem>>, vector<1x1xf32>
    %102 = vector.broadcast %101 : vector<1x1xf32> to vector<48x1xf32>
    %103 = arith.addf %100, %102 : vector<48x1xf32>
    %104 = vector.broadcast %103 : vector<48x1xf32> to vector<48x3xf32>
    %105 = arith.mulf %104, %45 : vector<48x3xf32>
    %106 = tpu.concatenate %82, %105 in 1 : vector<48x16xf32>, vector<48x3xf32> -> vector<48x19xf32>
    %cst_55 = arith.constant dense<0.000000e+00> : vector<16x19xf32>
    %107 = tpu.matmul %16, %106, %cst_55 {dimension_numbers = #tpu.dot_dimension_numbers<[0], [0], [1], [1], [0, 1, 1, 1], [], []>} : vector<48x16xf32>, vector<48x19xf32>, vector<16x19xf32> -> vector<16x19xf32>
    %108 = vector.extract_strided_slice %107 {offsets = [0, 0], sizes = [16, 16], strides = [1, 1]} : vector<16x19xf32> to vector<16x16xf32>
    %109 = vector.extract_strided_slice %107 {offsets = [0, 16], sizes = [16, 3], strides = [1, 1]} : vector<16x19xf32> to vector<16x3xf32>
    %110 = arith.addf %8, %109 : vector<16x3xf32>
    %cst_56 = arith.constant 0.000000e+00 : f32
    %111 = vector.broadcast %cst_56 : f32 to vector<16x1xf32>
    %112 = vector.broadcast %20 : vector<16x1xf32> to vector<16x32xf32>
    %113 = arith.mulf %7, %112 : vector<16x32xf32>
    %cst_57 = arith.constant dense<0.000000e+00> : vector<16xf32>
    %114 = vector.multi_reduction <add>, %113, %cst_57 [1] : vector<16x32xf32> to vector<16xf32>
    %115 = vector.shape_cast %114 : vector<16xf32> to vector<16x1xf32>
    %cst_58 = arith.constant dense<0.000000e+00> : vector<1xf32>
    %116 = vector.multi_reduction <add>, %115, %cst_58 [0] : vector<16x1xf32> to vector<1xf32>
    %117 = vector.shape_cast %116 : vector<1xf32> to vector<1x1xf32>
    %118 = arith.divf %117, %26 : vector<1x1xf32>
    %119 = vector.broadcast %118 : vector<1x1xf32> to vector<16x1xf32>
    %120 = arith.mulf %20, %119 : vector<16x1xf32>
    %121 = arith.addf %111, %120 : vector<16x1xf32>
    %122 = vector.broadcast %30 : vector<16x1xf32> to vector<16x32xf32>
    %123 = arith.mulf %7, %122 : vector<16x32xf32>
    %cst_59 = arith.constant dense<0.000000e+00> : vector<16xf32>
    %124 = vector.multi_reduction <add>, %123, %cst_59 [1] : vector<16x32xf32> to vector<16xf32>
    %125 = vector.shape_cast %124 : vector<16xf32> to vector<16x1xf32>
    %cst_60 = arith.constant dense<0.000000e+00> : vector<1xf32>
    %126 = vector.multi_reduction <add>, %125, %cst_60 [0] : vector<16x1xf32> to vector<1xf32>
    %127 = vector.shape_cast %126 : vector<1xf32> to vector<1x1xf32>
    %128 = arith.divf %127, %36 : vector<1x1xf32>
    %129 = vector.broadcast %128 : vector<1x1xf32> to vector<16x1xf32>
    %130 = arith.mulf %30, %129 : vector<16x1xf32>
    %131 = arith.addf %121, %130 : vector<16x1xf32>
    %132 = vector.broadcast %131 : vector<16x1xf32> to vector<16x32xf32>
    %133 = arith.subf %7, %132 : vector<16x32xf32>
    %cst_61 = arith.constant 0.000000e+00 : f32
    %134 = vector.broadcast %cst_61 : f32 to vector<16x1xf32>
    %135 = arith.mulf %133, %133 : vector<16x32xf32>
    %136 = vector.broadcast %20 : vector<16x1xf32> to vector<16x32xf32>
    %137 = arith.mulf %135, %136 : vector<16x32xf32>
    %cst_62 = arith.constant dense<0.000000e+00> : vector<16xf32>
    %138 = vector.multi_reduction <add>, %137, %cst_62 [1] : vector<16x32xf32> to vector<16xf32>
    %139 = vector.shape_cast %138 : vector<16xf32> to vector<16x1xf32>
    %cst_63 = arith.constant dense<0.000000e+00> : vector<1xf32>
    %140 = vector.multi_reduction <add>, %139, %cst_63 [0] : vector<16x1xf32> to vector<1xf32>
    %141 = vector.shape_cast %140 : vector<1xf32> to vector<1x1xf32>
    %142 = arith.divf %141, %26 : vector<1x1xf32>
    %143 = vector.broadcast %142 : vector<1x1xf32> to vector<16x1xf32>
    %144 = arith.mulf %20, %143 : vector<16x1xf32>
    %145 = arith.addf %134, %144 : vector<16x1xf32>
    %146 = arith.mulf %133, %133 : vector<16x32xf32>
    %147 = vector.broadcast %30 : vector<16x1xf32> to vector<16x32xf32>
    %148 = arith.mulf %146, %147 : vector<16x32xf32>
    %cst_64 = arith.constant dense<0.000000e+00> : vector<16xf32>
    %149 = vector.multi_reduction <add>, %148, %cst_64 [1] : vector<16x32xf32> to vector<16xf32>
    %150 = vector.shape_cast %149 : vector<16xf32> to vector<16x1xf32>
    %cst_65 = arith.constant dense<0.000000e+00> : vector<1xf32>
    %151 = vector.multi_reduction <add>, %150, %cst_65 [0] : vector<16x1xf32> to vector<1xf32>
    %152 = vector.shape_cast %151 : vector<1xf32> to vector<1x1xf32>
    %153 = arith.divf %152, %36 : vector<1x1xf32>
    %154 = vector.broadcast %153 : vector<1x1xf32> to vector<16x1xf32>
    %155 = arith.mulf %30, %154 : vector<16x1xf32>
    %156 = arith.addf %145, %155 : vector<16x1xf32>
    %cst_66 = arith.constant 9.99999974E-6 : f32
    %157 = vector.broadcast %cst_66 : f32 to vector<16x1xf32>
    %158 = arith.addf %156, %157 : vector<16x1xf32>
    %159 = math.rsqrt %158 : vector<16x1xf32>
    %160 = vector.broadcast %159 : vector<16x1xf32> to vector<16x32xf32>
    %161 = arith.mulf %133, %160 : vector<16x32xf32>
    %c0_67 = arith.constant 0 : index
    %c0_68 = arith.constant 0 : index
    %162 = vector.load %arg17[%c0_67, %c0_68] : memref<32x64xf32, #tpu.memory_space<vmem>>, vector<32x64xf32>
    %cst_69 = arith.constant dense<0.000000e+00> : vector<16x64xf32>
    %163 = tpu.matmul %161, %162, %cst_69 {dimension_numbers = #tpu.dot_dimension_numbers<[1], [0], [0], [1], [0, 0, 1, 1], [], []>} : vector<16x32xf32>, vector<32x64xf32>, vector<16x64xf32> -> vector<16x64xf32>
    %c0_70 = arith.constant 0 : index
    %c0_71 = arith.constant 0 : index
    %164 = vector.load %arg18[%c0_70, %c0_71] : memref<16x64xf32, #tpu.memory_space<vmem>>, vector<16x64xf32>
    %cst_72 = arith.constant dense<0.000000e+00> : vector<16x64xf32>
    %165 = tpu.matmul %108, %164, %cst_72 {dimension_numbers = #tpu.dot_dimension_numbers<[1], [0], [0], [1], [0, 0, 1, 1], [], []>} : vector<16x16xf32>, vector<16x64xf32>, vector<16x64xf32> -> vector<16x64xf32>
    %166 = arith.addf %163, %165 : vector<16x64xf32>
    %c0_73 = arith.constant 0 : index
    %c0_74 = arith.constant 0 : index
    %167 = vector.load %arg19[%c0_73, %c0_74] : memref<1x64xf32, #tpu.memory_space<vmem>>, vector<1x64xf32>
    %168 = vector.broadcast %167 : vector<1x64xf32> to vector<16x64xf32>
    %169 = arith.addf %166, %168 : vector<16x64xf32>
    %cst_75 = arith.constant 5.000000e-01 : f32
    %170 = vector.broadcast %cst_75 : f32 to vector<16x64xf32>
    %171 = arith.mulf %170, %169 : vector<16x64xf32>
    %172 = math.tanh %171 : vector<16x64xf32>
    %cst_76 = arith.constant 5.000000e-01 : f32
    %173 = vector.broadcast %cst_76 : f32 to vector<16x64xf32>
    %174 = arith.mulf %173, %172 : vector<16x64xf32>
    %cst_77 = arith.constant 5.000000e-01 : f32
    %175 = vector.broadcast %cst_77 : f32 to vector<16x64xf32>
    %176 = arith.addf %174, %175 : vector<16x64xf32>
    %177 = arith.mulf %169, %176 : vector<16x64xf32>
    %c0_78 = arith.constant 0 : index
    %c0_79 = arith.constant 0 : index
    %178 = vector.load %arg20[%c0_78, %c0_79] : memref<64x32xf32, #tpu.memory_space<vmem>>, vector<64x32xf32>
    %cst_80 = arith.constant dense<0.000000e+00> : vector<16x32xf32>
    %179 = tpu.matmul %177, %178, %cst_80 {dimension_numbers = #tpu.dot_dimension_numbers<[1], [0], [0], [1], [0, 0, 1, 1], [], []>} : vector<16x64xf32>, vector<64x32xf32>, vector<16x32xf32> -> vector<16x32xf32>
    %c0_81 = arith.constant 0 : index
    %c0_82 = arith.constant 0 : index
    %180 = vector.load %arg21[%c0_81, %c0_82] : memref<1x32xf32, #tpu.memory_space<vmem>>, vector<1x32xf32>
    %181 = vector.broadcast %180 : vector<1x32xf32> to vector<16x32xf32>
    %182 = arith.addf %179, %181 : vector<16x32xf32>
    %183 = arith.addf %7, %182 : vector<16x32xf32>
    %184 = tpu.concatenate %183, %110 in 1 : vector<16x32xf32>, vector<16x3xf32> -> vector<16x35xf32>
    %cst_83 = arith.constant dense<0.000000e+00> : vector<96x35xf32>
    %185 = tpu.matmul %15, %184, %cst_83 {dimension_numbers = #tpu.dot_dimension_numbers<[1], [0], [0], [1], [0, 0, 1, 1], [], []>} : vector<96x16xf32>, vector<16x35xf32>, vector<96x35xf32> -> vector<96x35xf32>
    %186 = vector.extract_strided_slice %185 {offsets = [0, 0], sizes = [48, 35], strides = [1, 1]} : vector<96x35xf32> to vector<48x35xf32>
    %187 = vector.extract_strided_slice %185 {offsets = [48, 0], sizes = [48, 35], strides = [1, 1]} : vector<96x35xf32> to vector<48x35xf32>
    %188 = vector.extract_strided_slice %186 {offsets = [0, 0], sizes = [48, 32], strides = [1, 1]} : vector<48x35xf32> to vector<48x32xf32>
    %189 = vector.extract_strided_slice %186 {offsets = [0, 32], sizes = [48, 3], strides = [1, 1]} : vector<48x35xf32> to vector<48x3xf32>
    %190 = vector.extract_strided_slice %187 {offsets = [0, 0], sizes = [48, 32], strides = [1, 1]} : vector<48x35xf32> to vector<48x32xf32>
    %191 = vector.extract_strided_slice %187 {offsets = [0, 32], sizes = [48, 3], strides = [1, 1]} : vector<48x35xf32> to vector<48x3xf32>
    %192 = arith.subf %189, %191 : vector<48x3xf32>
    %193 = arith.mulf %192, %192 : vector<48x3xf32>
    %cst_84 = arith.constant dense<0.000000e+00> : vector<48xf32>
    %194 = vector.multi_reduction <add>, %193, %cst_84 [1] : vector<48x3xf32> to vector<48xf32>
    %195 = vector.shape_cast %194 : vector<48xf32> to vector<48x1xf32>
    %c0_85 = arith.constant 0 : index
    %c0_86 = arith.constant 0 : index
    %196 = vector.load %arg22[%c0_85, %c0_86] : memref<32x130xf32, #tpu.memory_space<vmem>>, vector<32x130xf32>
    %cst_87 = arith.constant dense<0.000000e+00> : vector<48x130xf32>
    %197 = tpu.matmul %190, %196, %cst_87 {dimension_numbers = #tpu.dot_dimension_numbers<[1], [0], [0], [1], [0, 0, 1, 1], [], []>} : vector<48x32xf32>, vector<32x130xf32>, vector<48x130xf32> -> vector<48x130xf32>
    %c0_88 = arith.constant 0 : index
    %c0_89 = arith.constant 0 : index
    %198 = vector.load %arg23[%c0_88, %c0_89] : memref<32x130xf32, #tpu.memory_space<vmem>>, vector<32x130xf32>
    %cst_90 = arith.constant dense<0.000000e+00> : vector<48x130xf32>
    %199 = tpu.matmul %188, %198, %cst_90 {dimension_numbers = #tpu.dot_dimension_numbers<[1], [0], [0], [1], [0, 0, 1, 1], [], []>} : vector<48x32xf32>, vector<32x130xf32>, vector<48x130xf32> -> vector<48x130xf32>
    %200 = arith.addf %197, %199 : vector<48x130xf32>
    %c0_91 = arith.constant 0 : index
    %c0_92 = arith.constant 0 : index
    %201 = vector.load %arg24[%c0_91, %c0_92] : memref<1x130xf32, #tpu.memory_space<vmem>>, vector<1x130xf32>
    %202 = vector.broadcast %195 : vector<48x1xf32> to vector<48x130xf32>
    %203 = vector.broadcast %201 : vector<1x130xf32> to vector<48x130xf32>
    %204 = arith.mulf %202, %203 : vector<48x130xf32>
    %205 = arith.addf %200, %204 : vector<48x130xf32>
    %c0_93 = arith.constant 0 : index
    %c0_94 = arith.constant 0 : index
    %206 = vector.load %arg25[%c0_93, %c0_94] : memref<1x130xf32, #tpu.memory_space<vmem>>, vector<1x130xf32>
    %207 = vector.broadcast %206 : vector<1x130xf32> to vector<48x130xf32>
    %208 = arith.addf %205, %207 : vector<48x130xf32>
    %cst_95 = arith.constant 5.000000e-01 : f32
    %209 = vector.broadcast %cst_95 : f32 to vector<48x130xf32>
    %210 = arith.mulf %209, %208 : vector<48x130xf32>
    %211 = math.tanh %210 : vector<48x130xf32>
    %cst_96 = arith.constant 5.000000e-01 : f32
    %212 = vector.broadcast %cst_96 : f32 to vector<48x130xf32>
    %213 = arith.mulf %212, %211 : vector<48x130xf32>
    %cst_97 = arith.constant 5.000000e-01 : f32
    %214 = vector.broadcast %cst_97 : f32 to vector<48x130xf32>
    %215 = arith.addf %213, %214 : vector<48x130xf32>
    %216 = arith.mulf %208, %215 : vector<48x130xf32>
    %c0_98 = arith.constant 0 : index
    %c0_99 = arith.constant 0 : index
    %217 = vector.load %arg26[%c0_98, %c0_99] : memref<130x16xf32, #tpu.memory_space<vmem>>, vector<130x16xf32>
    %cst_100 = arith.constant dense<0.000000e+00> : vector<48x16xf32>
    %218 = tpu.matmul %216, %217, %cst_100 {dimension_numbers = #tpu.dot_dimension_numbers<[1], [0], [0], [1], [0, 0, 1, 1], [], []>} : vector<48x130xf32>, vector<130x16xf32>, vector<48x16xf32> -> vector<48x16xf32>
    %c0_101 = arith.constant 0 : index
    %c0_102 = arith.constant 0 : index
    %219 = vector.load %arg27[%c0_101, %c0_102] : memref<1x16xf32, #tpu.memory_space<vmem>>, vector<1x16xf32>
    %220 = vector.broadcast %219 : vector<1x16xf32> to vector<48x16xf32>
    %221 = arith.addf %218, %220 : vector<48x16xf32>
    %cst_103 = arith.constant 5.000000e-01 : f32
    %222 = vector.broadcast %cst_103 : f32 to vector<48x16xf32>
    %223 = arith.mulf %222, %221 : vector<48x16xf32>
    %224 = math.tanh %223 : vector<48x16xf32>
    %cst_104 = arith.constant 5.000000e-01 : f32
    %225 = vector.broadcast %cst_104 : f32 to vector<48x16xf32>
    %226 = arith.mulf %225, %224 : vector<48x16xf32>
    %cst_105 = arith.constant 5.000000e-01 : f32
    %227 = vector.broadcast %cst_105 : f32 to vector<48x16xf32>
    %228 = arith.addf %226, %227 : vector<48x16xf32>
    %229 = arith.mulf %221, %228 : vector<48x16xf32>
    %c0_106 = arith.constant 0 : index
    %c0_107 = arith.constant 0 : index
    %230 = vector.load %arg28[%c0_106, %c0_107] : memref<16x64xf32, #tpu.memory_space<vmem>>, vector<16x64xf32>
    %cst_108 = arith.constant dense<0.000000e+00> : vector<48x64xf32>
    %231 = tpu.matmul %229, %230, %cst_108 {dimension_numbers = #tpu.dot_dimension_numbers<[1], [0], [0], [1], [0, 0, 1, 1], [], []>} : vector<48x16xf32>, vector<16x64xf32>, vector<48x64xf32> -> vector<48x64xf32>
    %c0_109 = arith.constant 0 : index
    %c0_110 = arith.constant 0 : index
    %232 = vector.load %arg29[%c0_109, %c0_110] : memref<1x64xf32, #tpu.memory_space<vmem>>, vector<1x64xf32>
    %233 = vector.broadcast %232 : vector<1x64xf32> to vector<48x64xf32>
    %234 = arith.addf %231, %233 : vector<48x64xf32>
    %cst_111 = arith.constant 5.000000e-01 : f32
    %235 = vector.broadcast %cst_111 : f32 to vector<48x64xf32>
    %236 = arith.mulf %235, %234 : vector<48x64xf32>
    %237 = math.tanh %236 : vector<48x64xf32>
    %cst_112 = arith.constant 5.000000e-01 : f32
    %238 = vector.broadcast %cst_112 : f32 to vector<48x64xf32>
    %239 = arith.mulf %238, %237 : vector<48x64xf32>
    %cst_113 = arith.constant 5.000000e-01 : f32
    %240 = vector.broadcast %cst_113 : f32 to vector<48x64xf32>
    %241 = arith.addf %239, %240 : vector<48x64xf32>
    %242 = arith.mulf %234, %241 : vector<48x64xf32>
    %c0_114 = arith.constant 0 : index
    %c0_115 = arith.constant 0 : index
    %243 = vector.load %arg30[%c0_114, %c0_115] : memref<1x64xf32, #tpu.memory_space<vmem>>, vector<1x64xf32>
    %244 = vector.broadcast %243 : vector<1x64xf32> to vector<48x64xf32>
    %245 = arith.mulf %242, %244 : vector<48x64xf32>
    %cst_116 = arith.constant dense<0.000000e+00> : vector<48xf32>
    %246 = vector.multi_reduction <add>, %245, %cst_116 [1] : vector<48x64xf32> to vector<48xf32>
    %247 = vector.shape_cast %246 : vector<48xf32> to vector<48x1xf32>
    %c0_117 = arith.constant 0 : index
    %c0_118 = arith.constant 0 : index
    %248 = vector.load %arg31[%c0_117, %c0_118] : memref<1x1xf32, #tpu.memory_space<vmem>>, vector<1x1xf32>
    %249 = vector.broadcast %248 : vector<1x1xf32> to vector<48x1xf32>
    %250 = arith.addf %247, %249 : vector<48x1xf32>
    %251 = vector.broadcast %250 : vector<48x1xf32> to vector<48x3xf32>
    %252 = arith.mulf %251, %192 : vector<48x3xf32>
    %253 = tpu.concatenate %229, %252 in 1 : vector<48x16xf32>, vector<48x3xf32> -> vector<48x19xf32>
    %cst_119 = arith.constant dense<0.000000e+00> : vector<16x19xf32>
    %254 = tpu.matmul %16, %253, %cst_119 {dimension_numbers = #tpu.dot_dimension_numbers<[0], [0], [1], [1], [0, 1, 1, 1], [], []>} : vector<48x16xf32>, vector<48x19xf32>, vector<16x19xf32> -> vector<16x19xf32>
    %255 = vector.extract_strided_slice %254 {offsets = [0, 0], sizes = [16, 16], strides = [1, 1]} : vector<16x19xf32> to vector<16x16xf32>
    %256 = vector.extract_strided_slice %254 {offsets = [0, 16], sizes = [16, 3], strides = [1, 1]} : vector<16x19xf32> to vector<16x3xf32>
    %257 = arith.addf %110, %256 : vector<16x3xf32>
    %cst_120 = arith.constant 0.000000e+00 : f32
    %258 = vector.broadcast %cst_120 : f32 to vector<16x1xf32>
    %259 = vector.broadcast %20 : vector<16x1xf32> to vector<16x32xf32>
    %260 = arith.mulf %183, %259 : vector<16x32xf32>
    %cst_121 = arith.constant dense<0.000000e+00> : vector<16xf32>
    %261 = vector.multi_reduction <add>, %260, %cst_121 [1] : vector<16x32xf32> to vector<16xf32>
    %262 = vector.shape_cast %261 : vector<16xf32> to vector<16x1xf32>
    %cst_122 = arith.constant dense<0.000000e+00> : vector<1xf32>
    %263 = vector.multi_reduction <add>, %262, %cst_122 [0] : vector<16x1xf32> to vector<1xf32>
    %264 = vector.shape_cast %263 : vector<1xf32> to vector<1x1xf32>
    %265 = arith.divf %264, %26 : vector<1x1xf32>
    %266 = vector.broadcast %265 : vector<1x1xf32> to vector<16x1xf32>
    %267 = arith.mulf %20, %266 : vector<16x1xf32>
    %268 = arith.addf %258, %267 : vector<16x1xf32>
    %269 = vector.broadcast %30 : vector<16x1xf32> to vector<16x32xf32>
    %270 = arith.mulf %183, %269 : vector<16x32xf32>
    %cst_123 = arith.constant dense<0.000000e+00> : vector<16xf32>
    %271 = vector.multi_reduction <add>, %270, %cst_123 [1] : vector<16x32xf32> to vector<16xf32>
    %272 = vector.shape_cast %271 : vector<16xf32> to vector<16x1xf32>
    %cst_124 = arith.constant dense<0.000000e+00> : vector<1xf32>
    %273 = vector.multi_reduction <add>, %272, %cst_124 [0] : vector<16x1xf32> to vector<1xf32>
    %274 = vector.shape_cast %273 : vector<1xf32> to vector<1x1xf32>
    %275 = arith.divf %274, %36 : vector<1x1xf32>
    %276 = vector.broadcast %275 : vector<1x1xf32> to vector<16x1xf32>
    %277 = arith.mulf %30, %276 : vector<16x1xf32>
    %278 = arith.addf %268, %277 : vector<16x1xf32>
    %279 = vector.broadcast %278 : vector<16x1xf32> to vector<16x32xf32>
    %280 = arith.subf %183, %279 : vector<16x32xf32>
    %cst_125 = arith.constant 0.000000e+00 : f32
    %281 = vector.broadcast %cst_125 : f32 to vector<16x1xf32>
    %282 = arith.mulf %280, %280 : vector<16x32xf32>
    %283 = vector.broadcast %20 : vector<16x1xf32> to vector<16x32xf32>
    %284 = arith.mulf %282, %283 : vector<16x32xf32>
    %cst_126 = arith.constant dense<0.000000e+00> : vector<16xf32>
    %285 = vector.multi_reduction <add>, %284, %cst_126 [1] : vector<16x32xf32> to vector<16xf32>
    %286 = vector.shape_cast %285 : vector<16xf32> to vector<16x1xf32>
    %cst_127 = arith.constant dense<0.000000e+00> : vector<1xf32>
    %287 = vector.multi_reduction <add>, %286, %cst_127 [0] : vector<16x1xf32> to vector<1xf32>
    %288 = vector.shape_cast %287 : vector<1xf32> to vector<1x1xf32>
    %289 = arith.divf %288, %26 : vector<1x1xf32>
    %290 = vector.broadcast %289 : vector<1x1xf32> to vector<16x1xf32>
    %291 = arith.mulf %20, %290 : vector<16x1xf32>
    %292 = arith.addf %281, %291 : vector<16x1xf32>
    %293 = arith.mulf %280, %280 : vector<16x32xf32>
    %294 = vector.broadcast %30 : vector<16x1xf32> to vector<16x32xf32>
    %295 = arith.mulf %293, %294 : vector<16x32xf32>
    %cst_128 = arith.constant dense<0.000000e+00> : vector<16xf32>
    %296 = vector.multi_reduction <add>, %295, %cst_128 [1] : vector<16x32xf32> to vector<16xf32>
    %297 = vector.shape_cast %296 : vector<16xf32> to vector<16x1xf32>
    %cst_129 = arith.constant dense<0.000000e+00> : vector<1xf32>
    %298 = vector.multi_reduction <add>, %297, %cst_129 [0] : vector<16x1xf32> to vector<1xf32>
    %299 = vector.shape_cast %298 : vector<1xf32> to vector<1x1xf32>
    %300 = arith.divf %299, %36 : vector<1x1xf32>
    %301 = vector.broadcast %300 : vector<1x1xf32> to vector<16x1xf32>
    %302 = arith.mulf %30, %301 : vector<16x1xf32>
    %303 = arith.addf %292, %302 : vector<16x1xf32>
    %cst_130 = arith.constant 9.99999974E-6 : f32
    %304 = vector.broadcast %cst_130 : f32 to vector<16x1xf32>
    %305 = arith.addf %303, %304 : vector<16x1xf32>
    %306 = math.rsqrt %305 : vector<16x1xf32>
    %307 = vector.broadcast %306 : vector<16x1xf32> to vector<16x32xf32>
    %308 = arith.mulf %280, %307 : vector<16x32xf32>
    %c0_131 = arith.constant 0 : index
    %c0_132 = arith.constant 0 : index
    %309 = vector.load %arg32[%c0_131, %c0_132] : memref<32x64xf32, #tpu.memory_space<vmem>>, vector<32x64xf32>
    %cst_133 = arith.constant dense<0.000000e+00> : vector<16x64xf32>
    %310 = tpu.matmul %308, %309, %cst_133 {dimension_numbers = #tpu.dot_dimension_numbers<[1], [0], [0], [1], [0, 0, 1, 1], [], []>} : vector<16x32xf32>, vector<32x64xf32>, vector<16x64xf32> -> vector<16x64xf32>
    %c0_134 = arith.constant 0 : index
    %c0_135 = arith.constant 0 : index
    %311 = vector.load %arg33[%c0_134, %c0_135] : memref<16x64xf32, #tpu.memory_space<vmem>>, vector<16x64xf32>
    %cst_136 = arith.constant dense<0.000000e+00> : vector<16x64xf32>
    %312 = tpu.matmul %255, %311, %cst_136 {dimension_numbers = #tpu.dot_dimension_numbers<[1], [0], [0], [1], [0, 0, 1, 1], [], []>} : vector<16x16xf32>, vector<16x64xf32>, vector<16x64xf32> -> vector<16x64xf32>
    %313 = arith.addf %310, %312 : vector<16x64xf32>
    %c0_137 = arith.constant 0 : index
    %c0_138 = arith.constant 0 : index
    %314 = vector.load %arg34[%c0_137, %c0_138] : memref<1x64xf32, #tpu.memory_space<vmem>>, vector<1x64xf32>
    %315 = vector.broadcast %314 : vector<1x64xf32> to vector<16x64xf32>
    %316 = arith.addf %313, %315 : vector<16x64xf32>
    %cst_139 = arith.constant 5.000000e-01 : f32
    %317 = vector.broadcast %cst_139 : f32 to vector<16x64xf32>
    %318 = arith.mulf %317, %316 : vector<16x64xf32>
    %319 = math.tanh %318 : vector<16x64xf32>
    %cst_140 = arith.constant 5.000000e-01 : f32
    %320 = vector.broadcast %cst_140 : f32 to vector<16x64xf32>
    %321 = arith.mulf %320, %319 : vector<16x64xf32>
    %cst_141 = arith.constant 5.000000e-01 : f32
    %322 = vector.broadcast %cst_141 : f32 to vector<16x64xf32>
    %323 = arith.addf %321, %322 : vector<16x64xf32>
    %324 = arith.mulf %316, %323 : vector<16x64xf32>
    %c0_142 = arith.constant 0 : index
    %c0_143 = arith.constant 0 : index
    %325 = vector.load %arg35[%c0_142, %c0_143] : memref<64x32xf32, #tpu.memory_space<vmem>>, vector<64x32xf32>
    %cst_144 = arith.constant dense<0.000000e+00> : vector<16x32xf32>
    %326 = tpu.matmul %324, %325, %cst_144 {dimension_numbers = #tpu.dot_dimension_numbers<[1], [0], [0], [1], [0, 0, 1, 1], [], []>} : vector<16x64xf32>, vector<64x32xf32>, vector<16x32xf32> -> vector<16x32xf32>
    %c0_145 = arith.constant 0 : index
    %c0_146 = arith.constant 0 : index
    %327 = vector.load %arg36[%c0_145, %c0_146] : memref<1x32xf32, #tpu.memory_space<vmem>>, vector<1x32xf32>
    %328 = vector.broadcast %327 : vector<1x32xf32> to vector<16x32xf32>
    %329 = arith.addf %326, %328 : vector<16x32xf32>
    %330 = arith.addf %183, %329 : vector<16x32xf32>
    %331 = tpu.concatenate %330, %257 in 1 : vector<16x32xf32>, vector<16x3xf32> -> vector<16x35xf32>
    %c0_147 = arith.constant 0 : index
    %c0_148 = arith.constant 0 : index
    %332 = vector.load %arg37[%c0_147, %c0_148] : memref<16x35xf32, #tpu.memory_space<vmem>>, vector<16x35xf32>
    tpu.vector_store %arg37[%c0_147, %c0_148], %331 {strides = array<i32>} : memref<16x35xf32, #tpu.memory_space<vmem>>, vector<16x35xf32>,
    return
  }
}

</mosaic_0001>

<llo_original>
// kernel: _lambda_.1
$region0: #{_lambda_.1}
  #allocation0 [shape = 'u32[]', space=smem, size = 0x4, offset = 0x4, fixed_abs, tag = 'smem constant byte address 0x4 - core index']
  #allocation1 [shape = 'u32[144,128]{1,0:T(1,128)}', space=vmem, size = 0x12000, scoped, tag = 'internal scratch']
  #allocation2 [shape = 'f32[1,1]{1,0:T(1,128)S(1)}', space=vmem, size = 0x200, scoped, tag = 'scoped memory for _lambda_.1']
  #allocation3 [shape = 'f32[1,1]{1,0:T(1,128)S(1)}', space=vmem, size = 0x200, scoped, tag = 'scoped memory for _lambda_.1']
  %s0 = inlined_call_operand.smem [shape: u32[38], index: -1, kind: input, shape index: {}]
  %s1 = sld [smem:[%s0]]
  %s2 = scalar_lea.smem %s0, 1
  %s3 = sld [smem:[%s2]]
  %s4 = scalar_lea.smem %s0, 2
  %s5 = sld [smem:[%s4]]
  %s6 = scalar_lea.smem %s0, 3
  %s7 = sld [smem:[%s6]]
  %s8 = scalar_lea.smem %s0, 4
  %s9 = sld [smem:[%s8]]
  %s10 = scalar_lea.smem %s0, 5
  %s11 = sld [smem:[%s10]]
  %s12 = scalar_lea.smem %s0, 6
  %s13 = sld [smem:[%s12]]
  %s14 = scalar_lea.smem %s0, 7
  %s15 = sld [smem:[%s14]]
  %s16 = scalar_lea.smem %s0, 8
  %s17 = sld [smem:[%s16]]
  %s18 = scalar_lea.smem %s0, 9
  %s19 = sld [smem:[%s18]]
  %s20 = scalar_lea.smem %s0, 10
  %s21 = sld [smem:[%s20]]
  %s22 = scalar_lea.smem %s0, 11
  %s23 = sld [smem:[%s22]]
  %s24 = scalar_lea.smem %s0, 12
  %s25 = sld [smem:[%s24]]
  %s26 = scalar_lea.smem %s0, 13
  %s27 = sld [smem:[%s26]]
  %s28 = scalar_lea.smem %s0, 14
  %s29 = sld [smem:[%s28]]
  %s30 = scalar_lea.smem %s0, 15
  %s31 = sld [smem:[%s30]]
  %s32 = scalar_lea.smem %s0, 16
  %s33 = sld [smem:[%s32]]
  %s34 = scalar_lea.smem %s0, 17
  %s35 = sld [smem:[%s34]]
  %s36 = scalar_lea.smem %s0, 18
  %s37 = sld [smem:[%s36]]
  %s38 = scalar_lea.smem %s0, 19
  %s39 = sld [smem:[%s38]]
  %s40 = scalar_lea.smem %s0, 20
  %s41 = sld [smem:[%s40]]
  %s42 = scalar_lea.smem %s0, 21
  %s43 = sld [smem:[%s42]]
  %s44 = scalar_lea.smem %s0, 22
  %s45 = sld [smem:[%s44]]
  %s46 = scalar_lea.smem %s0, 23
  %s47 = sld [smem:[%s46]]
  %s48 = scalar_lea.smem %s0, 24
  %s49 = sld [smem:[%s48]]
  %s50 = scalar_lea.smem %s0, 25
  %s51 = sld [smem:[%s50]]
  %s52 = scalar_lea.smem %s0, 26
  %s53 = sld [smem:[%s52]]
  %s54 = scalar_lea.smem %s0, 27
  %s55 = sld [smem:[%s54]]
  %s56 = scalar_lea.smem %s0, 28
  %s57 = sld [smem:[%s56]]
  %s58 = scalar_lea.smem %s0, 29
  %s59 = sld [smem:[%s58]]
  %s60 = scalar_lea.smem %s0, 30
  %s61 = sld [smem:[%s60]]
  %s62 = scalar_lea.smem %s0, 31
  %s63 = sld [smem:[%s62]]
  %s64 = scalar_lea.smem %s0, 32
  %s65 = sld [smem:[%s64]]
  %s66 = scalar_lea.smem %s0, 33
  %s67 = sld [smem:[%s66]]
  %s68 = scalar_lea.smem %s0, 34
  %s69 = sld [smem:[%s68]]
  %s70 = scalar_lea.smem %s0, 35
  %s71 = sld [smem:[%s70]]
  %s72 = scalar_lea.smem %s0, 36
  %s73 = sld [smem:[%s72]]
  %s74 = scalar_lea.smem %s0, 37
  %s75 = sld [smem:[%s74]]
  %s76 = sld [smem:[#allocation0]]
  $region230: #{_lambda_.1} parent=0
    _
  %s78 = ssub.s32 1, %s76
  %s79 = scalar_select 0, %s78, %s76
  %v80 = vstv %s33
  %81 = vst [vmem:[#allocation2] sm:$0x1] %v80
  %v82 = vstv %s63
  %83 = vst [vmem:[#allocation3] sm:$0x1] %v82
  $region1: #{_lambda_.1} parent=0
    #allocation4 [shape = 'u8[8192]{0}', space=vmem, size = 0x2000, scoped, tag = 'input window, operand 0, single buffered']
    #allocation5 [shape = 's32[1]{0}', space=sflag, size = 0x4, scoped, tag = 'scoped memory for _lambda_.1']
    #allocation6 [shape = 'u8[4096]{0}', space=vmem, size = 0x1000, scoped, tag = 'input window, operand 5, single buffered']
    #allocation7 [shape = 's32[1]{0}', space=sflag, size = 0x4, scoped, tag = 'scoped memory for _lambda_.1']
    #allocation8 [shape = 'u8[32768]{0}', space=vmem, size = 0x8000, scoped, tag = 'input window, operand 7, single buffered']
    #allocation9 [shape = 'u8[32768]{0}', space=vmem, size = 0x8000, scoped, tag = 'input window, operand 8, single buffered']
    #allocation10 [shape = 's32[1]{0}', space=sflag, size = 0x4, scoped, tag = 'scoped memory for _lambda_.1']
    #allocation11 [shape = 'u8[1024]{0}', space=vmem, size = 0x400, scoped, tag = 'input window, operand 9, single buffered']
    #allocation12 [shape = 'u8[8192]{0}', space=vmem, size = 0x2000, scoped, tag = 'input window, operand 13, single buffered']
    #allocation13 [shape = 's32[1]{0}', space=sflag, size = 0x4, scoped, tag = 'scoped memory for _lambda_.1']
    #allocation14 [shape = 'u8[512]{0}', space=vmem, size = 0x400, scoped, tag = 'input window, operand 15, single buffered']
    #allocation15 [shape = 'u8[16384]{0}', space=vmem, size = 0x4000, scoped, tag = 'input window, operand 17, single buffered']
    #allocation16 [shape = 's32[1]{0}', space=sflag, size = 0x4, scoped, tag = 'scoped memory for _lambda_.1']
    #allocation17 [shape = 'u8[8192]{0}', space=vmem, size = 0x2000, scoped, tag = 'input window, operand 18, single buffered']
    #allocation18 [shape = 'u8[32768]{0}', space=vmem, size = 0x8000, scoped, tag = 'input window, operand 20, single buffered']
    #allocation19 [shape = 's32[1]{0}', space=sflag, size = 0x4, scoped, tag = 'scoped memory for _lambda_.1']
    #allocation20 [shape = 'u8[32768]{0}', space=vmem, size = 0x8000, scoped, tag = 'input window, operand 22, single buffered']
    #allocation21 [shape = 'u8[32768]{0}', space=vmem, size = 0x8000, scoped, tag = 'input window, operand 23, single buffered']
    #allocation22 [shape = 's32[1]{0}', space=sflag, size = 0x4, scoped, tag = 'scoped memory for _lambda_.1']
    #allocation23 [shape = 'u8[1024]{0}', space=vmem, size = 0x400, scoped, tag = 'input window, operand 24, single buffered']
    #allocation24 [shape = 'u8[8192]{0}', space=vmem, size = 0x2000, scoped, tag = 'input window, operand 28, single buffered']
    #allocation25 [shape = 's32[1]{0}', space=sflag, size = 0x4, scoped, tag = 'scoped memory for _lambda_.1']
    #allocation26 [shape = 'u8[512]{0}', space=vmem, size = 0x400, scoped, tag = 'input window, operand 30, single buffered']
    #allocation27 [shape = 'u8[16384]{0}', space=vmem, size = 0x4000, scoped, tag = 'input window, operand 32, single buffered']
    #allocation28 [shape = 's32[1]{0}', space=sflag, size = 0x4, scoped, tag = 'scoped memory for _lambda_.1']
    #allocation29 [shape = 'u8[8192]{0}', space=vmem, size = 0x2000, scoped, tag = 'input window, operand 33, single buffered']
    #allocation30 [shape = 'u8[32768]{0}', space=vmem, size = 0x8000, scoped, tag = 'input window, operand 35, single buffered']
    #allocation31 [shape = 's32[1]{0}', space=sflag, size = 0x4, scoped, tag = 'scoped memory for _lambda_.1']
    %84 = vsyncpa [#allocation5], 0
    %85 = vsyncpa [#allocation7], 0
    %86 = vsyncpa [#allocation10], 0
    %87 = vsyncpa [#allocation13], 0
    %88 = vsyncpa [#allocation16], 0
    %89 = vsyncpa [#allocation19], 0
    %90 = vsyncpa [#allocation22], 0
    %91 = vsyncpa [#allocation25], 0
    %92 = vsyncpa [#allocation28], 0
    %93 = vsyncpa [#allocation31], 0
    // Predicated region
    $region2: #{_lambda_.1} parent=1 // pred_check
      _
    $region3: #{_lambda_.1} parent=1 // pred_check_branch
      %95 = sbr.rel (0) target = $region5
    $region4: #{_lambda_.1} parent=1 // pred_region
      %s97 = ssub.s32 256, 256
      %98 = vsyncadd [#allocation5], %s97
      %s99 = sshll.u32 [#allocation4], 4
      %s100 = int_to_ptr.vmem [resolvable:$true] %s99
      %105 = dma.hbm_to_vmem [thread:$0]  %s1, 256, %s100, [#allocation5], 128, 128, 8
    $region5: #{_lambda_.1} parent=1 // pred_fallthru
      _
    // Predicated region
    $region6: #{_lambda_.1} parent=1 // pred_check
      _
    $region7: #{_lambda_.1} parent=1 // pred_check_branch
      %107 = sbr.rel (0) target = $region9
    $region8: #{_lambda_.1} parent=1 // pred_region
      _
    $region9: #{_lambda_.1} parent=1 // pred_fallthru
      _
    // Predicated region
    $region10: #{_lambda_.1} parent=1 // pred_check
      _
    $region11: #{_lambda_.1} parent=1 // pred_check_branch
      %109 = sbr.rel (0) target = $region13
    $region12: #{_lambda_.1} parent=1 // pred_region
      _
    $region13: #{_lambda_.1} parent=1 // pred_fallthru
      _
    // Predicated region
    $region14: #{_lambda_.1} parent=1 // pred_check
      _
    $region15: #{_lambda_.1} parent=1 // pred_check_branch
      %111 = sbr.rel (0) target = $region17
    $region16: #{_lambda_.1} parent=1 // pred_region
      _
    $region17: #{_lambda_.1} parent=1 // pred_fallthru
      _
    // Predicated region
    $region18: #{_lambda_.1} parent=1 // pred_check
      _
    $region19: #{_lambda_.1} parent=1 // pred_check_branch
      %113 = sbr.rel (0) target = $region21
    $region20: #{_lambda_.1} parent=1 // pred_region
      _
    $region21: #{_lambda_.1} parent=1 // pred_fallthru
      _
    // Predicated region
    $region22: #{_lambda_.1} parent=1 // pred_check
      _
    $region23: #{_lambda_.1} parent=1 // pred_check_branch
      %115 = sbr.rel (0) target = $region25
    $region24: #{_lambda_.1} parent=1 // pred_region
      %s117 = ssub.s32 128, 128
      %118 = vsyncadd [#allocation7], %s117
      %s120 = sshll.u32 [#allocation6], 4
      %s121 = int_to_ptr.vmem [resolvable:$true] %s120
      %123 = dma.hbm_to_vmem [thread:$0]  %s11, 128, %s121, [#allocation7]
    $region25: #{_lambda_.1} parent=1 // pred_fallthru
      _
    // Predicated region
    $region26: #{_lambda_.1} parent=1 // pred_check
      _
    $region27: #{_lambda_.1} parent=1 // pred_check_branch
      %125 = sbr.rel (0) target = $region29
    $region28: #{_lambda_.1} parent=1 // pred_region
      _
    $region29: #{_lambda_.1} parent=1 // pred_fallthru
      _
    // Predicated region
    $region30: #{_lambda_.1} parent=1 // pred_check
      _
    $region31: #{_lambda_.1} parent=1 // pred_check_branch
      %127 = sbr.rel (0) target = $region33
    $region32: #{_lambda_.1} parent=1 // pred_region
      %s129 = ssub.s32 1024, 1024
      %130 = vsyncadd [#allocation7], %s129
      %s131 = sshll.u32 [#allocation8], 4
      %s132 = int_to_ptr.vmem [resolvable:$true] %s131
      %137 = dma.hbm_to_vmem [thread:$0]  %s15, 1024, %s132, [#allocation7], 256, 256, 16
    $region33: #{_lambda_.1} parent=1 // pred_fallthru
      _
    // Predicated region
    $region34: #{_lambda_.1} parent=1 // pred_check
      _
    $region35: #{_lambda_.1} parent=1 // pred_check_branch
      %139 = sbr.rel (0) target = $region37
    $region36: #{_lambda_.1} parent=1 // pred_region
      %s141 = ssub.s32 1024, 1024
      %142 = vsyncadd [#allocation10], %s141
      %s143 = sshll.u32 [#allocation9], 4
      %s144 = int_to_ptr.vmem [resolvable:$true] %s143
      %149 = dma.hbm_to_vmem [thread:$0]  %s17, 1024, %s144, [#allocation10], 256, 256, 16
    $region37: #{_lambda_.1} parent=1 // pred_fallthru
      _
    // Predicated region
    $region38: #{_lambda_.1} parent=1 // pred_check
      _
    $region39: #{_lambda_.1} parent=1 // pred_check_branch
      %151 = sbr.rel (0) target = $region41
    $region40: #{_lambda_.1} parent=1 // pred_region
      %s153 = ssub.s32 32, 32
      %154 = vsyncadd [#allocation10], %s153
      %s156 = sshll.u32 [#allocation11], 4
      %s157 = int_to_ptr.vmem [resolvable:$true] %s156
      %159 = dma.hbm_to_vmem [thread:$0]  %s19, 32, %s157, [#allocation10]
    $region41: #{_lambda_.1} parent=1 // pred_fallthru
      _
    // Predicated region
    $region42: #{_lambda_.1} parent=1 // pred_check
      _
    $region43: #{_lambda_.1} parent=1 // pred_check_branch
      %161 = sbr.rel (0) target = $region45
    $region44: #{_lambda_.1} parent=1 // pred_region
      _
    $region45: #{_lambda_.1} parent=1 // pred_fallthru
      _
    // Predicated region
    $region46: #{_lambda_.1} parent=1 // pred_check
      _
    $region47: #{_lambda_.1} parent=1 // pred_check_branch
      %163 = sbr.rel (0) target = $region49
    $region48: #{_lambda_.1} parent=1 // pred_region
      _
    $region49: #{_lambda_.1} parent=1 // pred_fallthru
      _
    // Predicated region
    $region50: #{_lambda_.1} parent=1 // pred_check
      _
    $region51: #{_lambda_.1} parent=1 // pred_check_branch
      %165 = sbr.rel (0) target = $region53
    $region52: #{_lambda_.1} parent=1 // pred_region
      _
    $region53: #{_lambda_.1} parent=1 // pred_fallthru
      _
    // Predicated region
    $region54: #{_lambda_.1} parent=1 // pred_check
      _
    $region55: #{_lambda_.1} parent=1 // pred_check_branch
      %167 = sbr.rel (0) target = $region57
    $region56: #{_lambda_.1} parent=1 // pred_region
      %s169 = ssub.s32 256, 256
      %170 = vsyncadd [#allocation13], %s169
      %s171 = sshll.u32 [#allocation12], 4
      %s172 = int_to_ptr.vmem [resolvable:$true] %s171
      %177 = dma.hbm_to_vmem [thread:$0]  %s27, 256, %s172, [#allocation13], 128, 128, 8
    $region57: #{_lambda_.1} parent=1 // pred_fallthru
      _
    // Predicated region
    $region58: #{_lambda_.1} parent=1 // pred_check
      _
    $region59: #{_lambda_.1} parent=1 // pred_check_branch
      %179 = sbr.rel (0) target = $region61
    $region60: #{_lambda_.1} parent=1 // pred_region
      _
    $region61: #{_lambda_.1} parent=1 // pred_fallthru
      _
    // Predicated region
    $region62: #{_lambda_.1} parent=1 // pred_check
      _
    $region63: #{_lambda_.1} parent=1 // pred_check_branch
      %181 = sbr.rel (0) target = $region65
    $region64: #{_lambda_.1} parent=1 // pred_region
      %s183 = ssub.s32 16, 16
      %184 = vsyncadd [#allocation13], %s183
      %s186 = sshll.u32 [#allocation14], 4
      %s187 = int_to_ptr.vmem [resolvable:$true] %s186
      %189 = dma.hbm_to_vmem [thread:$0]  %s31, 16, %s187, [#allocation13]
    $region65: #{_lambda_.1} parent=1 // pred_fallthru
      _
    // Predicated region
    $region66: #{_lambda_.1} parent=1 // pred_check
      _
    $region67: #{_lambda_.1} parent=1 // pred_check_branch
      %191 = sbr.rel (0) target = $region69
    $region68: #{_lambda_.1} parent=1 // pred_region
      _
    $region69: #{_lambda_.1} parent=1 // pred_fallthru
      _
    // Predicated region
    $region70: #{_lambda_.1} parent=1 // pred_check
      _
    $region71: #{_lambda_.1} parent=1 // pred_check_branch
      %193 = sbr.rel (0) target = $region73
    $region72: #{_lambda_.1} parent=1 // pred_region
      %s195 = ssub.s32 512, 512
      %196 = vsyncadd [#allocation16], %s195
      %s197 = sshll.u32 [#allocation15], 4
      %s198 = int_to_ptr.vmem [resolvable:$true] %s197
      %203 = dma.hbm_to_vmem [thread:$0]  %s35, 512, %s198, [#allocation16], 128, 128, 8
    $region73: #{_lambda_.1} parent=1 // pred_fallthru
      _
    // Predicated region
    $region74: #{_lambda_.1} parent=1 // pred_check
      _
    $region75: #{_lambda_.1} parent=1 // pred_check_branch
      %205 = sbr.rel (0) target = $region77
    $region76: #{_lambda_.1} parent=1 // pred_region
      %s207 = ssub.s32 256, 256
      %208 = vsyncadd [#allocation16], %s207
      %s209 = sshll.u32 [#allocation17], 4
      %s210 = int_to_ptr.vmem [resolvable:$true] %s209
      %215 = dma.hbm_to_vmem [thread:$0]  %s37, 256, %s210, [#allocation16], 128, 128, 8
    $region77: #{_lambda_.1} parent=1 // pred_fallthru
      _
    // Predicated region
    $region78: #{_lambda_.1} parent=1 // pred_check
      _
    $region79: #{_lambda_.1} parent=1 // pred_check_branch
      %217 = sbr.rel (0) target = $region81
    $region80: #{_lambda_.1} parent=1 // pred_region
      _
    $region81: #{_lambda_.1} parent=1 // pred_fallthru
      _
    // Predicated region
    $region82: #{_lambda_.1} parent=1 // pred_check
      _
    $region83: #{_lambda_.1} parent=1 // pred_check_branch
      %219 = sbr.rel (0) target = $region85
    $region84: #{_lambda_.1} parent=1 // pred_region
      %s221 = ssub.s32 1024, 1024
      %222 = vsyncadd [#allocation19], %s221
      %s223 = sshll.u32 [#allocation18], 4
      %s224 = int_to_ptr.vmem [resolvable:$true] %s223
      %229 = dma.hbm_to_vmem [thread:$0]  %s41, 1024, %s224, [#allocation19], 128, 128, 8
    $region85: #{_lambda_.1} parent=1 // pred_fallthru
      _
    // Predicated region
    $region86: #{_lambda_.1} parent=1 // pred_check
      _
    $region87: #{_lambda_.1} parent=1 // pred_check_branch
      %231 = sbr.rel (0) target = $region89
    $region88: #{_lambda_.1} parent=1 // pred_region
      _
    $region89: #{_lambda_.1} parent=1 // pred_fallthru
      _
    // Predicated region
    $region90: #{_lambda_.1} parent=1 // pred_check
      _
    $region91: #{_lambda_.1} parent=1 // pred_check_branch
      %233 = sbr.rel (0) target = $region93
    $region92: #{_lambda_.1} parent=1 // pred_region
      %s235 = ssub.s32 1024, 1024
      %236 = vsyncadd [#allocation19], %s235
      %s237 = sshll.u32 [#allocation20], 4
      %s238 = int_to_ptr.vmem [resolvable:$true] %s237
      %243 = dma.hbm_to_vmem [thread:$0]  %s45, 1024, %s238, [#allocation19], 256, 256, 16
    $region93: #{_lambda_.1} parent=1 // pred_fallthru
      _
    // Predicated region
    $region94: #{_lambda_.1} parent=1 // pred_check
      _
    $region95: #{_lambda_.1} parent=1 // pred_check_branch
      %245 = sbr.rel (0) target = $region97
    $region96: #{_lambda_.1} parent=1 // pred_region
      %s247 = ssub.s32 1024, 1024
      %248 = vsyncadd [#allocation22], %s247
      %s249 = sshll.u32 [#allocation21], 4
      %s250 = int_to_ptr.vmem [resolvable:$true] %s249
      %255 = dma.hbm_to_vmem [thread:$0]  %s47, 1024, %s250, [#allocation22], 256, 256, 16
    $region97: #{_lambda_.1} parent=1 // pred_fallthru
      _
    // Predicated region
    $region98: #{_lambda_.1} parent=1 // pred_check
      _
    $region99: #{_lambda_.1} parent=1 // pred_check_branch
      %257 = sbr.rel (0) target = $region101
    $region100: #{_lambda_.1} parent=1 // pred_region
      %s259 = ssub.s32 32, 32
      %260 = vsyncadd [#allocation22], %s259
      %s262 = sshll.u32 [#allocation23], 4
      %s263 = int_to_ptr.vmem [resolvable:$true] %s262
      %265 = dma.hbm_to_vmem [thread:$0]  %s49, 32, %s263, [#allocation22]
    $region101: #{_lambda_.1} parent=1 // pred_fallthru
      _
    // Predicated region
    $region102: #{_lambda_.1} parent=1 // pred_check
      _
    $region103: #{_lambda_.1} parent=1 // pred_check_branch
      %267 = sbr.rel (0) target = $region105
    $region104: #{_lambda_.1} parent=1 // pred_region
      _
    $region105: #{_lambda_.1} parent=1 // pred_fallthru
      _
    // Predicated region
    $region106: #{_lambda_.1} parent=1 // pred_check
      _
    $region107: #{_lambda_.1} parent=1 // pred_check_branch
      %269 = sbr.rel (0) target = $region109
    $region108: #{_lambda_.1} parent=1 // pred_region
      _
    $region109: #{_lambda_.1} parent=1 // pred_fallthru
      _
    // Predicated region
    $region110: #{_lambda_.1} parent=1 // pred_check
      _
    $region111: #{_lambda_.1} parent=1 // pred_check_branch
      %271 = sbr.rel (0) target = $region113
    $region112: #{_lambda_.1} parent=1 // pred_region
      _
    $region113: #{_lambda_.1} parent=1 // pred_fallthru
      _
    // Predicated region
    $region114: #{_lambda_.1} parent=1 // pred_check
      _
    $region115: #{_lambda_.1} parent=1 // pred_check_branch
      %273 = sbr.rel (0) target = $region117
    $region116: #{_lambda_.1} parent=1 // pred_region
      %s275 = ssub.s32 256, 256
      %276 = vsyncadd [#allocation25], %s275
      %s277 = sshll.u32 [#allocation24], 4
      %s278 = int_to_ptr.vmem [resolvable:$true] %s277
      %283 = dma.hbm_to_vmem [thread:$0]  %s57, 256, %s278, [#allocation25], 128, 128, 8
    $region117: #{_lambda_.1} parent=1 // pred_fallthru
      _
    // Predicated region
    $region118: #{_lambda_.1} parent=1 // pred_check
      _
    $region119: #{_lambda_.1} parent=1 // pred_check_branch
      %285 = sbr.rel (0) target = $region121
    $region120: #{_lambda_.1} parent=1 // pred_region
      _
    $region121: #{_lambda_.1} parent=1 // pred_fallthru
      _
    // Predicated region
    $region122: #{_lambda_.1} parent=1 // pred_check
      _
    $region123: #{_lambda_.1} parent=1 // pred_check_branch
      %287 = sbr.rel (0) target = $region125
    $region124: #{_lambda_.1} parent=1 // pred_region
      %s289 = ssub.s32 16, 16
      %290 = vsyncadd [#allocation25], %s289
      %s292 = sshll.u32 [#allocation26], 4
      %s293 = int_to_ptr.vmem [resolvable:$true] %s292
      %295 = dma.hbm_to_vmem [thread:$0]  %s61, 16, %s293, [#allocation25]
    $region125: #{_lambda_.1} parent=1 // pred_fallthru
      _
    // Predicated region
    $region126: #{_lambda_.1} parent=1 // pred_check
      _
    $region127: #{_lambda_.1} parent=1 // pred_check_branch
      %297 = sbr.rel (0) target = $region129
    $region128: #{_lambda_.1} parent=1 // pred_region
      _
    $region129: #{_lambda_.1} parent=1 // pred_fallthru
      _
    // Predicated region
    $region130: #{_lambda_.1} parent=1 // pred_check
      _
    $region131: #{_lambda_.1} parent=1 // pred_check_branch
      %299 = sbr.rel (0) target = $region133
    $region132: #{_lambda_.1} parent=1 // pred_region
      %s301 = ssub.s32 512, 512
      %302 = vsyncadd [#allocation28], %s301
      %s303 = sshll.u32 [#allocation27], 4
      %s304 = int_to_ptr.vmem [resolvable:$true] %s303
      %309 = dma.hbm_to_vmem [thread:$0]  %s65, 512, %s304, [#allocation28], 128, 128, 8
    $region133: #{_lambda_.1} parent=1 // pred_fallthru
      _
    // Predicated region
    $region134: #{_lambda_.1} parent=1 // pred_check
      _
    $region135: #{_lambda_.1} parent=1 // pred_check_branch
      %311 = sbr.rel (0) target = $region137
    $region136: #{_lambda_.1} parent=1 // pred_region
      %s313 = ssub.s32 256, 256
      %314 = vsyncadd [#allocation28], %s313
      %s315 = sshll.u32 [#allocation29], 4
      %s316 = int_to_ptr.vmem [resolvable:$true] %s315
      %321 = dma.hbm_to_vmem [thread:$0]  %s67, 256, %s316, [#allocation28], 128, 128, 8
    $region137: #{_lambda_.1} parent=1 // pred_fallthru
      _
    // Predicated region
    $region138: #{_lambda_.1} parent=1 // pred_check
      _
    $region139: #{_lambda_.1} parent=1 // pred_check_branch
      %323 = sbr.rel (0) target = $region141
    $region140: #{_lambda_.1} parent=1 // pred_region
      _
    $region141: #{_lambda_.1} parent=1 // pred_fallthru
      _
    // Predicated region
    $region142: #{_lambda_.1} parent=1 // pred_check
      _
    $region143: #{_lambda_.1} parent=1 // pred_check_branch
      %325 = sbr.rel (0) target = $region145
    $region144: #{_lambda_.1} parent=1 // pred_region
      %s327 = ssub.s32 1024, 1024
      %328 = vsyncadd [#allocation31], %s327
      %s329 = sshll.u32 [#allocation30], 4
      %s330 = int_to_ptr.vmem [resolvable:$true] %s329
      %335 = dma.hbm_to_vmem [thread:$0]  %s71, 1024, %s330, [#allocation31], 128, 128, 8
    $region145: #{_lambda_.1} parent=1 // pred_fallthru
      _
    // Predicated region
    $region146: #{_lambda_.1} parent=1 // pred_check
      _
    $region147: #{_lambda_.1} parent=1 // pred_check_branch
      %337 = sbr.rel (0) target = $region149
    $region148: #{_lambda_.1} parent=1 // pred_region
      _
    $region149: #{_lambda_.1} parent=1 // pred_fallthru
      _
    // Predicated region
    $region150: #{_lambda_.1} parent=1 // pred_check
      _
    $region151: #{_lambda_.1} parent=1 // pred_check_branch
      %339 = sbr.rel (0) target = $region153
    $region152: #{_lambda_.1} parent=1 // pred_region
      %340 = dma.done [#allocation5], 256
    $region153: #{_lambda_.1} parent=1 // pred_fallthru
      _
    // Predicated region
    $region154: #{_lambda_.1} parent=1 // pred_check
      _
    $region155: #{_lambda_.1} parent=1 // pred_check_branch
      %342 = sbr.rel (0) target = $region157
    $region156: #{_lambda_.1} parent=1 // pred_region
      %343 = dma.done [#allocation7], 128
    $region157: #{_lambda_.1} parent=1 // pred_fallthru
      _
    // Predicated region
    $region158: #{_lambda_.1} parent=1 // pred_check
      _
    $region159: #{_lambda_.1} parent=1 // pred_check_branch
      %345 = sbr.rel (0) target = $region161
    $region160: #{_lambda_.1} parent=1 // pred_region
      %346 = dma.done [#allocation7], 1024
    $region161: #{_lambda_.1} parent=1 // pred_fallthru
      _
    // Predicated region
    $region162: #{_lambda_.1} parent=1 // pred_check
      _
    $region163: #{_lambda_.1} parent=1 // pred_check_branch
      %348 = sbr.rel (0) target = $region165
    $region164: #{_lambda_.1} parent=1 // pred_region
      %349 = dma.done [#allocation10], 1024
    $region165: #{_lambda_.1} parent=1 // pred_fallthru
      _
    // Predicated region
    $region166: #{_lambda_.1} parent=1 // pred_check
      _
    $region167: #{_lambda_.1} parent=1 // pred_check_branch
      %351 = sbr.rel (0) target = $region169
    $region168: #{_lambda_.1} parent=1 // pred_region
      %352 = dma.done [#allocation10], 32
    $region169: #{_lambda_.1} parent=1 // pred_fallthru
      _
    // Predicated region
    $region170: #{_lambda_.1} parent=1 // pred_check
      _
    $region171: #{_lambda_.1} parent=1 // pred_check_branch
      %354 = sbr.rel (0) target = $region173
    $region172: #{_lambda_.1} parent=1 // pred_region
      %355 = dma.done [#allocation13], 256
    $region173: #{_lambda_.1} parent=1 // pred_fallthru
      _
    // Predicated region
    $region174: #{_lambda_.1} parent=1 // pred_check
      _
    $region175: #{_lambda_.1} parent=1 // pred_check_branch
      %357 = sbr.rel (0) target = $region177
    $region176: #{_lambda_.1} parent=1 // pred_region
      %358 = dma.done [#allocation13], 16
    $region177: #{_lambda_.1} parent=1 // pred_fallthru
      _
    // Predicated region
    $region178: #{_lambda_.1} parent=1 // pred_check
      _
    $region179: #{_lambda_.1} parent=1 // pred_check_branch
      %360 = sbr.rel (0) target = $region181
    $region180: #{_lambda_.1} parent=1 // pred_region
      %361 = dma.done [#allocation16], 512
    $region181: #{_lambda_.1} parent=1 // pred_fallthru
      _
    // Predicated region
    $region182: #{_lambda_.1} parent=1 // pred_check
      _
    $region183: #{_lambda_.1} parent=1 // pred_check_branch
      %363 = sbr.rel (0) target = $region185
    $region184: #{_lambda_.1} parent=1 // pred_region
      %364 = dma.done [#allocation16], 256
    $region185: #{_lambda_.1} parent=1 // pred_fallthru
      _
    // Predicated region
    $region186: #{_lambda_.1} parent=1 // pred_check
      _
    $region187: #{_lambda_.1} parent=1 // pred_check_branch
      %366 = sbr.rel (0) target = $region189
    $region188: #{_lambda_.1} parent=1 // pred_region
      %367 = dma.done [#allocation19], 1024
    $region189: #{_lambda_.1} parent=1 // pred_fallthru
      _
    // Predicated region
    $region190: #{_lambda_.1} parent=1 // pred_check
      _
    $region191: #{_lambda_.1} parent=1 // pred_check_branch
      %369 = sbr.rel (0) target = $region193
    $region192: #{_lambda_.1} parent=1 // pred_region
      %370 = dma.done [#allocation19], 1024
    $region193: #{_lambda_.1} parent=1 // pred_fallthru
      _
    // Predicated region
    $region194: #{_lambda_.1} parent=1 // pred_check
      _
    $region195: #{_lambda_.1} parent=1 // pred_check_branch
      %372 = sbr.rel (0) target = $region197
    $region196: #{_lambda_.1} parent=1 // pred_region
      %373 = dma.done [#allocation22], 1024
    $region197: #{_lambda_.1} parent=1 // pred_fallthru
      _
    // Predicated region
    $region198: #{_lambda_.1} parent=1 // pred_check
      _
    $region199: #{_lambda_.1} parent=1 // pred_check_branch
      %375 = sbr.rel (0) target = $region201
    $region200: #{_lambda_.1} parent=1 // pred_region
      %376 = dma.done [#allocation22], 32
    $region201: #{_lambda_.1} parent=1 // pred_fallthru
      _
    // Predicated region
    $region202: #{_lambda_.1} parent=1 // pred_check
      _
    $region203: #{_lambda_.1} parent=1 // pred_check_branch
      %378 = sbr.rel (0) target = $region205
    $region204: #{_lambda_.1} parent=1 // pred_region
      %379 = dma.done [#allocation25], 256
    $region205: #{_lambda_.1} parent=1 // pred_fallthru
      _
    // Predicated region
    $region206: #{_lambda_.1} parent=1 // pred_check
      _
    $region207: #{_lambda_.1} parent=1 // pred_check_branch
      %381 = sbr.rel (0) target = $region209
    $region208: #{_lambda_.1} parent=1 // pred_region
      %382 = dma.done [#allocation25], 16
    $region209: #{_lambda_.1} parent=1 // pred_fallthru
      _
    // Predicated region
    $region210: #{_lambda_.1} parent=1 // pred_check
      _
    $region211: #{_lambda_.1} parent=1 // pred_check_branch
      %384 = sbr.rel (0) target = $region213
    $region212: #{_lambda_.1} parent=1 // pred_region
      %385 = dma.done [#allocation28], 512
    $region213: #{_lambda_.1} parent=1 // pred_fallthru
      _
    // Predicated region
    $region214: #{_lambda_.1} parent=1 // pred_check
      _
    $region215: #{_lambda_.1} parent=1 // pred_check_branch
      %387 = sbr.rel (0) target = $region217
    $region216: #{_lambda_.1} parent=1 // pred_region
      %388 = dma.done [#allocation28], 256
    $region217: #{_lambda_.1} parent=1 // pred_fallthru
      _
    // Predicated region
    $region218: #{_lambda_.1} parent=1 // pred_check
      _
    $region219: #{_lambda_.1} parent=1 // pred_check_branch
      %390 = sbr.rel (0) target = $region221
    $region220: #{_lambda_.1} parent=1 // pred_region
      %391 = dma.done [#allocation31], 1024
    $region221: #{_lambda_.1} parent=1 // pred_fallthru
      _
    %v392 = vld [vmem:[#allocation4] sm:$0xff]
    %v393 = vld [vmem:[#allocation4 + $0x8] sm:$0xff]
    %v394 = vld [vmem:[#allocation6] sm:$0xff]
    %v395 = vld [vmem:[%s13] sm:$0x1]
    %v397 = vlaneseq
    %v398 = vshrl.u32 %v397, 7
    %v399 = vsub.s32 0, %v398
    %v400 = vrot.slane %v395, %v399
    %vm402 = vcmask 64512
    %v404 = vsel %vm402, %v392, 0
    %v407 = vsel %vm402, %v393, 0
    %409 = vmatprep.subr.mxu0 0.0
    %410 = vmatpush1.msra.mxu0 %v394
    %411 = vmatprep.subr.mxu0 0.0
    %412 = vmatpush1.msra.mxu0 0.0
    %413 = vmatprep.subr.mxu0 0.0
    %414 = vmatpush1.msra.mxu0 0.0
    %415 = vmatprep.subr.mxu0 0.0
    %416 = vmatpush1.msra.mxu0 0.0
    %417 = vmatprep.subr.mxu0 0.0
    %418 = vmatpush1.msra.mxu0 0.0
    %419 = vmatprep.subr.mxu0 0.0
    %420 = vmatpush1.msra.mxu0 0.0
    %421 = vmatprep.subr.mxu0 0.0
    %422 = vmatpush1.msra.mxu0 0.0
    %423 = vmatprep.subr.mxu0 0.0
    %424 = vmatpush1.msra.mxu0 0.0
    %425 = vmatprep.subr.mxu0 0.0
    %426 = vmatpush1.msra.mxu0 0.0
    %427 = vmatprep.subr.mxu0 0.0
    %428 = vmatpush1.msra.mxu0 0.0
    %429 = vmatprep.subr.mxu0 0.0
    %430 = vmatpush1.msra.mxu0 0.0
    %431 = vmatprep.subr.mxu0 0.0
    %432 = vmatpush1.msra.mxu0 0.0
    %433 = vmatprep.subr.mxu0 0.0
    %434 = vmatpush1.msra.mxu0 0.0
    %435 = vmatprep.subr.mxu0 0.0
    %436 = vmatpush1.msra.mxu0 0.0
    %437 = vmatprep.subr.mxu0 0.0
    %438 = vmatpush1.msra.mxu0 0.0
    %439 = vmatprep.subr.mxu0 0.0
    %440 = vmatpush1.msra.mxu0 0.0
    %441 = vmatprep.subr.mxu0 0.0
    %442 = vmatpush1.msra.mxu0 0.0
    %443 = vmatprep.subr.mxu0 0.0
    %444 = vmatpush1.msra.mxu0 0.0
    %445 = vmatprep.subr.mxu0 0.0
    %446 = vmatpush1.msra.mxu0 0.0
    %447 = vmatprep.subr.mxu0 0.0
    %448 = vmatpush1.msra.mxu0 0.0
    %449 = vmatprep.subr.mxu0 0.0
    %450 = vmatpush1.msra.mxu0 0.0
    %451 = vmatprep.subr.mxu0 0.0
    %452 = vmatpush1.msra.mxu0 0.0
    %453 = vmatprep.subr.mxu0 0.0
    %454 = vmatpush1.msra.mxu0 0.0
    %455 = vmatprep.subr.mxu0 0.0
    %456 = vmatpush1.msra.mxu0 0.0
    %457 = vmatprep.subr.mxu0 0.0
    %458 = vmatpush1.msra.mxu0 0.0
    %459 = vmatprep.subr.mxu0 0.0
    %460 = vmatpush1.msra.mxu0 0.0
    %461 = vmatprep.subr.mxu0 0.0
    %462 = vmatpush1.msra.mxu0 0.0
    %463 = vmatprep.subr.mxu0 0.0
    %464 = vmatpush1.msra.mxu0 0.0
    %465 = vmatprep.subr.mxu0 0.0
    %466 = vmatpush1.msra.mxu0 0.0
    %467 = vmatprep.subr.mxu0 0.0
    %468 = vmatpush1.msra.mxu0 0.0
    %469 = vmatprep.subr.mxu0 0.0
    %470 = vmatpush1.msra.mxu0 0.0
    %471 = vmatprep.subr.mxu0 0.0
    %472 = vmatpush1.msra.mxu0 0.0
    %473 = vmatprep.mubr.f32.mxu0 0.0
    %474 = vmatmul.mubr.f32.gmra.mrb[0].mxu0 %v404
    %v475 = vpop.f32.mrb[0].mxu0
    %v476 = vadd.f32 %v400, %v475
    %v477 = vpop.f32.mrb[0].mxu0
    %478 = vmatprep.mubr.f32.mxu0 0.0
    %479 = vmatmul.mubr.f32.gmra.mrb[0].mxu0 %v407
    %v480 = vpop.f32.mrb[0].mxu0
    %v481 = vadd.f32 %v400, %v480
    %v482 = vpop.f32.mrb[0].mxu0
    %483 = vdwg.mxu0
    %v484 = vld [vmem:[%s3] sm:$0xff]
    %v485 = vld [vmem:[%s3 + $0x8] sm:$0xff]
    %v486 = vadd.f32 %v476, %v484
    %v487 = vadd.f32 %v481, %v485
    %v488 = vld [vmem:[%s5] sm:$0xff]
    %v489 = vld [vmem:[%s5 + $0x8] sm:$0xff]
    %v490 = vld [vmem:[%s7] sm:$0xff]
    %v491 = vld [vmem:[%s7 + $0x8] sm:$0xff]
    %v492 = vld [vmem:[%s7 + $0x10] sm:$0xff]
    %v493 = vld [vmem:[%s7 + $0x18] sm:$0xff]
    %v494 = vld [vmem:[%s7 + $0x20] sm:$0xff]
    %v495 = vld [vmem:[%s7 + $0x28] sm:$0xff]
    %v496 = vld [vmem:[%s7 + $0x30] sm:$0xff]
    %v497 = vld [vmem:[%s7 + $0x38] sm:$0xff]
    %v498 = vld [vmem:[%s7 + $0x40] sm:$0xff]
    %v499 = vld [vmem:[%s7 + $0x48] sm:$0xff]
    %v500 = vld [vmem:[%s7 + $0x50] sm:$0xff]
    %v501 = vld [vmem:[%s7 + $0x58] sm:$0xff]
    %v502 = vld [vmem:[%s9] sm:$0xff]
    %v503 = vld [vmem:[%s9 + $0x8] sm:$0xff]
    %v504 = vlaneseq
    %v505 = vand.u32 %v504, 127
    %506 = vset.pattern.permute.xlu0 0
    %507 = vperm.xlu0 %506, %v490
    %v508 = vpop.permute.xlu0 %507
    %509 = vset.pattern.permute.xlu0 0
    %510 = vperm.xlu0 %509, %v491
    %v511 = vpop.permute.xlu0 %510
    %512 = vset.pattern.permute.xlu0 0
    %513 = vperm.xlu0 %512, %v492
    %v514 = vpop.permute.xlu0 %513
    %515 = vset.pattern.permute.xlu0 0
    %516 = vperm.xlu0 %515, %v493
    %v517 = vpop.permute.xlu0 %516
    %518 = vset.pattern.permute.xlu0 0
    %519 = vperm.xlu0 %518, %v494
    %v520 = vpop.permute.xlu0 %519
    %521 = vset.pattern.permute.xlu0 0
    %522 = vperm.xlu0 %521, %v495
    %v523 = vpop.permute.xlu0 %522
    %524 = vset.pattern.permute.xlu0 0
    %525 = vperm.xlu0 %524, %v496
    %v526 = vpop.permute.xlu0 %525
    %527 = vset.pattern.permute.xlu0 0
    %528 = vperm.xlu0 %527, %v497
    %v529 = vpop.permute.xlu0 %528
    %530 = vset.pattern.permute.xlu0 0
    %531 = vperm.xlu0 %530, %v498
    %v532 = vpop.permute.xlu0 %531
    %533 = vset.pattern.permute.xlu0 0
    %534 = vperm.xlu0 %533, %v499
    %v535 = vpop.permute.xlu0 %534
    %536 = vset.pattern.permute.xlu0 0
    %537 = vperm.xlu0 %536, %v500
    %v538 = vpop.permute.xlu0 %537
    %539 = vset.pattern.permute.xlu0 0
    %540 = vperm.xlu0 %539, %v501
    %v541 = vpop.permute.xlu0 %540
    %vm542 = vcmp.eq.s32.totalorder %v508, %v505
    %vm543 = vcmp.eq.s32.totalorder %v511, %v505
    %vm544 = vcmp.eq.s32.totalorder %v514, %v505
    %vm545 = vcmp.eq.s32.totalorder %v517, %v505
    %vm546 = vcmp.eq.s32.totalorder %v520, %v505
    %vm547 = vcmp.eq.s32.totalorder %v523, %v505
    %vm548 = vcmp.eq.s32.totalorder %v526, %v505
    %vm549 = vcmp.eq.s32.totalorder %v529, %v505
    %vm550 = vcmp.eq.s32.totalorder %v532, %v505
    %vm551 = vcmp.eq.s32.totalorder %v535, %v505
    %vm552 = vcmp.eq.s32.totalorder %v538, %v505
    %vm553 = vcmp.eq.s32.totalorder %v541, %v505
    %v554 = vsel %vm542, 1, 0
    %v555 = vsel %vm543, 1, 0
    %v556 = vsel %vm544, 1, 0
    %v557 = vsel %vm545, 1, 0
    %v558 = vsel %vm546, 1, 0
    %v559 = vsel %vm547, 1, 0
    %v560 = vsel %vm548, 1, 0
    %v561 = vsel %vm549, 1, 0
    %v562 = vsel %vm550, 1, 0
    %v563 = vsel %vm551, 1, 0
    %v564 = vsel %vm552, 1, 0
    %v565 = vsel %vm553, 1, 0
    %v566 = vcvt.s32.f32 %v554
    %v567 = vcvt.s32.f32 %v555
    %v568 = vcvt.s32.f32 %v556
    %v569 = vcvt.s32.f32 %v557
    %v570 = vcvt.s32.f32 %v558
    %v571 = vcvt.s32.f32 %v559
    %v572 = vcvt.s32.f32 %v560
    %v573 = vcvt.s32.f32 %v561
    %v574 = vcvt.s32.f32 %v562
    %v575 = vcvt.s32.f32 %v563
    %v576 = vcvt.s32.f32 %v564
    %v577 = vcvt.s32.f32 %v565
    %vm578 = vcmp.eq.s32.totalorder %v502, 0
    %vm579 = vcmp.eq.s32.totalorder %v503, 0
    %v580 = vsel %vm578, 1, 0
    %v581 = vsel %vm579, 1, 0
    %v582 = vcvt.s32.f32 %v580
    %v583 = vcvt.s32.f32 %v581
    %vm584 = vcmask 7168
    %v585 = vsel %vm584, %v582, 0.0
    %v586 = vsel %vm584, %v583, 0.0
    %v587 = vadd.f32 %v585, %v586
    %v588 = vrot.slane %v587, 4
    %v589 = vadd.f32 %v587, %v588
    %v590 = vrot.slane %v589, 2
    %v591 = vadd.f32 %v589, %v590
    %v592 = vrot.slane %v591, 1
    %v593 = vadd.f32 %v591, %v592
    %v594 = vmax.f32 %v593, 1.0
    %v595 = vmul.f32 %v594, 32.0
    %vm596 = vcmp.eq.s32.totalorder %v502, 1
    %vm597 = vcmp.eq.s32.totalorder %v503, 1
    %v598 = vsel %vm596, 1, 0
    %v599 = vsel %vm597, 1, 0
    %v600 = vcvt.s32.f32 %v598
    %v601 = vcvt.s32.f32 %v599
    %v602 = vsel %vm584, %v600, 0.0
    %v603 = vsel %vm584, %v601, 0.0
    %v604 = vadd.f32 %v602, %v603
    %v605 = vrot.slane %v604, 4
    %v606 = vadd.f32 %v604, %v605
    %v607 = vrot.slane %v606, 2
    %v608 = vadd.f32 %v606, %v607
    %v609 = vrot.slane %v608, 1
    %v610 = vadd.f32 %v608, %v609
    %v611 = vmax.f32 %v610, 1.0
    %v612 = vmul.f32 %v611, 32.0
    %615 = vrot.lane.b32.xlu0 %v488, 32
    %v616 = vpop.permute.xlu0 %615
    %617 = vrot.lane.b32.xlu0 %v489, 32
    %v618 = vpop.permute.xlu0 %617
    %vm621 = vcmask 261120
    %v622 = vsel %vm621, %v486, %v616
    %v623 = vsel %vm621, %v487, %v618
    %vm624 = vcmask 130048
    %v626 = vsel %vm624, %v566, 0
    %v629 = vsel %vm624, %v567, 0
    %v632 = vsel %vm624, %v568, 0
    %v635 = vsel %vm624, %v569, 0
    %v638 = vsel %vm624, %v570, 0
    %v641 = vsel %vm624, %v571, 0
    %v644 = vsel %vm624, %v572, 0
    %v647 = vsel %vm624, %v573, 0
    %v650 = vsel %vm624, %v574, 0
    %v653 = vsel %vm624, %v575, 0
    %v656 = vsel %vm624, %v576, 0
    %v659 = vsel %vm624, %v577, 0
    %661 = vmatprep.subr.mxu0 0.0
    %662 = vmatpush1.msra.mxu0 %v622
    %663 = vmatprep.subr.mxu0 0.0
    %664 = vmatpush1.msra.mxu0 %v623
    %665 = vmatprep.subr.mxu0 0.0
    %666 = vmatpush1.msra.mxu0 0.0
    %667 = vmatprep.subr.mxu0 0.0
    %668 = vmatpush1.msra.mxu0 0.0
    %669 = vmatprep.subr.mxu0 0.0
    %670 = vmatpush1.msra.mxu0 0.0
    %671 = vmatprep.subr.mxu0 0.0
    %672 = vmatpush1.msra.mxu0 0.0
    %673 = vmatprep.subr.mxu0 0.0
    %674 = vmatpush1.msra.mxu0 0.0
    %675 = vmatprep.subr.mxu0 0.0
    %676 = vmatpush1.msra.mxu0 0.0
    %677 = vmatprep.subr.mxu0 0.0
    %678 = vmatpush1.msra.mxu0 0.0
    %679 = vmatprep.subr.mxu0 0.0
    %680 = vmatpush1.msra.mxu0 0.0
    %681 = vmatprep.subr.mxu0 0.0
    %682 = vmatpush1.msra.mxu0 0.0
    %683 = vmatprep.subr.mxu0 0.0
    %684 = vmatpush1.msra.mxu0 0.0
    %685 = vmatprep.subr.mxu0 0.0
    %686 = vmatpush1.msra.mxu0 0.0
    %687 = vmatprep.subr.mxu0 0.0
    %688 = vmatpush1.msra.mxu0 0.0
    %689 = vmatprep.subr.mxu0 0.0
    %690 = vmatpush1.msra.mxu0 0.0
    %691 = vmatprep.subr.mxu0 0.0
    %692 = vmatpush1.msra.mxu0 0.0
    %693 = vmatprep.subr.mxu0 0.0
    %694 = vmatpush1.msra.mxu0 0.0
    %695 = vmatprep.subr.mxu0 0.0
    %696 = vmatpush1.msra.mxu0 0.0
    %697 = vmatprep.subr.mxu0 0.0
    %698 = vmatpush1.msra.mxu0 0.0
    %699 = vmatprep.subr.mxu0 0.0
    %700 = vmatpush1.msra.mxu0 0.0
    %701 = vmatprep.subr.mxu0 0.0
    %702 = vmatpush1.msra.mxu0 0.0
    %703 = vmatprep.subr.mxu0 0.0
    %704 = vmatpush1.msra.mxu0 0.0
    %705 = vmatprep.subr.mxu0 0.0
    %706 = vmatpush1.msra.mxu0 0.0
    %707 = vmatprep.subr.mxu0 0.0
    %708 = vmatpush1.msra.mxu0 0.0
    %709 = vmatprep.subr.mxu0 0.0
    %710 = vmatpush1.msra.mxu0 0.0
    %711 = vmatprep.subr.mxu0 0.0
    %712 = vmatpush1.msra.mxu0 0.0
    %713 = vmatprep.subr.mxu0 0.0
    %714 = vmatpush1.msra.mxu0 0.0
    %715 = vmatprep.subr.mxu0 0.0
    %716 = vmatpush1.msra.mxu0 0.0
    %717 = vmatprep.subr.mxu0 0.0
    %718 = vmatpush1.msra.mxu0 0.0
    %719 = vmatprep.subr.mxu0 0.0
    %720 = vmatpush1.msra.mxu0 0.0
    %721 = vmatprep.subr.mxu0 0.0
    %722 = vmatpush1.msra.mxu0 0.0
    %723 = vmatprep.subr.mxu0 0.0
    %724 = vmatpush1.msra.mxu0 0.0
    %725 = vmatprep.mubr.f32.mxu0 0.0
    %726 = vmatmul.mubr.f32.gmra.mrb[0].mxu0 %v626
    %v727 = vpop.f32.mrb[0].mxu0
    %v728 = vadd.f32 0.0, %v727
    %v729 = vpop.f32.mrb[0].mxu0
    %730 = vmatprep.mubr.f32.mxu0 0.0
    %731 = vmatmul.mubr.f32.gmra.mrb[0].mxu0 %v629
    %v732 = vpop.f32.mrb[0].mxu0
    %v733 = vadd.f32 0.0, %v732
    %v734 = vpop.f32.mrb[0].mxu0
    %735 = vmatprep.mubr.f32.mxu0 0.0
    %736 = vmatmul.mubr.f32.gmra.mrb[0].mxu0 %v632
    %v737 = vpop.f32.mrb[0].mxu0
    %v738 = vadd.f32 0.0, %v737
    %v739 = vpop.f32.mrb[0].mxu0
    %740 = vmatprep.mubr.f32.mxu0 0.0
    %741 = vmatmul.mubr.f32.gmra.mrb[0].mxu0 %v635
    %v742 = vpop.f32.mrb[0].mxu0
    %v743 = vadd.f32 0.0, %v742
    %v744 = vpop.f32.mrb[0].mxu0
    %745 = vmatprep.mubr.f32.mxu0 0.0
    %746 = vmatmul.mubr.f32.gmra.mrb[0].mxu0 %v638
    %v747 = vpop.f32.mrb[0].mxu0
    %v748 = vadd.f32 0.0, %v747
    %v749 = vpop.f32.mrb[0].mxu0
    %750 = vmatprep.mubr.f32.mxu0 0.0
    %751 = vmatmul.mubr.f32.gmra.mrb[0].mxu0 %v641
    %v752 = vpop.f32.mrb[0].mxu0
    %v753 = vadd.f32 0.0, %v752
    %v754 = vpop.f32.mrb[0].mxu0
    %755 = vmatprep.mubr.f32.mxu0 0.0
    %756 = vmatmul.mubr.f32.gmra.mrb[0].mxu0 %v644
    %v757 = vpop.f32.mrb[0].mxu0
    %v758 = vadd.f32 0.0, %v757
    %v759 = vpop.f32.mrb[0].mxu0
    %760 = vmatprep.mubr.f32.mxu0 0.0
    %761 = vmatmul.mubr.f32.gmra.mrb[0].mxu0 %v647
    %v762 = vpop.f32.mrb[0].mxu0
    %v763 = vadd.f32 0.0, %v762
    %v764 = vpop.f32.mrb[0].mxu0
    %765 = vmatprep.mubr.f32.mxu0 0.0
    %766 = vmatmul.mubr.f32.gmra.mrb[0].mxu0 %v650
    %v767 = vpop.f32.mrb[0].mxu0
    %v768 = vadd.f32 0.0, %v767
    %v769 = vpop.f32.mrb[0].mxu0
    %770 = vmatprep.mubr.f32.mxu0 0.0
    %771 = vmatmul.mubr.f32.gmra.mrb[0].mxu0 %v653
    %v772 = vpop.f32.mrb[0].mxu0
    %v773 = vadd.f32 0.0, %v772
    %v774 = vpop.f32.mrb[0].mxu0
    %775 = vmatprep.mubr.f32.mxu0 0.0
    %776 = vmatmul.mubr.f32.gmra.mrb[0].mxu0 %v656
    %v777 = vpop.f32.mrb[0].mxu0
    %v778 = vadd.f32 0.0, %v777
    %v779 = vpop.f32.mrb[0].mxu0
    %780 = vmatprep.mubr.f32.mxu0 0.0
    %781 = vmatmul.mubr.f32.gmra.mrb[0].mxu0 %v659
    %v782 = vpop.f32.mrb[0].mxu0
    %v783 = vadd.f32 0.0, %v782
    %v784 = vpop.f32.mrb[0].mxu0
    %785 = vdwg.mxu0
    %v786 = vsub.f32 %v728, %v758
    %v787 = vsub.f32 %v733, %v763
    %v788 = vsub.f32 %v738, %v768
    %v789 = vsub.f32 %v743, %v773
    %v790 = vsub.f32 %v748, %v778
    %v791 = vsub.f32 %v753, %v783
    %v792 = vmul.f32 %v786, %v786
    %v793 = vmul.f32 %v787, %v787
    %v794 = vmul.f32 %v788, %v788
    %v795 = vmul.f32 %v789, %v789
    %v796 = vmul.f32 %v790, %v790
    %v797 = vmul.f32 %v791, %v791
    %804 = vrot.lane.b32.xlu0 %v792, 96
    %v805 = vpop.permute.xlu0 %804
    %806 = vrot.lane.b32.xlu0 %v793, 96
    %v807 = vpop.permute.xlu0 %806
    %808 = vrot.lane.b32.xlu0 %v794, 96
    %v809 = vpop.permute.xlu0 %808
    %810 = vrot.lane.b32.xlu0 %v795, 96
    %v811 = vpop.permute.xlu0 %810
    %812 = vrot.lane.b32.xlu0 %v796, 96
    %v813 = vpop.permute.xlu0 %812
    %814 = vrot.lane.b32.xlu0 %v797, 96
    %v815 = vpop.permute.xlu0 %814
    %vm822 = vcmask 23552
    %v823 = vsel %vm822, %v805, 0.0
    %824 = vadd.xlane.f32.xlu0 %v823
    %v825 = vpop.xlane.xlu0 %824
    %v826 = vsel %vm822, %v807, 0.0
    %827 = vadd.xlane.f32.xlu0 %v826
    %v828 = vpop.xlane.xlu0 %827
    %v829 = vsel %vm822, %v809, 0.0
    %830 = vadd.xlane.f32.xlu0 %v829
    %v831 = vpop.xlane.xlu0 %830
    %v832 = vsel %vm822, %v811, 0.0
    %833 = vadd.xlane.f32.xlu0 %v832
    %v834 = vpop.xlane.xlu0 %833
    %v835 = vsel %vm822, %v813, 0.0
    %836 = vadd.xlane.f32.xlu0 %v835
    %v837 = vpop.xlane.xlu0 %836
    %v838 = vsel %vm822, %v815, 0.0
    %839 = vadd.xlane.f32.xlu0 %v838
    %v840 = vpop.xlane.xlu0 %839
    %v841 = vld [vmem:[#allocation8] sm:$0xff]
    %v842 = vld [vmem:[#allocation8 + $0x8] sm:$0xff]
    %v843 = vld [vmem:[#allocation8 + $0x10] sm:$0xff]
    %v844 = vld [vmem:[#allocation8 + $0x18] sm:$0xff]
    %v845 = vld [vmem:[#allocation8 + $0x20] sm:$0xff]
    %v846 = vld [vmem:[#allocation8 + $0x28] sm:$0xff]
    %v847 = vld [vmem:[#allocation8 + $0x30] sm:$0xff]
    %v848 = vld [vmem:[#allocation8 + $0x38] sm:$0xff]
    %v849 = vld [vmem:[#allocation9] sm:$0xff]
    %v850 = vld [vmem:[#allocation9 + $0x8] sm:$0xff]
    %v851 = vld [vmem:[#allocation9 + $0x10] sm:$0xff]
    %v852 = vld [vmem:[#allocation9 + $0x18] sm:$0xff]
    %v853 = vld [vmem:[#allocation9 + $0x20] sm:$0xff]
    %v854 = vld [vmem:[#allocation9 + $0x28] sm:$0xff]
    %v855 = vld [vmem:[#allocation9 + $0x30] sm:$0xff]
    %v856 = vld [vmem:[#allocation9 + $0x38] sm:$0xff]
    %v858 = vsel %vm621, %v728, 0
    %v861 = vsel %vm621, %v733, 0
    %v864 = vsel %vm621, %v738, 0
    %v867 = vsel %vm621, %v743, 0
    %v870 = vsel %vm621, %v748, 0
    %v873 = vsel %vm621, %v753, 0
    %875 = vmatprep.subr.mxu0 %v850
    %876 = vmatpush1.msra.mxu0 %v849
    %877 = vmatprep.subr.mxu0 %v852
    %878 = vmatpush1.msra.mxu0 %v851
    %879 = vmatprep.subr.mxu0 %v854
    %880 = vmatpush1.msra.mxu0 %v853
    %881 = vmatprep.subr.mxu0 %v856
    %882 = vmatpush1.msra.mxu0 %v855
    %883 = vmatprep.subr.mxu0 0.0
    %884 = vmatpush1.msra.mxu0 0.0
    %885 = vmatprep.subr.mxu0 0.0
    %886 = vmatpush1.msra.mxu0 0.0
    %887 = vmatprep.subr.mxu0 0.0
    %888 = vmatpush1.msra.mxu0 0.0
    %889 = vmatprep.subr.mxu0 0.0
    %890 = vmatpush1.msra.mxu0 0.0
    %891 = vmatprep.subr.mxu0 0.0
    %892 = vmatpush1.msra.mxu0 0.0
    %893 = vmatprep.subr.mxu0 0.0
    %894 = vmatpush1.msra.mxu0 0.0
    %895 = vmatprep.subr.mxu0 0.0
    %896 = vmatpush1.msra.mxu0 0.0
    %897 = vmatprep.subr.mxu0 0.0
    %898 = vmatpush1.msra.mxu0 0.0
    %899 = vmatprep.subr.mxu0 0.0
    %900 = vmatpush1.msra.mxu0 0.0
    %901 = vmatprep.subr.mxu0 0.0
    %902 = vmatpush1.msra.mxu0 0.0
    %903 = vmatprep.subr.mxu0 0.0
    %904 = vmatpush1.msra.mxu0 0.0
    %905 = vmatprep.subr.mxu0 0.0
    %906 = vmatpush1.msra.mxu0 0.0
    %907 = vmatprep.subr.mxu0 0.0
    %908 = vmatpush1.msra.mxu0 0.0
    %909 = vmatprep.subr.mxu0 0.0
    %910 = vmatpush1.msra.mxu0 0.0
    %911 = vmatprep.subr.mxu0 0.0
    %912 = vmatpush1.msra.mxu0 0.0
    %913 = vmatprep.subr.mxu0 0.0
    %914 = vmatpush1.msra.mxu0 0.0
    %915 = vmatprep.subr.mxu0 0.0
    %916 = vmatpush1.msra.mxu0 0.0
    %917 = vmatprep.subr.mxu0 0.0
    %918 = vmatpush1.msra.mxu0 0.0
    %919 = vmatprep.subr.mxu0 0.0
    %920 = vmatpush1.msra.mxu0 0.0
    %921 = vmatprep.subr.mxu0 0.0
    %922 = vmatpush1.msra.mxu0 0.0
    %923 = vmatprep.subr.mxu0 0.0
    %924 = vmatpush1.msra.mxu0 0.0
    %925 = vmatprep.subr.mxu0 0.0
    %926 = vmatpush1.msra.mxu0 0.0
    %927 = vmatprep.subr.mxu0 0.0
    %928 = vmatpush1.msra.mxu0 0.0
    %929 = vmatprep.subr.mxu0 0.0
    %930 = vmatpush1.msra.mxu0 0.0
    %931 = vmatprep.subr.mxu0 0.0
    %932 = vmatpush1.msra.mxu0 0.0
    %933 = vmatprep.subr.mxu0 0.0
    %934 = vmatpush1.msra.mxu0 0.0
    %935 = vmatprep.subr.mxu0 0.0
    %936 = vmatpush1.msra.mxu0 0.0
    %937 = vmatprep.subr.mxu0 0.0
    %938 = vmatpush1.msra.mxu0 0.0
    %939 = vmatprep.mubr.f32.mxu0 0.0
    %940 = vmatmul.mubr.f32.gmra.mrb[0].mxu0 %v858
    %v941 = vpop.f32.mrb[0].mxu0
    %v942 = vadd.f32 0.0, %v941
    %v943 = vpop.f32.mrb[0].mxu0
    %v944 = vadd.f32 0.0, %v943
    %945 = vmatprep.mubr.f32.mxu0 0.0
    %946 = vmatmul.mubr.f32.gmra.mrb[0].mxu0 %v861
    %v947 = vpop.f32.mrb[0].mxu0
    %v948 = vadd.f32 0.0, %v947
    %v949 = vpop.f32.mrb[0].mxu0
    %v950 = vadd.f32 0.0, %v949
    %951 = vmatprep.mubr.f32.mxu0 0.0
    %952 = vmatmul.mubr.f32.gmra.mrb[0].mxu0 %v864
    %v953 = vpop.f32.mrb[0].mxu0
    %v954 = vadd.f32 0.0, %v953
    %v955 = vpop.f32.mrb[0].mxu0
    %v956 = vadd.f32 0.0, %v955
    %957 = vmatprep.mubr.f32.mxu0 0.0
    %958 = vmatmul.mubr.f32.gmra.mrb[0].mxu0 %v867
    %v959 = vpop.f32.mrb[0].mxu0
    %v960 = vadd.f32 0.0, %v959
    %v961 = vpop.f32.mrb[0].mxu0
    %v962 = vadd.f32 0.0, %v961
    %963 = vmatprep.mubr.f32.mxu0 0.0
    %964 = vmatmul.mubr.f32.gmra.mrb[0].mxu0 %v870
    %v965 = vpop.f32.mrb[0].mxu0
    %v966 = vadd.f32 0.0, %v965
    %v967 = vpop.f32.mrb[0].mxu0
    %v968 = vadd.f32 0.0, %v967
    %969 = vmatprep.mubr.f32.mxu0 0.0
    %970 = vmatmul.mubr.f32.gmra.mrb[0].mxu0 %v873
    %v971 = vpop.f32.mrb[0].mxu0
    %v972 = vadd.f32 0.0, %v971
    %v973 = vpop.f32.mrb[0].mxu0
    %v974 = vadd.f32 0.0, %v973
    %975 = vdwg.mxu0
    %v977 = vsel %vm621, %v758, 0
    %v980 = vsel %vm621, %v763, 0
    %v983 = vsel %vm621, %v768, 0
    %v986 = vsel %vm621, %v773, 0
    %v989 = vsel %vm621, %v778, 0
    %v992 = vsel %vm621, %v783, 0
    %994 = vmatprep.subr.mxu0 %v842
    %995 = vmatpush1.msra.mxu0 %v841
    %996 = vmatprep.subr.mxu0 %v844
    %997 = vmatpush1.msra.mxu0 %v843
    %998 = vmatprep.subr.mxu0 %v846
    %999 = vmatpush1.msra.mxu0 %v845
    %1000 = vmatprep.subr.mxu0 %v848
    %1001 = vmatpush1.msra.mxu0 %v847
    %1002 = vmatprep.subr.mxu0 0.0
    %1003 = vmatpush1.msra.mxu0 0.0
    %1004 = vmatprep.subr.mxu0 0.0
    %1005 = vmatpush1.msra.mxu0 0.0
    %1006 = vmatprep.subr.mxu0 0.0
    %1007 = vmatpush1.msra.mxu0 0.0
    %1008 = vmatprep.subr.mxu0 0.0
    %1009 = vmatpush1.msra.mxu0 0.0
    %1010 = vmatprep.subr.mxu0 0.0
    %1011 = vmatpush1.msra.mxu0 0.0
    %1012 = vmatprep.subr.mxu0 0.0
    %1013 = vmatpush1.msra.mxu0 0.0
    %1014 = vmatprep.subr.mxu0 0.0
    %1015 = vmatpush1.msra.mxu0 0.0
    %1016 = vmatprep.subr.mxu0 0.0
    %1017 = vmatpush1.msra.mxu0 0.0
    %1018 = vmatprep.subr.mxu0 0.0
    %1019 = vmatpush1.msra.mxu0 0.0
    %1020 = vmatprep.subr.mxu0 0.0
    %1021 = vmatpush1.msra.mxu0 0.0
    %1022 = vmatprep.subr.mxu0 0.0
    %1023 = vmatpush1.msra.mxu0 0.0
    %1024 = vmatprep.subr.mxu0 0.0
    %1025 = vmatpush1.msra.mxu0 0.0
    %1026 = vmatprep.subr.mxu0 0.0
    %1027 = vmatpush1.msra.mxu0 0.0
    %1028 = vmatprep.subr.mxu0 0.0
    %1029 = vmatpush1.msra.mxu0 0.0
    %1030 = vmatprep.subr.mxu0 0.0
    %1031 = vmatpush1.msra.mxu0 0.0
    %1032 = vmatprep.subr.mxu0 0.0
    %1033 = vmatpush1.msra.mxu0 0.0
    %1034 = vmatprep.subr.mxu0 0.0
    %1035 = vmatpush1.msra.mxu0 0.0
    %1036 = vmatprep.subr.mxu0 0.0
    %1037 = vmatpush1.msra.mxu0 0.0
    %1038 = vmatprep.subr.mxu0 0.0
    %1039 = vmatpush1.msra.mxu0 0.0
    %1040 = vmatprep.subr.mxu0 0.0
    %1041 = vmatpush1.msra.mxu0 0.0
    %1042 = vmatprep.subr.mxu0 0.0
    %1043 = vmatpush1.msra.mxu0 0.0
    %1044 = vmatprep.subr.mxu0 0.0
    %1045 = vmatpush1.msra.mxu0 0.0
    %1046 = vmatprep.subr.mxu0 0.0
    %1047 = vmatpush1.msra.mxu0 0.0
    %1048 = vmatprep.subr.mxu0 0.0
    %1049 = vmatpush1.msra.mxu0 0.0
    %1050 = vmatprep.subr.mxu0 0.0
    %1051 = vmatpush1.msra.mxu0 0.0
    %1052 = vmatprep.subr.mxu0 0.0
    %1053 = vmatpush1.msra.mxu0 0.0
    %1054 = vmatprep.subr.mxu0 0.0
    %1055 = vmatpush1.msra.mxu0 0.0
    %1056 = vmatprep.subr.mxu0 0.0
    %1057 = vmatpush1.msra.mxu0 0.0
    %1058 = vmatprep.mubr.f32.mxu0 0.0
    %1059 = vmatmul.mubr.f32.gmra.mrb[0].mxu0 %v977
    %v1060 = vpop.f32.mrb[0].mxu0
    %v1061 = vadd.f32 %v942, %v1060
    %v1062 = vpop.f32.mrb[0].mxu0
    %v1063 = vadd.f32 %v944, %v1062
    %1064 = vmatprep.mubr.f32.mxu0 0.0
    %1065 = vmatmul.mubr.f32.gmra.mrb[0].mxu0 %v980
    %v1066 = vpop.f32.mrb[0].mxu0
    %v1067 = vadd.f32 %v948, %v1066
    %v1068 = vpop.f32.mrb[0].mxu0
    %v1069 = vadd.f32 %v950, %v1068
    %1070 = vmatprep.mubr.f32.mxu0 0.0
    %1071 = vmatmul.mubr.f32.gmra.mrb[0].mxu0 %v983
    %v1072 = vpop.f32.mrb[0].mxu0
    %v1073 = vadd.f32 %v954, %v1072
    %v1074 = vpop.f32.mrb[0].mxu0
    %v1075 = vadd.f32 %v956, %v1074
    %1076 = vmatprep.mubr.f32.mxu0 0.0
    %1077 = vmatmul.mubr.f32.gmra.mrb[0].mxu0 %v986
    %v1078 = vpop.f32.mrb[0].mxu0
    %v1079 = vadd.f32 %v960, %v1078
    %v1080 = vpop.f32.mrb[0].mxu0
    %v1081 = vadd.f32 %v962, %v1080
    %1082 = vmatprep.mubr.f32.mxu0 0.0
    %1083 = vmatmul.mubr.f32.gmra.mrb[0].mxu0 %v989
    %v1084 = vpop.f32.mrb[0].mxu0
    %v1085 = vadd.f32 %v966, %v1084
    %v1086 = vpop.f32.mrb[0].mxu0
    %v1087 = vadd.f32 %v968, %v1086
    %1088 = vmatprep.mubr.f32.mxu0 0.0
    %1089 = vmatmul.mubr.f32.gmra.mrb[0].mxu0 %v992
    %v1090 = vpop.f32.mrb[0].mxu0
    %v1091 = vadd.f32 %v972, %v1090
    %v1092 = vpop.f32.mrb[0].mxu0
    %v1093 = vadd.f32 %v974, %v1092
    %1094 = vdwg.mxu0
    %v1095 = vld [vmem:[#allocation11] sm:$0x3]
    %v1097 = vlaneseq
    %v1098 = vshrl.u32 %v1097, 7
    %v1099 = vsub.s32 0, %v1098
    %v1100 = vrot.slane %v1095, %v1099
    %v1101 = vlaneseq
    %v1102 = vshrl.u32 %v1101, 7
    %v1103 = vsub.s32 1, %v1102
    %v1104 = vrot.slane %v1095, %v1103
    %v1107 = vmul.f32 %v825, %v1100
    %v1108 = vmul.f32 %v825, %v1104
    %v1109 = vmul.f32 %v828, %v1100
    %v1110 = vmul.f32 %v828, %v1104
    %v1111 = vmul.f32 %v831, %v1100
    %v1112 = vmul.f32 %v831, %v1104
    %v1113 = vmul.f32 %v834, %v1100
    %v1114 = vmul.f32 %v834, %v1104
    %v1115 = vmul.f32 %v837, %v1100
    %v1116 = vmul.f32 %v837, %v1104
    %v1117 = vmul.f32 %v840, %v1100
    %v1118 = vmul.f32 %v840, %v1104
    %v1119 = vadd.f32 %v1061, %v1107
    %v1120 = vadd.f32 %v1063, %v1108
    %v1121 = vadd.f32 %v1067, %v1109
    %v1122 = vadd.f32 %v1069, %v1110
    %v1123 = vadd.f32 %v1073, %v1111
    %v1124 = vadd.f32 %v1075, %v1112
    %v1125 = vadd.f32 %v1079, %v1113
    %v1126 = vadd.f32 %v1081, %v1114
    %v1127 = vadd.f32 %v1085, %v1115
    %v1128 = vadd.f32 %v1087, %v1116
    %v1129 = vadd.f32 %v1091, %v1117
    %v1130 = vadd.f32 %v1093, %v1118
    %v1131 = vld [vmem:[%s21] sm:$0x3]
    %v1133 = vlaneseq
    %v1134 = vshrl.u32 %v1133, 7
    %v1135 = vsub.s32 0, %v1134
    %v1136 = vrot.slane %v1131, %v1135
    %v1137 = vlaneseq
    %v1138 = vshrl.u32 %v1137, 7
    %v1139 = vsub.s32 1, %v1138
    %v1140 = vrot.slane %v1131, %v1139
    %v1143 = vadd.f32 %v1119, %v1136
    %v1144 = vadd.f32 %v1120, %v1140
    %v1145 = vadd.f32 %v1121, %v1136
    %v1146 = vadd.f32 %v1122, %v1140
    %v1147 = vadd.f32 %v1123, %v1136
    %v1148 = vadd.f32 %v1124, %v1140
    %v1149 = vadd.f32 %v1125, %v1136
    %v1150 = vadd.f32 %v1126, %v1140
    %v1151 = vadd.f32 %v1127, %v1136
    %v1152 = vadd.f32 %v1128, %v1140
    %v1153 = vadd.f32 %v1129, %v1136
    %v1154 = vadd.f32 %v1130, %v1140
    %v1155 = vmul.f32 %v1143, 0.5
    %v1156 = vmul.f32 %v1144, 0.5
    %v1157 = vmul.f32 %v1145, 0.5
    %v1158 = vmul.f32 %v1146, 0.5
    %v1159 = vmul.f32 %v1147, 0.5
    %v1160 = vmul.f32 %v1148, 0.5
    %v1161 = vmul.f32 %v1149, 0.5
    %v1162 = vmul.f32 %v1150, 0.5
    %v1163 = vmul.f32 %v1151, 0.5
    %v1164 = vmul.f32 %v1152, 0.5
    %v1165 = vmul.f32 %v1153, 0.5
    %v1166 = vmul.f32 %v1154, 0.5
    %v1167 = vtanh.pop %v1155
    %v1168 = vtanh.pop %v1156
    %v1169 = vtanh.pop %v1157
    %v1170 = vtanh.pop %v1158
    %v1171 = vtanh.pop %v1159
    %v1172 = vtanh.pop %v1160
    %v1173 = vtanh.pop %v1161
    %v1174 = vtanh.pop %v1162
    %v1175 = vtanh.pop %v1163
    %v1176 = vtanh.pop %v1164
    %v1177 = vtanh.pop %v1165
    %v1178 = vtanh.pop %v1166
    %v1179 = vmul.f32 %v1167, 0.5
    %v1180 = vmul.f32 %v1168, 0.5
    %v1181 = vmul.f32 %v1169, 0.5
    %v1182 = vmul.f32 %v1170, 0.5
    %v1183 = vmul.f32 %v1171, 0.5
    %v1184 = vmul.f32 %v1172, 0.5
    %v1185 = vmul.f32 %v1173, 0.5
    %v1186 = vmul.f32 %v1174, 0.5
    %v1187 = vmul.f32 %v1175, 0.5
    %v1188 = vmul.f32 %v1176, 0.5
    %v1189 = vmul.f32 %v1177, 0.5
    %v1190 = vmul.f32 %v1178, 0.5
    %v1191 = vadd.f32 %v1179, 0.5
    %v1192 = vadd.f32 %v1180, 0.5
    %v1193 = vadd.f32 %v1181, 0.5
    %v1194 = vadd.f32 %v1182, 0.5
    %v1195 = vadd.f32 %v1183, 0.5
    %v1196 = vadd.f32 %v1184, 0.5
    %v1197 = vadd.f32 %v1185, 0.5
    %v1198 = vadd.f32 %v1186, 0.5
    %v1199 = vadd.f32 %v1187, 0.5
    %v1200 = vadd.f32 %v1188, 0.5
    %v1201 = vadd.f32 %v1189, 0.5
    %v1202 = vadd.f32 %v1190, 0.5
    %v1203 = vmul.f32 %v1143, %v1191
    %v1204 = vmul.f32 %v1144, %v1192
    %v1205 = vmul.f32 %v1145, %v1193
    %v1206 = vmul.f32 %v1146, %v1194
    %v1207 = vmul.f32 %v1147, %v1195
    %v1208 = vmul.f32 %v1148, %v1196
    %v1209 = vmul.f32 %v1149, %v1197
    %v1210 = vmul.f32 %v1150, %v1198
    %v1211 = vmul.f32 %v1151, %v1199
    %v1212 = vmul.f32 %v1152, %v1200
    %v1213 = vmul.f32 %v1153, %v1201
    %v1214 = vmul.f32 %v1154, %v1202
    %v1215 = vld [vmem:[%s23] sm:$0xff]
    %v1216 = vld [vmem:[%s23 + $0x8] sm:$0xff]
    %v1217 = vld [vmem:[%s23 + $0x10] sm:$0xff]
    %v1218 = vld [vmem:[%s23 + $0x18] sm:$0xff]
    %v1219 = vld [vmem:[%s23 + $0x20] sm:$0xff]
    %v1220 = vld [vmem:[%s23 + $0x28] sm:$0xff]
    %v1221 = vld [vmem:[%s23 + $0x30] sm:$0xff]
    %v1222 = vld [vmem:[%s23 + $0x38] sm:$0xff]
    %v1223 = vld [vmem:[%s23 + $0x40] sm:$0xff]
    %v1224 = vld [vmem:[%s23 + $0x48] sm:$0xff]
    %v1225 = vld [vmem:[%s23 + $0x50] sm:$0xff]
    %v1226 = vld [vmem:[%s23 + $0x58] sm:$0xff]
    %v1227 = vld [vmem:[%s23 + $0x60] sm:$0xff]
    %v1228 = vld [vmem:[%s23 + $0x68] sm:$0xff]
    %v1229 = vld [vmem:[%s23 + $0x70] sm:$0xff]
    %v1230 = vld [vmem:[%s23 + $0x78] sm:$0xff]
    %v1231 = vld [vmem:[%s23 + $0x80] sm:$0x3]
    %v1232 = vld [vmem:[%s25] sm:$0x1]
    %v1234 = vlaneseq
    %v1235 = vshrl.u32 %v1234, 7
    %v1236 = vsub.s32 0, %v1235
    %v1237 = vrot.slane %v1232, %v1236
    %vm1239 = vcmask 15360
    %v1241 = vsel %vm1239, %v1204, 0
    %v1244 = vsel %vm1239, %v1206, 0
    %v1247 = vsel %vm1239, %v1208, 0
    %v1250 = vsel %vm1239, %v1210, 0
    %v1253 = vsel %vm1239, %v1212, 0
    %v1256 = vsel %vm1239, %v1214, 0
    %vm1258 = vcmask 1041408
    %v1260 = vsel %vm1258, %v1231, 0
    %1262 = vmatprep.subr.mxu0 0.0
    %1263 = vmatpush1.msra.mxu0 %v1215
    %1264 = vmatprep.subr.mxu0 0.0
    %1265 = vmatpush1.msra.mxu0 %v1216
    %1266 = vmatprep.subr.mxu0 0.0
    %1267 = vmatpush1.msra.mxu0 %v1217
    %1268 = vmatprep.subr.mxu0 0.0
    %1269 = vmatpush1.msra.mxu0 %v1218
    %1270 = vmatprep.subr.mxu0 0.0
    %1271 = vmatpush1.msra.mxu0 %v1219
    %1272 = vmatprep.subr.mxu0 0.0
    %1273 = vmatpush1.msra.mxu0 %v1220
    %1274 = vmatprep.subr.mxu0 0.0
    %1275 = vmatpush1.msra.mxu0 %v1221
    %1276 = vmatprep.subr.mxu0 0.0
    %1277 = vmatpush1.msra.mxu0 %v1222
    %1278 = vmatprep.subr.mxu0 0.0
    %1279 = vmatpush1.msra.mxu0 %v1223
    %1280 = vmatprep.subr.mxu0 0.0
    %1281 = vmatpush1.msra.mxu0 %v1224
    %1282 = vmatprep.subr.mxu0 0.0
    %1283 = vmatpush1.msra.mxu0 %v1225
    %1284 = vmatprep.subr.mxu0 0.0
    %1285 = vmatpush1.msra.mxu0 %v1226
    %1286 = vmatprep.subr.mxu0 0.0
    %1287 = vmatpush1.msra.mxu0 %v1227
    %1288 = vmatprep.subr.mxu0 0.0
    %1289 = vmatpush1.msra.mxu0 %v1228
    %1290 = vmatprep.subr.mxu0 0.0
    %1291 = vmatpush1.msra.mxu0 %v1229
    %1292 = vmatprep.subr.mxu0 0.0
    %1293 = vmatpush1.msra.mxu0 %v1230
    %1294 = vmatprep.subr.mxu0 0.0
    %1295 = vmatpush1.msra.mxu0 %v1260
    %1296 = vmatprep.subr.mxu0 0.0
    %1297 = vmatpush1.msra.mxu0 0.0
    %1298 = vmatprep.subr.mxu0 0.0
    %1299 = vmatpush1.msra.mxu0 0.0
    %1300 = vmatprep.subr.mxu0 0.0
    %1301 = vmatpush1.msra.mxu0 0.0
    %1302 = vmatprep.subr.mxu0 0.0
    %1303 = vmatpush1.msra.mxu0 0.0
    %1304 = vmatprep.subr.mxu0 0.0
    %1305 = vmatpush1.msra.mxu0 0.0
    %1306 = vmatprep.subr.mxu0 0.0
    %1307 = vmatpush1.msra.mxu0 0.0
    %1308 = vmatprep.subr.mxu0 0.0
    %1309 = vmatpush1.msra.mxu0 0.0
    %1310 = vmatprep.subr.mxu0 0.0
    %1311 = vmatpush1.msra.mxu0 0.0
    %1312 = vmatprep.subr.mxu0 0.0
    %1313 = vmatpush1.msra.mxu0 0.0
    %1314 = vmatprep.subr.mxu0 0.0
    %1315 = vmatpush1.msra.mxu0 0.0
    %1316 = vmatprep.subr.mxu0 0.0
    %1317 = vmatpush1.msra.mxu0 0.0
    %1318 = vmatprep.subr.mxu0 0.0
    %1319 = vmatpush1.msra.mxu0 0.0
    %1320 = vmatprep.subr.mxu0 0.0
    %1321 = vmatpush1.msra.mxu0 0.0
    %1322 = vmatprep.subr.mxu0 0.0
    %1323 = vmatpush1.msra.mxu0 0.0
    %1324 = vmatprep.subr.mxu0 0.0
    %1325 = vmatpush1.msra.mxu0 0.0
    %1326 = vmatprep.mubr.f32.mxu0 %v1241
    %1327 = vmatmul.mubr.f32.gmra.mrb[0].mxu0 %v1203
    %v1328 = vpop.f32.mrb[0].mxu0
    %v1329 = vadd.f32 %v1237, %v1328
    %v1330 = vpop.f32.mrb[0].mxu0
    %1331 = vmatprep.mubr.f32.mxu0 %v1244
    %1332 = vmatmul.mubr.f32.gmra.mrb[0].mxu0 %v1205
    %v1333 = vpop.f32.mrb[0].mxu0
    %v1334 = vadd.f32 %v1237, %v1333
    %v1335 = vpop.f32.mrb[0].mxu0
    %1336 = vmatprep.mubr.f32.mxu0 %v1247
    %1337 = vmatmul.mubr.f32.gmra.mrb[0].mxu0 %v1207
    %v1338 = vpop.f32.mrb[0].mxu0
    %v1339 = vadd.f32 %v1237, %v1338
    %v1340 = vpop.f32.mrb[0].mxu0
    %1341 = vmatprep.mubr.f32.mxu0 %v1250
    %1342 = vmatmul.mubr.f32.gmra.mrb[0].mxu0 %v1209
    %v1343 = vpop.f32.mrb[0].mxu0
    %v1344 = vadd.f32 %v1237, %v1343
    %v1345 = vpop.f32.mrb[0].mxu0
    %1346 = vmatprep.mubr.f32.mxu0 %v1253
    %1347 = vmatmul.mubr.f32.gmra.mrb[0].mxu0 %v1211
    %v1348 = vpop.f32.mrb[0].mxu0
    %v1349 = vadd.f32 %v1237, %v1348
    %v1350 = vpop.f32.mrb[0].mxu0
    %1351 = vmatprep.mubr.f32.mxu0 %v1256
    %1352 = vmatmul.mubr.f32.gmra.mrb[0].mxu0 %v1213
    %v1353 = vpop.f32.mrb[0].mxu0
    %v1354 = vadd.f32 %v1237, %v1353
    %v1355 = vpop.f32.mrb[0].mxu0
    %1356 = vdwg.mxu0
    %v1357 = vmul.f32 %v1329, 0.5
    %v1358 = vmul.f32 %v1334, 0.5
    %v1359 = vmul.f32 %v1339, 0.5
    %v1360 = vmul.f32 %v1344, 0.5
    %v1361 = vmul.f32 %v1349, 0.5
    %v1362 = vmul.f32 %v1354, 0.5
    %v1363 = vtanh.pop %v1357
    %v1364 = vtanh.pop %v1358
    %v1365 = vtanh.pop %v1359
    %v1366 = vtanh.pop %v1360
    %v1367 = vtanh.pop %v1361
    %v1368 = vtanh.pop %v1362
    %v1369 = vmul.f32 %v1363, 0.5
    %v1370 = vmul.f32 %v1364, 0.5
    %v1371 = vmul.f32 %v1365, 0.5
    %v1372 = vmul.f32 %v1366, 0.5
    %v1373 = vmul.f32 %v1367, 0.5
    %v1374 = vmul.f32 %v1368, 0.5
    %v1375 = vadd.f32 %v1369, 0.5
    %v1376 = vadd.f32 %v1370, 0.5
    %v1377 = vadd.f32 %v1371, 0.5
    %v1378 = vadd.f32 %v1372, 0.5
    %v1379 = vadd.f32 %v1373, 0.5
    %v1380 = vadd.f32 %v1374, 0.5
    %v1381 = vmul.f32 %v1329, %v1375
    %v1382 = vmul.f32 %v1334, %v1376
    %v1383 = vmul.f32 %v1339, %v1377
    %v1384 = vmul.f32 %v1344, %v1378
    %v1385 = vmul.f32 %v1349, %v1379
    %v1386 = vmul.f32 %v1354, %v1380
    %v1387 = vld [vmem:[#allocation12] sm:$0xff]
    %v1388 = vld [vmem:[#allocation12 + $0x8] sm:$0xff]
    %v1389 = vld [vmem:[%s29] sm:$0x1]
    %v1391 = vlaneseq
    %v1392 = vshrl.u32 %v1391, 7
    %v1393 = vsub.s32 0, %v1392
    %v1394 = vrot.slane %v1389, %v1393
    %v1397 = vsel %vm624, %v1381, 0
    %v1400 = vsel %vm624, %v1382, 0
    %v1403 = vsel %vm624, %v1383, 0
    %v1406 = vsel %vm624, %v1384, 0
    %v1409 = vsel %vm624, %v1385, 0
    %v1412 = vsel %vm624, %v1386, 0
    %1414 = vmatprep.subr.mxu0 0.0
    %1415 = vmatpush1.msra.mxu0 %v1387
    %1416 = vmatprep.subr.mxu0 0.0
    %1417 = vmatpush1.msra.mxu0 %v1388
    %1418 = vmatprep.subr.mxu0 0.0
    %1419 = vmatpush1.msra.mxu0 0.0
    %1420 = vmatprep.subr.mxu0 0.0
    %1421 = vmatpush1.msra.mxu0 0.0
    %1422 = vmatprep.subr.mxu0 0.0
    %1423 = vmatpush1.msra.mxu0 0.0
    %1424 = vmatprep.subr.mxu0 0.0
    %1425 = vmatpush1.msra.mxu0 0.0
    %1426 = vmatprep.subr.mxu0 0.0
    %1427 = vmatpush1.msra.mxu0 0.0
    %1428 = vmatprep.subr.mxu0 0.0
    %1429 = vmatpush1.msra.mxu0 0.0
    %1430 = vmatprep.subr.mxu0 0.0
    %1431 = vmatpush1.msra.mxu0 0.0
    %1432 = vmatprep.subr.mxu0 0.0
    %1433 = vmatpush1.msra.mxu0 0.0
    %1434 = vmatprep.subr.mxu0 0.0
    %1435 = vmatpush1.msra.mxu0 0.0
    %1436 = vmatprep.subr.mxu0 0.0
    %1437 = vmatpush1.msra.mxu0 0.0
    %1438 = vmatprep.subr.mxu0 0.0
    %1439 = vmatpush1.msra.mxu0 0.0
    %1440 = vmatprep.subr.mxu0 0.0
    %1441 = vmatpush1.msra.mxu0 0.0
    %1442 = vmatprep.subr.mxu0 0.0
    %1443 = vmatpush1.msra.mxu0 0.0
    %1444 = vmatprep.subr.mxu0 0.0
    %1445 = vmatpush1.msra.mxu0 0.0
    %1446 = vmatprep.subr.mxu0 0.0
    %1447 = vmatpush1.msra.mxu0 0.0
    %1448 = vmatprep.subr.mxu0 0.0
    %1449 = vmatpush1.msra.mxu0 0.0
    %1450 = vmatprep.subr.mxu0 0.0
    %1451 = vmatpush1.msra.mxu0 0.0
    %1452 = vmatprep.subr.mxu0 0.0
    %1453 = vmatpush1.msra.mxu0 0.0
    %1454 = vmatprep.subr.mxu0 0.0
    %1455 = vmatpush1.msra.mxu0 0.0
    %1456 = vmatprep.subr.mxu0 0.0
    %1457 = vmatpush1.msra.mxu0 0.0
    %1458 = vmatprep.subr.mxu0 0.0
    %1459 = vmatpush1.msra.mxu0 0.0
    %1460 = vmatprep.subr.mxu0 0.0
    %1461 = vmatpush1.msra.mxu0 0.0
    %1462 = vmatprep.subr.mxu0 0.0
    %1463 = vmatpush1.msra.mxu0 0.0
    %1464 = vmatprep.subr.mxu0 0.0
    %1465 = vmatpush1.msra.mxu0 0.0
    %1466 = vmatprep.subr.mxu0 0.0
    %1467 = vmatpush1.msra.mxu0 0.0
    %1468 = vmatprep.subr.mxu0 0.0
    %1469 = vmatpush1.msra.mxu0 0.0
    %1470 = vmatprep.subr.mxu0 0.0
    %1471 = vmatpush1.msra.mxu0 0.0
    %1472 = vmatprep.subr.mxu0 0.0
    %1473 = vmatpush1.msra.mxu0 0.0
    %1474 = vmatprep.subr.mxu0 0.0
    %1475 = vmatpush1.msra.mxu0 0.0
    %1476 = vmatprep.subr.mxu0 0.0
    %1477 = vmatpush1.msra.mxu0 0.0
    %1478 = vmatprep.mubr.f32.mxu0 0.0
    %1479 = vmatmul.mubr.f32.gmra.mrb[0].mxu0 %v1397
    %v1480 = vpop.f32.mrb[0].mxu0
    %v1481 = vadd.f32 %v1394, %v1480
    %v1482 = vpop.f32.mrb[0].mxu0
    %1483 = vmatprep.mubr.f32.mxu0 0.0
    %1484 = vmatmul.mubr.f32.gmra.mrb[0].mxu0 %v1400
    %v1485 = vpop.f32.mrb[0].mxu0
    %v1486 = vadd.f32 %v1394, %v1485
    %v1487 = vpop.f32.mrb[0].mxu0
    %1488 = vmatprep.mubr.f32.mxu0 0.0
    %1489 = vmatmul.mubr.f32.gmra.mrb[0].mxu0 %v1403
    %v1490 = vpop.f32.mrb[0].mxu0
    %v1491 = vadd.f32 %v1394, %v1490
    %v1492 = vpop.f32.mrb[0].mxu0
    %1493 = vmatprep.mubr.f32.mxu0 0.0
    %1494 = vmatmul.mubr.f32.gmra.mrb[0].mxu0 %v1406
    %v1495 = vpop.f32.mrb[0].mxu0
    %v1496 = vadd.f32 %v1394, %v1495
    %v1497 = vpop.f32.mrb[0].mxu0
    %1498 = vmatprep.mubr.f32.mxu0 0.0
    %1499 = vmatmul.mubr.f32.gmra.mrb[0].mxu0 %v1409
    %v1500 = vpop.f32.mrb[0].mxu0
    %v1501 = vadd.f32 %v1394, %v1500
    %v1502 = vpop.f32.mrb[0].mxu0
    %1503 = vmatprep.mubr.f32.mxu0 0.0
    %1504 = vmatmul.mubr.f32.gmra.mrb[0].mxu0 %v1412
    %v1505 = vpop.f32.mrb[0].mxu0
    %v1506 = vadd.f32 %v1394, %v1505
    %v1507 = vpop.f32.mrb[0].mxu0
    %1508 = vdwg.mxu0
    %v1509 = vmul.f32 %v1481, 0.5
    %v1510 = vmul.f32 %v1486, 0.5
    %v1511 = vmul.f32 %v1491, 0.5
    %v1512 = vmul.f32 %v1496, 0.5
    %v1513 = vmul.f32 %v1501, 0.5
    %v1514 = vmul.f32 %v1506, 0.5
    %v1515 = vtanh.pop %v1509
    %v1516 = vtanh.pop %v1510
    %v1517 = vtanh.pop %v1511
    %v1518 = vtanh.pop %v1512
    %v1519 = vtanh.pop %v1513
    %v1520 = vtanh.pop %v1514
    %v1521 = vmul.f32 %v1515, 0.5
    %v1522 = vmul.f32 %v1516, 0.5
    %v1523 = vmul.f32 %v1517, 0.5
    %v1524 = vmul.f32 %v1518, 0.5
    %v1525 = vmul.f32 %v1519, 0.5
    %v1526 = vmul.f32 %v1520, 0.5
    %v1527 = vadd.f32 %v1521, 0.5
    %v1528 = vadd.f32 %v1522, 0.5
    %v1529 = vadd.f32 %v1523, 0.5
    %v1530 = vadd.f32 %v1524, 0.5
    %v1531 = vadd.f32 %v1525, 0.5
    %v1532 = vadd.f32 %v1526, 0.5
    %v1533 = vmul.f32 %v1481, %v1527
    %v1534 = vmul.f32 %v1486, %v1528
    %v1535 = vmul.f32 %v1491, %v1529
    %v1536 = vmul.f32 %v1496, %v1530
    %v1537 = vmul.f32 %v1501, %v1531
    %v1538 = vmul.f32 %v1506, %v1532
    %v1539 = vld [vmem:[#allocation14] sm:$0x1]
    %v1541 = vlaneseq
    %v1542 = vshrl.u32 %v1541, 7
    %v1543 = vsub.s32 0, %v1542
    %v1544 = vrot.slane %v1539, %v1543
    %v1546 = vmul.f32 %v1533, %v1544
    %v1547 = vmul.f32 %v1534, %v1544
    %v1548 = vmul.f32 %v1535, %v1544
    %v1549 = vmul.f32 %v1536, %v1544
    %v1550 = vmul.f32 %v1537, %v1544
    %v1551 = vmul.f32 %v1538, %v1544
    %vm1552 = vcmask 523264
    %v1553 = vsel %vm1552, %v1546, 0.0
    %1554 = vadd.xlane.f32.xlu0 %v1553
    %v1555 = vpop.xlane.xlu0 %1554
    %v1556 = vsel %vm1552, %v1547, 0.0
    %1557 = vadd.xlane.f32.xlu0 %v1556
    %v1558 = vpop.xlane.xlu0 %1557
    %v1559 = vsel %vm1552, %v1548, 0.0
    %1560 = vadd.xlane.f32.xlu0 %v1559
    %v1561 = vpop.xlane.xlu0 %1560
    %v1562 = vsel %vm1552, %v1549, 0.0
    %1563 = vadd.xlane.f32.xlu0 %v1562
    %v1564 = vpop.xlane.xlu0 %1563
    %v1565 = vsel %vm1552, %v1550, 0.0
    %1566 = vadd.xlane.f32.xlu0 %v1565
    %v1567 = vpop.xlane.xlu0 %1566
    %v1568 = vsel %vm1552, %v1551, 0.0
    %1569 = vadd.xlane.f32.xlu0 %v1568
    %v1570 = vpop.xlane.xlu0 %1569
    %v1571 = vld [vmem:[#allocation2] sm:$0x1]
    %v1573 = vlaneseq
    %v1574 = vshrl.u32 %v1573, 7
    %v1575 = vsub.s32 0, %v1574
    %v1576 = vrot.slane %v1571, %v1575
    %v1578 = vadd.f32 %v1555, %v1576
    %v1579 = vadd.f32 %v1558, %v1576
    %v1580 = vadd.f32 %v1561, %v1576
    %v1581 = vadd.f32 %v1564, %v1576
    %v1582 = vadd.f32 %v1567, %v1576
    %v1583 = vadd.f32 %v1570, %v1576
    %1585 = vset.pattern.permute.xlu0 0
    %1586 = vperm.xlu0 %1585, %v1578
    %v1587 = vpop.permute.xlu0 %1586
    %1590 = vset.pattern.permute.xlu0 0
    %1591 = vperm.xlu0 %1590, %v1579
    %v1592 = vpop.permute.xlu0 %1591
    %1595 = vset.pattern.permute.xlu0 0
    %1596 = vperm.xlu0 %1595, %v1580
    %v1597 = vpop.permute.xlu0 %1596
    %1600 = vset.pattern.permute.xlu0 0
    %1601 = vperm.xlu0 %1600, %v1581
    %v1602 = vpop.permute.xlu0 %1601
    %1605 = vset.pattern.permute.xlu0 0
    %1606 = vperm.xlu0 %1605, %v1582
    %v1607 = vpop.permute.xlu0 %1606
    %1610 = vset.pattern.permute.xlu0 0
    %1611 = vperm.xlu0 %1610, %v1583
    %v1612 = vpop.permute.xlu0 %1611
    %v1614 = vmul.f32 %v1587, %v786
    %v1615 = vmul.f32 %v1592, %v787
    %v1616 = vmul.f32 %v1597, %v788
    %v1617 = vmul.f32 %v1602, %v789
    %v1618 = vmul.f32 %v1607, %v790
    %v1619 = vmul.f32 %v1612, %v791
    %1626 = vrot.lane.b32.xlu0 %v1614, 112
    %v1627 = vpop.permute.xlu0 %1626
    %1628 = vrot.lane.b32.xlu0 %v1615, 112
    %v1629 = vpop.permute.xlu0 %1628
    %1630 = vrot.lane.b32.xlu0 %v1616, 112
    %v1631 = vpop.permute.xlu0 %1630
    %1632 = vrot.lane.b32.xlu0 %v1617, 112
    %v1633 = vpop.permute.xlu0 %1632
    %1634 = vrot.lane.b32.xlu0 %v1618, 112
    %v1635 = vpop.permute.xlu0 %1634
    %1636 = vrot.lane.b32.xlu0 %v1619, 112
    %v1637 = vpop.permute.xlu0 %1636
    %v1644 = vsel %vm624, %v1381, %v1627
    %v1645 = vsel %vm624, %v1382, %v1629
    %v1646 = vsel %vm624, %v1383, %v1631
    %v1647 = vsel %vm624, %v1384, %v1633
    %v1648 = vsel %vm624, %v1385, %v1635
    %v1649 = vsel %vm624, %v1386, %v1637
    %1650 = vxpose.xlu0.b32.start [1/16] %v572, 128
    %1651 = vxpose.xlu0.b32.cont [2/16] %v573, 128
    %1652 = vxpose.xlu0.b32.cont [3/16] %v574, 128
    %1653 = vxpose.xlu0.b32.cont [4/16] %v575, 128
    %1654 = vxpose.xlu0.b32.cont [5/16] %v576, 128
    %1655 = vxpose.xlu0.b32.cont [6/16] %v577, 128
    %1656 = vxpose.xlu0.b32.cont [7/16] 0.0, 128
    %1657 = vxpose.xlu0.b32.cont [8/16] 0.0, 128
    %1658 = vxpose.xlu0.b32.cont [9/16] 0.0, 128
    %1659 = vxpose.xlu0.b32.cont [10/16] 0.0, 128
    %1660 = vxpose.xlu0.b32.cont [11/16] 0.0, 128
    %1661 = vxpose.xlu0.b32.cont [12/16] 0.0, 128
    %1662 = vxpose.xlu0.b32.cont [13/16] 0.0, 128
    %1663 = vxpose.xlu0.b32.cont [14/16] 0.0, 128
    %1664 = vxpose.xlu0.b32.cont [15/16] 0.0, 128
    %1665 = vxpose.xlu0.b32.end [16/16] 0.0, 128
    %v1666 = vpop.trf.xlu0
    %v1667 = vpop.trf.xlu0
    %v1668 = vpop.trf.xlu0
    %v1669 = vpop.trf.xlu0
    %v1670 = vpop.trf.xlu0
    %v1671 = vpop.trf.xlu0
    %v1672 = vpop.trf.xlu0
    %v1673 = vpop.trf.xlu0
    %v1674 = vpop.trf.xlu0
    %v1675 = vpop.trf.xlu0
    %v1676 = vpop.trf.xlu0
    %v1677 = vpop.trf.xlu0
    %v1678 = vpop.trf.xlu0
    %v1679 = vpop.trf.xlu0
    %v1680 = vpop.trf.xlu0
    %v1681 = vpop.trf.xlu0
    %vm1682 = vcmask 392192
    %v1684 = vsel %vm1682, %v1666, 0
    %v1687 = vsel %vm1682, %v1667, 0
    %1689 = vmatprep.subr.mxu0 0.0
    %1690 = vmatpush1.msra.mxu0 %v1644
    %1691 = vmatprep.subr.mxu0 0.0
    %1692 = vmatpush1.msra.mxu0 %v1645
    %1693 = vmatprep.subr.mxu0 0.0
    %1694 = vmatpush1.msra.mxu0 %v1646
    %1695 = vmatprep.subr.mxu0 0.0
    %1696 = vmatpush1.msra.mxu0 %v1647
    %1697 = vmatprep.subr.mxu0 0.0
    %1698 = vmatpush1.msra.mxu0 %v1648
    %1699 = vmatprep.subr.mxu0 0.0
    %1700 = vmatpush1.msra.mxu0 %v1649
    %1701 = vmatprep.subr.mxu0 0.0
    %1702 = vmatpush1.msra.mxu0 0.0
    %1703 = vmatprep.subr.mxu0 0.0
    %1704 = vmatpush1.msra.mxu0 0.0
    %1705 = vmatprep.subr.mxu0 0.0
    %1706 = vmatpush1.msra.mxu0 0.0
    %1707 = vmatprep.subr.mxu0 0.0
    %1708 = vmatpush1.msra.mxu0 0.0
    %1709 = vmatprep.subr.mxu0 0.0
    %1710 = vmatpush1.msra.mxu0 0.0
    %1711 = vmatprep.subr.mxu0 0.0
    %1712 = vmatpush1.msra.mxu0 0.0
    %1713 = vmatprep.subr.mxu0 0.0
    %1714 = vmatpush1.msra.mxu0 0.0
    %1715 = vmatprep.subr.mxu0 0.0
    %1716 = vmatpush1.msra.mxu0 0.0
    %1717 = vmatprep.subr.mxu0 0.0
    %1718 = vmatpush1.msra.mxu0 0.0
    %1719 = vmatprep.subr.mxu0 0.0
    %1720 = vmatpush1.msra.mxu0 0.0
    %1721 = vmatprep.subr.mxu0 0.0
    %1722 = vmatpush1.msra.mxu0 0.0
    %1723 = vmatprep.subr.mxu0 0.0
    %1724 = vmatpush1.msra.mxu0 0.0
    %1725 = vmatprep.subr.mxu0 0.0
    %1726 = vmatpush1.msra.mxu0 0.0
    %1727 = vmatprep.subr.mxu0 0.0
    %1728 = vmatpush1.msra.mxu0 0.0
    %1729 = vmatprep.subr.mxu0 0.0
    %1730 = vmatpush1.msra.mxu0 0.0
    %1731 = vmatprep.subr.mxu0 0.0
    %1732 = vmatpush1.msra.mxu0 0.0
    %1733 = vmatprep.subr.mxu0 0.0
    %1734 = vmatpush1.msra.mxu0 0.0
    %1735 = vmatprep.subr.mxu0 0.0
    %1736 = vmatpush1.msra.mxu0 0.0
    %1737 = vmatprep.subr.mxu0 0.0
    %1738 = vmatpush1.msra.mxu0 0.0
    %1739 = vmatprep.subr.mxu0 0.0
    %1740 = vmatpush1.msra.mxu0 0.0
    %1741 = vmatprep.subr.mxu0 0.0
    %1742 = vmatpush1.msra.mxu0 0.0
    %1743 = vmatprep.subr.mxu0 0.0
    %1744 = vmatpush1.msra.mxu0 0.0
    %1745 = vmatprep.subr.mxu0 0.0
    %1746 = vmatpush1.msra.mxu0 0.0
    %1747 = vmatprep.subr.mxu0 0.0
    %1748 = vmatpush1.msra.mxu0 0.0
    %1749 = vmatprep.subr.mxu0 0.0
    %1750 = vmatpush1.msra.mxu0 0.0
    %1751 = vmatprep.subr.mxu0 0.0
    %1752 = vmatpush1.msra.mxu0 0.0
    %1753 = vmatprep.mubr.f32.mxu0 0.0
    %1754 = vmatmul.mubr.f32.gmra.mrb[0].mxu0 %v1684
    %v1755 = vpop.f32.mrb[0].mxu0
    %v1756 = vadd.f32 0.0, %v1755
    %v1757 = vpop.f32.mrb[0].mxu0
    %1758 = vmatprep.mubr.f32.mxu0 0.0
    %1759 = vmatmul.mubr.f32.gmra.mrb[0].mxu0 %v1687
    %v1760 = vpop.f32.mrb[0].mxu0
    %v1761 = vadd.f32 0.0, %v1760
    %v1762 = vpop.f32.mrb[0].mxu0
    %1763 = vdwg.mxu0
    %1766 = vrot.lane.b32.xlu0 %v1756, 112
    %v1767 = vpop.permute.xlu0 %1766
    %1768 = vrot.lane.b32.xlu0 %v1761, 112
    %v1769 = vpop.permute.xlu0 %1768
    %v1772 = vadd.f32 %v488, %v1767
    %v1773 = vadd.f32 %v489, %v1769
    %1775 = vset.pattern.permute.xlu0 0
    %1776 = vperm.xlu0 %1775, %v582
    %v1777 = vpop.permute.xlu0 %1776
    %1780 = vset.pattern.permute.xlu0 0
    %1781 = vperm.xlu0 %1780, %v583
    %v1782 = vpop.permute.xlu0 %1781
    %v1784 = vmul.f32 %v486, %v1777
    %v1785 = vmul.f32 %v487, %v1782
    %v1786 = vsel %vm621, %v1784, 0.0
    %1787 = vadd.xlane.f32.xlu0 %v1786
    %v1788 = vpop.xlane.xlu0 %1787
    %v1789 = vsel %vm621, %v1785, 0.0
    %1790 = vadd.xlane.f32.xlu0 %v1789
    %v1791 = vpop.xlane.xlu0 %1790
    %v1792 = vadd.f32 %v1788, %v1791
    %v1793 = vrot.slane %v1792, 4
    %v1794 = vadd.f32 %v1792, %v1793
    %v1795 = vrot.slane %v1794, 2
    %v1796 = vadd.f32 %v1794, %v1795
    %v1797 = vrot.slane %v1796, 1
    %v1798 = vadd.f32 %v1796, %v1797
    %v1799 = vrcp.pop %v595
    %v1800 = vmul.f32 %v1798, %v1799
    %v1801 = vmul.f32 %v582, %v1800
    %v1802 = vmul.f32 %v583, %v1800
    %v1803 = vadd.f32 %v1801, 0.0
    %v1804 = vadd.f32 %v1802, 0.0
    %1806 = vset.pattern.permute.xlu0 0
    %1807 = vperm.xlu0 %1806, %v600
    %v1808 = vpop.permute.xlu0 %1807
    %1811 = vset.pattern.permute.xlu0 0
    %1812 = vperm.xlu0 %1811, %v601
    %v1813 = vpop.permute.xlu0 %1812
    %v1815 = vmul.f32 %v486, %v1808
    %v1816 = vmul.f32 %v487, %v1813
    %v1817 = vsel %vm621, %v1815, 0.0
    %1818 = vadd.xlane.f32.xlu0 %v1817
    %v1819 = vpop.xlane.xlu0 %1818
    %v1820 = vsel %vm621, %v1816, 0.0
    %1821 = vadd.xlane.f32.xlu0 %v1820
    %v1822 = vpop.xlane.xlu0 %1821
    %v1823 = vadd.f32 %v1819, %v1822
    %v1824 = vrot.slane %v1823, 4
    %v1825 = vadd.f32 %v1823, %v1824
    %v1826 = vrot.slane %v1825, 2
    %v1827 = vadd.f32 %v1825, %v1826
    %v1828 = vrot.slane %v1827, 1
    %v1829 = vadd.f32 %v1827, %v1828
    %v1830 = vrcp.pop %v612
    %v1831 = vmul.f32 %v1829, %v1830
    %v1832 = vmul.f32 %v600, %v1831
    %v1833 = vmul.f32 %v601, %v1831
    %v1834 = vadd.f32 %v1803, %v1832
    %v1835 = vadd.f32 %v1804, %v1833
    %1837 = vset.pattern.permute.xlu0 0
    %1838 = vperm.xlu0 %1837, %v1834
    %v1839 = vpop.permute.xlu0 %1838
    %1842 = vset.pattern.permute.xlu0 0
    %1843 = vperm.xlu0 %1842, %v1835
    %v1844 = vpop.permute.xlu0 %1843
    %v1846 = vsub.f32 %v486, %v1839
    %v1847 = vsub.f32 %v487, %v1844
    %v1848 = vmul.f32 %v1846, %v1846
    %v1849 = vmul.f32 %v1847, %v1847
    %v1850 = vmul.f32 %v1848, %v1777
    %v1851 = vmul.f32 %v1849, %v1782
    %v1852 = vsel %vm621, %v1850, 0.0
    %1853 = vadd.xlane.f32.xlu0 %v1852
    %v1854 = vpop.xlane.xlu0 %1853
    %v1855 = vsel %vm621, %v1851, 0.0
    %1856 = vadd.xlane.f32.xlu0 %v1855
    %v1857 = vpop.xlane.xlu0 %1856
    %v1858 = vadd.f32 %v1854, %v1857
    %v1859 = vrot.slane %v1858, 4
    %v1860 = vadd.f32 %v1858, %v1859
    %v1861 = vrot.slane %v1860, 2
    %v1862 = vadd.f32 %v1860, %v1861
    %v1863 = vrot.slane %v1862, 1
    %v1864 = vadd.f32 %v1862, %v1863
    %v1865 = vmul.f32 %v1864, %v1799
    %v1866 = vmul.f32 %v582, %v1865
    %v1867 = vmul.f32 %v583, %v1865
    %v1868 = vadd.f32 %v1866, 0.0
    %v1869 = vadd.f32 %v1867, 0.0
    %v1870 = vmul.f32 %v1848, %v1808
    %v1871 = vmul.f32 %v1849, %v1813
    %v1872 = vsel %vm621, %v1870, 0.0
    %1873 = vadd.xlane.f32.xlu0 %v1872
    %v1874 = vpop.xlane.xlu0 %1873
    %v1875 = vsel %vm621, %v1871, 0.0
    %1876 = vadd.xlane.f32.xlu0 %v1875
    %v1877 = vpop.xlane.xlu0 %1876
    %v1878 = vadd.f32 %v1874, %v1877
    %v1879 = vrot.slane %v1878, 4
    %v1880 = vadd.f32 %v1878, %v1879
    %v1881 = vrot.slane %v1880, 2
    %v1882 = vadd.f32 %v1880, %v1881
    %v1883 = vrot.slane %v1882, 1
    %v1884 = vadd.f32 %v1882, %v1883
    %v1885 = vmul.f32 %v1884, %v1830
    %v1886 = vmul.f32 %v600, %v1885
    %v1887 = vmul.f32 %v601, %v1885
    %v1888 = vadd.f32 %v1868, %v1886
    %v1889 = vadd.f32 %v1869, %v1887
    %v1890 = vadd.f32 %v1888, 1e-05
    %v1891 = vadd.f32 %v1889, 1e-05
    %v1892 = vrsqrt.pop %v1890
    %v1893 = vrsqrt.pop %v1891
    %1895 = vset.pattern.permute.xlu0 0
    %1896 = vperm.xlu0 %1895, %v1892
    %v1897 = vpop.permute.xlu0 %1896
    %1900 = vset.pattern.permute.xlu0 0
    %1901 = vperm.xlu0 %1900, %v1893
    %v1902 = vpop.permute.xlu0 %1901
    %v1904 = vmul.f32 %v1846, %v1897
    %v1905 = vmul.f32 %v1847, %v1902
    %v1906 = vld [vmem:[#allocation15] sm:$0xff]
    %v1907 = vld [vmem:[#allocation15 + $0x8] sm:$0xff]
    %v1908 = vld [vmem:[#allocation15 + $0x10] sm:$0xff]
    %v1909 = vld [vmem:[#allocation15 + $0x18] sm:$0xff]
    %v1910 = vld [vmem:[#allocation17] sm:$0xff]
    %v1911 = vld [vmem:[#allocation17 + $0x8] sm:$0xff]
    %v1912 = vsel %vm624, %v1756, 0
    %v1914 = vsel %vm624, %v1761, 0
    %1916 = vmatprep.subr.mxu0 0.0
    %1917 = vmatpush1.msra.mxu0 %v1910
    %1918 = vmatprep.subr.mxu0 0.0
    %1919 = vmatpush1.msra.mxu0 %v1911
    %1920 = vmatprep.subr.mxu0 0.0
    %1921 = vmatpush1.msra.mxu0 0.0
    %1922 = vmatprep.subr.mxu0 0.0
    %1923 = vmatpush1.msra.mxu0 0.0
    %1924 = vmatprep.subr.mxu0 0.0
    %1925 = vmatpush1.msra.mxu0 0.0
    %1926 = vmatprep.subr.mxu0 0.0
    %1927 = vmatpush1.msra.mxu0 0.0
    %1928 = vmatprep.subr.mxu0 0.0
    %1929 = vmatpush1.msra.mxu0 0.0
    %1930 = vmatprep.subr.mxu0 0.0
    %1931 = vmatpush1.msra.mxu0 0.0
    %1932 = vmatprep.subr.mxu0 0.0
    %1933 = vmatpush1.msra.mxu0 0.0
    %1934 = vmatprep.subr.mxu0 0.0
    %1935 = vmatpush1.msra.mxu0 0.0
    %1936 = vmatprep.subr.mxu0 0.0
    %1937 = vmatpush1.msra.mxu0 0.0
    %1938 = vmatprep.subr.mxu0 0.0
    %1939 = vmatpush1.msra.mxu0 0.0
    %1940 = vmatprep.subr.mxu0 0.0
    %1941 = vmatpush1.msra.mxu0 0.0
    %1942 = vmatprep.subr.mxu0 0.0
    %1943 = vmatpush1.msra.mxu0 0.0
    %1944 = vmatprep.subr.mxu0 0.0
    %1945 = vmatpush1.msra.mxu0 0.0
    %1946 = vmatprep.subr.mxu0 0.0
    %1947 = vmatpush1.msra.mxu0 0.0
    %1948 = vmatprep.subr.mxu0 0.0
    %1949 = vmatpush1.msra.mxu0 0.0
    %1950 = vmatprep.subr.mxu0 0.0
    %1951 = vmatpush1.msra.mxu0 0.0
    %1952 = vmatprep.subr.mxu0 0.0
    %1953 = vmatpush1.msra.mxu0 0.0
    %1954 = vmatprep.subr.mxu0 0.0
    %1955 = vmatpush1.msra.mxu0 0.0
    %1956 = vmatprep.subr.mxu0 0.0
    %1957 = vmatpush1.msra.mxu0 0.0
    %1958 = vmatprep.subr.mxu0 0.0
    %1959 = vmatpush1.msra.mxu0 0.0
    %1960 = vmatprep.subr.mxu0 0.0
    %1961 = vmatpush1.msra.mxu0 0.0
    %1962 = vmatprep.subr.mxu0 0.0
    %1963 = vmatpush1.msra.mxu0 0.0
    %1964 = vmatprep.subr.mxu0 0.0
    %1965 = vmatpush1.msra.mxu0 0.0
    %1966 = vmatprep.subr.mxu0 0.0
    %1967 = vmatpush1.msra.mxu0 0.0
    %1968 = vmatprep.subr.mxu0 0.0
    %1969 = vmatpush1.msra.mxu0 0.0
    %1970 = vmatprep.subr.mxu0 0.0
    %1971 = vmatpush1.msra.mxu0 0.0
    %1972 = vmatprep.subr.mxu0 0.0
    %1973 = vmatpush1.msra.mxu0 0.0
    %1974 = vmatprep.subr.mxu0 0.0
    %1975 = vmatpush1.msra.mxu0 0.0
    %1976 = vmatprep.subr.mxu0 0.0
    %1977 = vmatpush1.msra.mxu0 0.0
    %1978 = vmatprep.subr.mxu0 0.0
    %1979 = vmatpush1.msra.mxu0 0.0
    %1980 = vmatprep.mubr.f32.mxu0 0.0
    %1981 = vmatmul.mubr.f32.gmra.mrb[0].mxu0 %v1912
    %v1982 = vpop.f32.mrb[0].mxu0
    %v1983 = vadd.f32 0.0, %v1982
    %v1984 = vpop.f32.mrb[0].mxu0
    %1985 = vmatprep.mubr.f32.mxu0 0.0
    %1986 = vmatmul.mubr.f32.gmra.mrb[0].mxu0 %v1914
    %v1987 = vpop.f32.mrb[0].mxu0
    %v1988 = vadd.f32 0.0, %v1987
    %v1989 = vpop.f32.mrb[0].mxu0
    %1990 = vdwg.mxu0
    %v1992 = vsel %vm621, %v1904, 0
    %v1995 = vsel %vm621, %v1905, 0
    %1997 = vmatprep.subr.mxu0 0.0
    %1998 = vmatpush1.msra.mxu0 %v1906
    %1999 = vmatprep.subr.mxu0 0.0
    %2000 = vmatpush1.msra.mxu0 %v1907
    %2001 = vmatprep.subr.mxu0 0.0
    %2002 = vmatpush1.msra.mxu0 %v1908
    %2003 = vmatprep.subr.mxu0 0.0
    %2004 = vmatpush1.msra.mxu0 %v1909
    %2005 = vmatprep.subr.mxu0 0.0
    %2006 = vmatpush1.msra.mxu0 0.0
    %2007 = vmatprep.subr.mxu0 0.0
    %2008 = vmatpush1.msra.mxu0 0.0
    %2009 = vmatprep.subr.mxu0 0.0
    %2010 = vmatpush1.msra.mxu0 0.0
    %2011 = vmatprep.subr.mxu0 0.0
    %2012 = vmatpush1.msra.mxu0 0.0
    %2013 = vmatprep.subr.mxu0 0.0
    %2014 = vmatpush1.msra.mxu0 0.0
    %2015 = vmatprep.subr.mxu0 0.0
    %2016 = vmatpush1.msra.mxu0 0.0
    %2017 = vmatprep.subr.mxu0 0.0
    %2018 = vmatpush1.msra.mxu0 0.0
    %2019 = vmatprep.subr.mxu0 0.0
    %2020 = vmatpush1.msra.mxu0 0.0
    %2021 = vmatprep.subr.mxu0 0.0
    %2022 = vmatpush1.msra.mxu0 0.0
    %2023 = vmatprep.subr.mxu0 0.0
    %2024 = vmatpush1.msra.mxu0 0.0
    %2025 = vmatprep.subr.mxu0 0.0
    %2026 = vmatpush1.msra.mxu0 0.0
    %2027 = vmatprep.subr.mxu0 0.0
    %2028 = vmatpush1.msra.mxu0 0.0
    %2029 = vmatprep.subr.mxu0 0.0
    %2030 = vmatpush1.msra.mxu0 0.0
    %2031 = vmatprep.subr.mxu0 0.0
    %2032 = vmatpush1.msra.mxu0 0.0
    %2033 = vmatprep.subr.mxu0 0.0
    %2034 = vmatpush1.msra.mxu0 0.0
    %2035 = vmatprep.subr.mxu0 0.0
    %2036 = vmatpush1.msra.mxu0 0.0
    %2037 = vmatprep.subr.mxu0 0.0
    %2038 = vmatpush1.msra.mxu0 0.0
    %2039 = vmatprep.subr.mxu0 0.0
    %2040 = vmatpush1.msra.mxu0 0.0
    %2041 = vmatprep.subr.mxu0 0.0
    %2042 = vmatpush1.msra.mxu0 0.0
    %2043 = vmatprep.subr.mxu0 0.0
    %2044 = vmatpush1.msra.mxu0 0.0
    %2045 = vmatprep.subr.mxu0 0.0
    %2046 = vmatpush1.msra.mxu0 0.0
    %2047 = vmatprep.subr.mxu0 0.0
    %2048 = vmatpush1.msra.mxu0 0.0
    %2049 = vmatprep.subr.mxu0 0.0
    %2050 = vmatpush1.msra.mxu0 0.0
    %2051 = vmatprep.subr.mxu0 0.0
    %2052 = vmatpush1.msra.mxu0 0.0
    %2053 = vmatprep.subr.mxu0 0.0
    %2054 = vmatpush1.msra.mxu0 0.0
    %2055 = vmatprep.subr.mxu0 0.0
    %2056 = vmatpush1.msra.mxu0 0.0
    %2057 = vmatprep.subr.mxu0 0.0
    %2058 = vmatpush1.msra.mxu0 0.0
    %2059 = vmatprep.subr.mxu0 0.0
    %2060 = vmatpush1.msra.mxu0 0.0
    %2061 = vmatprep.mubr.f32.mxu0 0.0
    %2062 = vmatmul.mubr.f32.gmra.mrb[0].mxu0 %v1992
    %v2063 = vpop.f32.mrb[0].mxu0
    %v2064 = vadd.f32 %v1983, %v2063
    %v2065 = vpop.f32.mrb[0].mxu0
    %2066 = vmatprep.mubr.f32.mxu0 0.0
    %2067 = vmatmul.mubr.f32.gmra.mrb[0].mxu0 %v1995
    %v2068 = vpop.f32.mrb[0].mxu0
    %v2069 = vadd.f32 %v1988, %v2068
    %v2070 = vpop.f32.mrb[0].mxu0
    %2071 = vdwg.mxu0
    %v2072 = vld [vmem:[%s39] sm:$0x1]
    %v2074 = vlaneseq
    %v2075 = vshrl.u32 %v2074, 7
    %v2076 = vsub.s32 0, %v2075
    %v2077 = vrot.slane %v2072, %v2076
    %v2079 = vadd.f32 %v2064, %v2077
    %v2080 = vadd.f32 %v2069, %v2077
    %v2081 = vmul.f32 %v2079, 0.5
    %v2082 = vmul.f32 %v2080, 0.5
    %v2083 = vtanh.pop %v2081
    %v2084 = vtanh.pop %v2082
    %v2085 = vmul.f32 %v2083, 0.5
    %v2086 = vmul.f32 %v2084, 0.5
    %v2087 = vadd.f32 %v2085, 0.5
    %v2088 = vadd.f32 %v2086, 0.5
    %v2089 = vmul.f32 %v2079, %v2087
    %v2090 = vmul.f32 %v2080, %v2088
    %v2091 = vld [vmem:[#allocation18] sm:$0xff]
    %v2092 = vld [vmem:[#allocation18 + $0x8] sm:$0xff]
    %v2093 = vld [vmem:[#allocation18 + $0x10] sm:$0xff]
    %v2094 = vld [vmem:[#allocation18 + $0x18] sm:$0xff]
    %v2095 = vld [vmem:[#allocation18 + $0x20] sm:$0xff]
    %v2096 = vld [vmem:[#allocation18 + $0x28] sm:$0xff]
    %v2097 = vld [vmem:[#allocation18 + $0x30] sm:$0xff]
    %v2098 = vld [vmem:[#allocation18 + $0x38] sm:$0xff]
    %v2099 = vld [vmem:[%s43] sm:$0x1]
    %v2101 = vlaneseq
    %v2102 = vshrl.u32 %v2101, 7
    %v2103 = vsub.s32 0, %v2102
    %v2104 = vrot.slane %v2099, %v2103
    %v2107 = vsel %vm1552, %v2089, 0
    %v2110 = vsel %vm1552, %v2090, 0
    %2112 = vmatprep.subr.mxu0 0.0
    %2113 = vmatpush1.msra.mxu0 %v2091
    %2114 = vmatprep.subr.mxu0 0.0
    %2115 = vmatpush1.msra.mxu0 %v2092
    %2116 = vmatprep.subr.mxu0 0.0
    %2117 = vmatpush1.msra.mxu0 %v2093
    %2118 = vmatprep.subr.mxu0 0.0
    %2119 = vmatpush1.msra.mxu0 %v2094
    %2120 = vmatprep.subr.mxu0 0.0
    %2121 = vmatpush1.msra.mxu0 %v2095
    %2122 = vmatprep.subr.mxu0 0.0
    %2123 = vmatpush1.msra.mxu0 %v2096
    %2124 = vmatprep.subr.mxu0 0.0
    %2125 = vmatpush1.msra.mxu0 %v2097
    %2126 = vmatprep.subr.mxu0 0.0
    %2127 = vmatpush1.msra.mxu0 %v2098
    %2128 = vmatprep.subr.mxu0 0.0
    %2129 = vmatpush1.msra.mxu0 0.0
    %2130 = vmatprep.subr.mxu0 0.0
    %2131 = vmatpush1.msra.mxu0 0.0
    %2132 = vmatprep.subr.mxu0 0.0
    %2133 = vmatpush1.msra.mxu0 0.0
    %2134 = vmatprep.subr.mxu0 0.0
    %2135 = vmatpush1.msra.mxu0 0.0
    %2136 = vmatprep.subr.mxu0 0.0
    %2137 = vmatpush1.msra.mxu0 0.0
    %2138 = vmatprep.subr.mxu0 0.0
    %2139 = vmatpush1.msra.mxu0 0.0
    %2140 = vmatprep.subr.mxu0 0.0
    %2141 = vmatpush1.msra.mxu0 0.0
    %2142 = vmatprep.subr.mxu0 0.0
    %2143 = vmatpush1.msra.mxu0 0.0
    %2144 = vmatprep.subr.mxu0 0.0
    %2145 = vmatpush1.msra.mxu0 0.0
    %2146 = vmatprep.subr.mxu0 0.0
    %2147 = vmatpush1.msra.mxu0 0.0
    %2148 = vmatprep.subr.mxu0 0.0
    %2149 = vmatpush1.msra.mxu0 0.0
    %2150 = vmatprep.subr.mxu0 0.0
    %2151 = vmatpush1.msra.mxu0 0.0
    %2152 = vmatprep.subr.mxu0 0.0
    %2153 = vmatpush1.msra.mxu0 0.0
    %2154 = vmatprep.subr.mxu0 0.0
    %2155 = vmatpush1.msra.mxu0 0.0
    %2156 = vmatprep.subr.mxu0 0.0
    %2157 = vmatpush1.msra.mxu0 0.0
    %2158 = vmatprep.subr.mxu0 0.0
    %2159 = vmatpush1.msra.mxu0 0.0
    %2160 = vmatprep.subr.mxu0 0.0
    %2161 = vmatpush1.msra.mxu0 0.0
    %2162 = vmatprep.subr.mxu0 0.0
    %2163 = vmatpush1.msra.mxu0 0.0
    %2164 = vmatprep.subr.mxu0 0.0
    %2165 = vmatpush1.msra.mxu0 0.0
    %2166 = vmatprep.subr.mxu0 0.0
    %2167 = vmatpush1.msra.mxu0 0.0
    %2168 = vmatprep.subr.mxu0 0.0
    %2169 = vmatpush1.msra.mxu0 0.0
    %2170 = vmatprep.subr.mxu0 0.0
    %2171 = vmatpush1.msra.mxu0 0.0
    %2172 = vmatprep.subr.mxu0 0.0
    %2173 = vmatpush1.msra.mxu0 0.0
    %2174 = vmatprep.subr.mxu0 0.0
    %2175 = vmatpush1.msra.mxu0 0.0
    %2176 = vmatprep.mubr.f32.mxu0 0.0
    %2177 = vmatmul.mubr.f32.gmra.mrb[0].mxu0 %v2107
    %v2178 = vpop.f32.mrb[0].mxu0
    %v2179 = vadd.f32 %v2104, %v2178
    %v2180 = vpop.f32.mrb[0].mxu0
    %2181 = vmatprep.mubr.f32.mxu0 0.0
    %2182 = vmatmul.mubr.f32.gmra.mrb[0].mxu0 %v2110
    %v2183 = vpop.f32.mrb[0].mxu0
    %v2184 = vadd.f32 %v2104, %v2183
    %v2185 = vpop.f32.mrb[0].mxu0
    %2186 = vdwg.mxu0
    %v2187 = vadd.f32 %v486, %v2179
    %v2188 = vadd.f32 %v487, %v2184
    %2191 = vrot.lane.b32.xlu0 %v1772, 32
    %v2192 = vpop.permute.xlu0 %2191
    %2193 = vrot.lane.b32.xlu0 %v1773, 32
    %v2194 = vpop.permute.xlu0 %2193
    %v2197 = vsel %vm621, %v2187, %v2192
    %v2198 = vsel %vm621, %v2188, %v2194
    %2199 = vmatprep.subr.mxu0 0.0
    %2200 = vmatpush1.msra.mxu0 %v2197
    %2201 = vmatprep.subr.mxu0 0.0
    %2202 = vmatpush1.msra.mxu0 %v2198
    %2203 = vmatprep.subr.mxu0 0.0
    %2204 = vmatpush1.msra.mxu0 0.0
    %2205 = vmatprep.subr.mxu0 0.0
    %2206 = vmatpush1.msra.mxu0 0.0
    %2207 = vmatprep.subr.mxu0 0.0
    %2208 = vmatpush1.msra.mxu0 0.0
    %2209 = vmatprep.subr.mxu0 0.0
    %2210 = vmatpush1.msra.mxu0 0.0
    %2211 = vmatprep.subr.mxu0 0.0
    %2212 = vmatpush1.msra.mxu0 0.0
    %2213 = vmatprep.subr.mxu0 0.0
    %2214 = vmatpush1.msra.mxu0 0.0
    %2215 = vmatprep.subr.mxu0 0.0
    %2216 = vmatpush1.msra.mxu0 0.0
    %2217 = vmatprep.subr.mxu0 0.0
    %2218 = vmatpush1.msra.mxu0 0.0
    %2219 = vmatprep.subr.mxu0 0.0
    %2220 = vmatpush1.msra.mxu0 0.0
    %2221 = vmatprep.subr.mxu0 0.0
    %2222 = vmatpush1.msra.mxu0 0.0
    %2223 = vmatprep.subr.mxu0 0.0
    %2224 = vmatpush1.msra.mxu0 0.0
    %2225 = vmatprep.subr.mxu0 0.0
    %2226 = vmatpush1.msra.mxu0 0.0
    %2227 = vmatprep.subr.mxu0 0.0
    %2228 = vmatpush1.msra.mxu0 0.0
    %2229 = vmatprep.subr.mxu0 0.0
    %2230 = vmatpush1.msra.mxu0 0.0
    %2231 = vmatprep.subr.mxu0 0.0
    %2232 = vmatpush1.msra.mxu0 0.0
    %2233 = vmatprep.subr.mxu0 0.0
    %2234 = vmatpush1.msra.mxu0 0.0
    %2235 = vmatprep.subr.mxu0 0.0
    %2236 = vmatpush1.msra.mxu0 0.0
    %2237 = vmatprep.subr.mxu0 0.0
    %2238 = vmatpush1.msra.mxu0 0.0
    %2239 = vmatprep.subr.mxu0 0.0
    %2240 = vmatpush1.msra.mxu0 0.0
    %2241 = vmatprep.subr.mxu0 0.0
    %2242 = vmatpush1.msra.mxu0 0.0
    %2243 = vmatprep.subr.mxu0 0.0
    %2244 = vmatpush1.msra.mxu0 0.0
    %2245 = vmatprep.subr.mxu0 0.0
    %2246 = vmatpush1.msra.mxu0 0.0
    %2247 = vmatprep.subr.mxu0 0.0
    %2248 = vmatpush1.msra.mxu0 0.0
    %2249 = vmatprep.subr.mxu0 0.0
    %2250 = vmatpush1.msra.mxu0 0.0
    %2251 = vmatprep.subr.mxu0 0.0
    %2252 = vmatpush1.msra.mxu0 0.0
    %2253 = vmatprep.subr.mxu0 0.0
    %2254 = vmatpush1.msra.mxu0 0.0
    %2255 = vmatprep.subr.mxu0 0.0
    %2256 = vmatpush1.msra.mxu0 0.0
    %2257 = vmatprep.subr.mxu0 0.0
    %2258 = vmatpush1.msra.mxu0 0.0
    %2259 = vmatprep.subr.mxu0 0.0
    %2260 = vmatpush1.msra.mxu0 0.0
    %2261 = vmatprep.subr.mxu0 0.0
    %2262 = vmatpush1.msra.mxu0 0.0
    %2263 = vmatprep.mubr.f32.mxu0 0.0
    %2264 = vmatmul.mubr.f32.gmra.mrb[0].mxu0 %v626
    %v2265 = vpop.f32.mrb[0].mxu0
    %v2266 = vadd.f32 0.0, %v2265
    %v2267 = vpop.f32.mrb[0].mxu0
    %2268 = vmatprep.mubr.f32.mxu0 0.0
    %2269 = vmatmul.mubr.f32.gmra.mrb[0].mxu0 %v629
    %v2270 = vpop.f32.mrb[0].mxu0
    %v2271 = vadd.f32 0.0, %v2270
    %v2272 = vpop.f32.mrb[0].mxu0
    %2273 = vmatprep.mubr.f32.mxu0 0.0
    %2274 = vmatmul.mubr.f32.gmra.mrb[0].mxu0 %v632
    %v2275 = vpop.f32.mrb[0].mxu0
    %v2276 = vadd.f32 0.0, %v2275
    %v2277 = vpop.f32.mrb[0].mxu0
    %2278 = vmatprep.mubr.f32.mxu0 0.0
    %2279 = vmatmul.mubr.f32.gmra.mrb[0].mxu0 %v635
    %v2280 = vpop.f32.mrb[0].mxu0
    %v2281 = vadd.f32 0.0, %v2280
    %v2282 = vpop.f32.mrb[0].mxu0
    %2283 = vmatprep.mubr.f32.mxu0 0.0
    %2284 = vmatmul.mubr.f32.gmra.mrb[0].mxu0 %v638
    %v2285 = vpop.f32.mrb[0].mxu0
    %v2286 = vadd.f32 0.0, %v2285
    %v2287 = vpop.f32.mrb[0].mxu0
    %2288 = vmatprep.mubr.f32.mxu0 0.0
    %2289 = vmatmul.mubr.f32.gmra.mrb[0].mxu0 %v641
    %v2290 = vpop.f32.mrb[0].mxu0
    %v2291 = vadd.f32 0.0, %v2290
    %v2292 = vpop.f32.mrb[0].mxu0
    %2293 = vmatprep.mubr.f32.mxu0 0.0
    %2294 = vmatmul.mubr.f32.gmra.mrb[0].mxu0 %v644
    %v2295 = vpop.f32.mrb[0].mxu0
    %v2296 = vadd.f32 0.0, %v2295
    %v2297 = vpop.f32.mrb[0].mxu0
    %2298 = vmatprep.mubr.f32.mxu0 0.0
    %2299 = vmatmul.mubr.f32.gmra.mrb[0].mxu0 %v647
    %v2300 = vpop.f32.mrb[0].mxu0
    %v2301 = vadd.f32 0.0, %v2300
    %v2302 = vpop.f32.mrb[0].mxu0
    %2303 = vmatprep.mubr.f32.mxu0 0.0
    %2304 = vmatmul.mubr.f32.gmra.mrb[0].mxu0 %v650
    %v2305 = vpop.f32.mrb[0].mxu0
    %v2306 = vadd.f32 0.0, %v2305
    %v2307 = vpop.f32.mrb[0].mxu0
    %2308 = vmatprep.mubr.f32.mxu0 0.0
    %2309 = vmatmul.mubr.f32.gmra.mrb[0].mxu0 %v653
    %v2310 = vpop.f32.mrb[0].mxu0
    %v2311 = vadd.f32 0.0, %v2310
    %v2312 = vpop.f32.mrb[0].mxu0
    %2313 = vmatprep.mubr.f32.mxu0 0.0
    %2314 = vmatmul.mubr.f32.gmra.mrb[0].mxu0 %v656
    %v2315 = vpop.f32.mrb[0].mxu0
    %v2316 = vadd.f32 0.0, %v2315
    %v2317 = vpop.f32.mrb[0].mxu0
    %2318 = vmatprep.mubr.f32.mxu0 0.0
    %2319 = vmatmul.mubr.f32.gmra.mrb[0].mxu0 %v659
    %v2320 = vpop.f32.mrb[0].mxu0
    %v2321 = vadd.f32 0.0, %v2320
    %v2322 = vpop.f32.mrb[0].mxu0
    %2323 = vdwg.mxu0
    %v2324 = vsub.f32 %v2266, %v2296
    %v2325 = vsub.f32 %v2271, %v2301
    %v2326 = vsub.f32 %v2276, %v2306
    %v2327 = vsub.f32 %v2281, %v2311
    %v2328 = vsub.f32 %v2286, %v2316
    %v2329 = vsub.f32 %v2291, %v2321
    %v2330 = vmul.f32 %v2324, %v2324
    %v2331 = vmul.f32 %v2325, %v2325
    %v2332 = vmul.f32 %v2326, %v2326
    %v2333 = vmul.f32 %v2327, %v2327
    %v2334 = vmul.f32 %v2328, %v2328
    %v2335 = vmul.f32 %v2329, %v2329
    %2342 = vrot.lane.b32.xlu0 %v2330, 96
    %v2343 = vpop.permute.xlu0 %2342
    %2344 = vrot.lane.b32.xlu0 %v2331, 96
    %v2345 = vpop.permute.xlu0 %2344
    %2346 = vrot.lane.b32.xlu0 %v2332, 96
    %v2347 = vpop.permute.xlu0 %2346
    %2348 = vrot.lane.b32.xlu0 %v2333, 96
    %v2349 = vpop.permute.xlu0 %2348
    %2350 = vrot.lane.b32.xlu0 %v2334, 96
    %v2351 = vpop.permute.xlu0 %2350
    %2352 = vrot.lane.b32.xlu0 %v2335, 96
    %v2353 = vpop.permute.xlu0 %2352
    %v2360 = vsel %vm822, %v2343, 0.0
    %2361 = vadd.xlane.f32.xlu0 %v2360
    %v2362 = vpop.xlane.xlu0 %2361
    %v2363 = vsel %vm822, %v2345, 0.0
    %2364 = vadd.xlane.f32.xlu0 %v2363
    %v2365 = vpop.xlane.xlu0 %2364
    %v2366 = vsel %vm822, %v2347, 0.0
    %2367 = vadd.xlane.f32.xlu0 %v2366
    %v2368 = vpop.xlane.xlu0 %2367
    %v2369 = vsel %vm822, %v2349, 0.0
    %2370 = vadd.xlane.f32.xlu0 %v2369
    %v2371 = vpop.xlane.xlu0 %2370
    %v2372 = vsel %vm822, %v2351, 0.0
    %2373 = vadd.xlane.f32.xlu0 %v2372
    %v2374 = vpop.xlane.xlu0 %2373
    %v2375 = vsel %vm822, %v2353, 0.0
    %2376 = vadd.xlane.f32.xlu0 %v2375
    %v2377 = vpop.xlane.xlu0 %2376
    %v2378 = vld [vmem:[#allocation20] sm:$0xff]
    %v2379 = vld [vmem:[#allocation20 + $0x8] sm:$0xff]
    %v2380 = vld [vmem:[#allocation20 + $0x10] sm:$0xff]
    %v2381 = vld [vmem:[#allocation20 + $0x18] sm:$0xff]
    %v2382 = vld [vmem:[#allocation20 + $0x20] sm:$0xff]
    %v2383 = vld [vmem:[#allocation20 + $0x28] sm:$0xff]
    %v2384 = vld [vmem:[#allocation20 + $0x30] sm:$0xff]
    %v2385 = vld [vmem:[#allocation20 + $0x38] sm:$0xff]
    %v2386 = vld [vmem:[#allocation21] sm:$0xff]
    %v2387 = vld [vmem:[#allocation21 + $0x8] sm:$0xff]
    %v2388 = vld [vmem:[#allocation21 + $0x10] sm:$0xff]
    %v2389 = vld [vmem:[#allocation21 + $0x18] sm:$0xff]
    %v2390 = vld [vmem:[#allocation21 + $0x20] sm:$0xff]
    %v2391 = vld [vmem:[#allocation21 + $0x28] sm:$0xff]
    %v2392 = vld [vmem:[#allocation21 + $0x30] sm:$0xff]
    %v2393 = vld [vmem:[#allocation21 + $0x38] sm:$0xff]
    %v2395 = vsel %vm621, %v2266, 0
    %v2398 = vsel %vm621, %v2271, 0
    %v2401 = vsel %vm621, %v2276, 0
    %v2404 = vsel %vm621, %v2281, 0
    %v2407 = vsel %vm621, %v2286, 0
    %v2410 = vsel %vm621, %v2291, 0
    %2412 = vmatprep.subr.mxu0 %v2387
    %2413 = vmatpush1.msra.mxu0 %v2386
    %2414 = vmatprep.subr.mxu0 %v2389
    %2415 = vmatpush1.msra.mxu0 %v2388
    %2416 = vmatprep.subr.mxu0 %v2391
    %2417 = vmatpush1.msra.mxu0 %v2390
    %2418 = vmatprep.subr.mxu0 %v2393
    %2419 = vmatpush1.msra.mxu0 %v2392
    %2420 = vmatprep.subr.mxu0 0.0
    %2421 = vmatpush1.msra.mxu0 0.0
    %2422 = vmatprep.subr.mxu0 0.0
    %2423 = vmatpush1.msra.mxu0 0.0
    %2424 = vmatprep.subr.mxu0 0.0
    %2425 = vmatpush1.msra.mxu0 0.0
    %2426 = vmatprep.subr.mxu0 0.0
    %2427 = vmatpush1.msra.mxu0 0.0
    %2428 = vmatprep.subr.mxu0 0.0
    %2429 = vmatpush1.msra.mxu0 0.0
    %2430 = vmatprep.subr.mxu0 0.0
    %2431 = vmatpush1.msra.mxu0 0.0
    %2432 = vmatprep.subr.mxu0 0.0
    %2433 = vmatpush1.msra.mxu0 0.0
    %2434 = vmatprep.subr.mxu0 0.0
    %2435 = vmatpush1.msra.mxu0 0.0
    %2436 = vmatprep.subr.mxu0 0.0
    %2437 = vmatpush1.msra.mxu0 0.0
    %2438 = vmatprep.subr.mxu0 0.0
    %2439 = vmatpush1.msra.mxu0 0.0
    %2440 = vmatprep.subr.mxu0 0.0
    %2441 = vmatpush1.msra.mxu0 0.0
    %2442 = vmatprep.subr.mxu0 0.0
    %2443 = vmatpush1.msra.mxu0 0.0
    %2444 = vmatprep.subr.mxu0 0.0
    %2445 = vmatpush1.msra.mxu0 0.0
    %2446 = vmatprep.subr.mxu0 0.0
    %2447 = vmatpush1.msra.mxu0 0.0
    %2448 = vmatprep.subr.mxu0 0.0
    %2449 = vmatpush1.msra.mxu0 0.0
    %2450 = vmatprep.subr.mxu0 0.0
    %2451 = vmatpush1.msra.mxu0 0.0
    %2452 = vmatprep.subr.mxu0 0.0
    %2453 = vmatpush1.msra.mxu0 0.0
    %2454 = vmatprep.subr.mxu0 0.0
    %2455 = vmatpush1.msra.mxu0 0.0
    %2456 = vmatprep.subr.mxu0 0.0
    %2457 = vmatpush1.msra.mxu0 0.0
    %2458 = vmatprep.subr.mxu0 0.0
    %2459 = vmatpush1.msra.mxu0 0.0
    %2460 = vmatprep.subr.mxu0 0.0
    %2461 = vmatpush1.msra.mxu0 0.0
    %2462 = vmatprep.subr.mxu0 0.0
    %2463 = vmatpush1.msra.mxu0 0.0
    %2464 = vmatprep.subr.mxu0 0.0
    %2465 = vmatpush1.msra.mxu0 0.0
    %2466 = vmatprep.subr.mxu0 0.0
    %2467 = vmatpush1.msra.mxu0 0.0
    %2468 = vmatprep.subr.mxu0 0.0
    %2469 = vmatpush1.msra.mxu0 0.0
    %2470 = vmatprep.subr.mxu0 0.0
    %2471 = vmatpush1.msra.mxu0 0.0
    %2472 = vmatprep.subr.mxu0 0.0
    %2473 = vmatpush1.msra.mxu0 0.0
    %2474 = vmatprep.subr.mxu0 0.0
    %2475 = vmatpush1.msra.mxu0 0.0
    %2476 = vmatprep.mubr.f32.mxu0 0.0
    %2477 = vmatmul.mubr.f32.gmra.mrb[0].mxu0 %v2395
    %v2478 = vpop.f32.mrb[0].mxu0
    %v2479 = vadd.f32 0.0, %v2478
    %v2480 = vpop.f32.mrb[0].mxu0
    %v2481 = vadd.f32 0.0, %v2480
    %2482 = vmatprep.mubr.f32.mxu0 0.0
    %2483 = vmatmul.mubr.f32.gmra.mrb[0].mxu0 %v2398
    %v2484 = vpop.f32.mrb[0].mxu0
    %v2485 = vadd.f32 0.0, %v2484
    %v2486 = vpop.f32.mrb[0].mxu0
    %v2487 = vadd.f32 0.0, %v2486
    %2488 = vmatprep.mubr.f32.mxu0 0.0
    %2489 = vmatmul.mubr.f32.gmra.mrb[0].mxu0 %v2401
    %v2490 = vpop.f32.mrb[0].mxu0
    %v2491 = vadd.f32 0.0, %v2490
    %v2492 = vpop.f32.mrb[0].mxu0
    %v2493 = vadd.f32 0.0, %v2492
    %2494 = vmatprep.mubr.f32.mxu0 0.0
    %2495 = vmatmul.mubr.f32.gmra.mrb[0].mxu0 %v2404
    %v2496 = vpop.f32.mrb[0].mxu0
    %v2497 = vadd.f32 0.0, %v2496
    %v2498 = vpop.f32.mrb[0].mxu0
    %v2499 = vadd.f32 0.0, %v2498
    %2500 = vmatprep.mubr.f32.mxu0 0.0
    %2501 = vmatmul.mubr.f32.gmra.mrb[0].mxu0 %v2407
    %v2502 = vpop.f32.mrb[0].mxu0
    %v2503 = vadd.f32 0.0, %v2502
    %v2504 = vpop.f32.mrb[0].mxu0
    %v2505 = vadd.f32 0.0, %v2504
    %2506 = vmatprep.mubr.f32.mxu0 0.0
    %2507 = vmatmul.mubr.f32.gmra.mrb[0].mxu0 %v2410
    %v2508 = vpop.f32.mrb[0].mxu0
    %v2509 = vadd.f32 0.0, %v2508
    %v2510 = vpop.f32.mrb[0].mxu0
    %v2511 = vadd.f32 0.0, %v2510
    %2512 = vdwg.mxu0
    %v2514 = vsel %vm621, %v2296, 0
    %v2517 = vsel %vm621, %v2301, 0
    %v2520 = vsel %vm621, %v2306, 0
    %v2523 = vsel %vm621, %v2311, 0
    %v2526 = vsel %vm621, %v2316, 0
    %v2529 = vsel %vm621, %v2321, 0
    %2531 = vmatprep.subr.mxu0 %v2379
    %2532 = vmatpush1.msra.mxu0 %v2378
    %2533 = vmatprep.subr.mxu0 %v2381
    %2534 = vmatpush1.msra.mxu0 %v2380
    %2535 = vmatprep.subr.mxu0 %v2383
    %2536 = vmatpush1.msra.mxu0 %v2382
    %2537 = vmatprep.subr.mxu0 %v2385
    %2538 = vmatpush1.msra.mxu0 %v2384
    %2539 = vmatprep.subr.mxu0 0.0
    %2540 = vmatpush1.msra.mxu0 0.0
    %2541 = vmatprep.subr.mxu0 0.0
    %2542 = vmatpush1.msra.mxu0 0.0
    %2543 = vmatprep.subr.mxu0 0.0
    %2544 = vmatpush1.msra.mxu0 0.0
    %2545 = vmatprep.subr.mxu0 0.0
    %2546 = vmatpush1.msra.mxu0 0.0
    %2547 = vmatprep.subr.mxu0 0.0
    %2548 = vmatpush1.msra.mxu0 0.0
    %2549 = vmatprep.subr.mxu0 0.0
    %2550 = vmatpush1.msra.mxu0 0.0
    %2551 = vmatprep.subr.mxu0 0.0
    %2552 = vmatpush1.msra.mxu0 0.0
    %2553 = vmatprep.subr.mxu0 0.0
    %2554 = vmatpush1.msra.mxu0 0.0
    %2555 = vmatprep.subr.mxu0 0.0
    %2556 = vmatpush1.msra.mxu0 0.0
    %2557 = vmatprep.subr.mxu0 0.0
    %2558 = vmatpush1.msra.mxu0 0.0
    %2559 = vmatprep.subr.mxu0 0.0
    %2560 = vmatpush1.msra.mxu0 0.0
    %2561 = vmatprep.subr.mxu0 0.0
    %2562 = vmatpush1.msra.mxu0 0.0
    %2563 = vmatprep.subr.mxu0 0.0
    %2564 = vmatpush1.msra.mxu0 0.0
    %2565 = vmatprep.subr.mxu0 0.0
    %2566 = vmatpush1.msra.mxu0 0.0
    %2567 = vmatprep.subr.mxu0 0.0
    %2568 = vmatpush1.msra.mxu0 0.0
    %2569 = vmatprep.subr.mxu0 0.0
    %2570 = vmatpush1.msra.mxu0 0.0
    %2571 = vmatprep.subr.mxu0 0.0
    %2572 = vmatpush1.msra.mxu0 0.0
    %2573 = vmatprep.subr.mxu0 0.0
    %2574 = vmatpush1.msra.mxu0 0.0
    %2575 = vmatprep.subr.mxu0 0.0
    %2576 = vmatpush1.msra.mxu0 0.0
    %2577 = vmatprep.subr.mxu0 0.0
    %2578 = vmatpush1.msra.mxu0 0.0
    %2579 = vmatprep.subr.mxu0 0.0
    %2580 = vmatpush1.msra.mxu0 0.0
    %2581 = vmatprep.subr.mxu0 0.0
    %2582 = vmatpush1.msra.mxu0 0.0
    %2583 = vmatprep.subr.mxu0 0.0
    %2584 = vmatpush1.msra.mxu0 0.0
    %2585 = vmatprep.subr.mxu0 0.0
    %2586 = vmatpush1.msra.mxu0 0.0
    %2587 = vmatprep.subr.mxu0 0.0
    %2588 = vmatpush1.msra.mxu0 0.0
    %2589 = vmatprep.subr.mxu0 0.0
    %2590 = vmatpush1.msra.mxu0 0.0
    %2591 = vmatprep.subr.mxu0 0.0
    %2592 = vmatpush1.msra.mxu0 0.0
    %2593 = vmatprep.subr.mxu0 0.0
    %2594 = vmatpush1.msra.mxu0 0.0
    %2595 = vmatprep.mubr.f32.mxu0 0.0
    %2596 = vmatmul.mubr.f32.gmra.mrb[0].mxu0 %v2514
    %v2597 = vpop.f32.mrb[0].mxu0
    %v2598 = vadd.f32 %v2479, %v2597
    %v2599 = vpop.f32.mrb[0].mxu0
    %v2600 = vadd.f32 %v2481, %v2599
    %2601 = vmatprep.mubr.f32.mxu0 0.0
    %2602 = vmatmul.mubr.f32.gmra.mrb[0].mxu0 %v2517
    %v2603 = vpop.f32.mrb[0].mxu0
    %v2604 = vadd.f32 %v2485, %v2603
    %v2605 = vpop.f32.mrb[0].mxu0
    %v2606 = vadd.f32 %v2487, %v2605
    %2607 = vmatprep.mubr.f32.mxu0 0.0
    %2608 = vmatmul.mubr.f32.gmra.mrb[0].mxu0 %v2520
    %v2609 = vpop.f32.mrb[0].mxu0
    %v2610 = vadd.f32 %v2491, %v2609
    %v2611 = vpop.f32.mrb[0].mxu0
    %v2612 = vadd.f32 %v2493, %v2611
    %2613 = vmatprep.mubr.f32.mxu0 0.0
    %2614 = vmatmul.mubr.f32.gmra.mrb[0].mxu0 %v2523
    %v2615 = vpop.f32.mrb[0].mxu0
    %v2616 = vadd.f32 %v2497, %v2615
    %v2617 = vpop.f32.mrb[0].mxu0
    %v2618 = vadd.f32 %v2499, %v2617
    %2619 = vmatprep.mubr.f32.mxu0 0.0
    %2620 = vmatmul.mubr.f32.gmra.mrb[0].mxu0 %v2526
    %v2621 = vpop.f32.mrb[0].mxu0
    %v2622 = vadd.f32 %v2503, %v2621
    %v2623 = vpop.f32.mrb[0].mxu0
    %v2624 = vadd.f32 %v2505, %v2623
    %2625 = vmatprep.mubr.f32.mxu0 0.0
    %2626 = vmatmul.mubr.f32.gmra.mrb[0].mxu0 %v2529
    %v2627 = vpop.f32.mrb[0].mxu0
    %v2628 = vadd.f32 %v2509, %v2627
    %v2629 = vpop.f32.mrb[0].mxu0
    %v2630 = vadd.f32 %v2511, %v2629
    %2631 = vdwg.mxu0
    %v2632 = vld [vmem:[#allocation23] sm:$0x3]
    %v2634 = vlaneseq
    %v2635 = vshrl.u32 %v2634, 7
    %v2636 = vsub.s32 0, %v2635
    %v2637 = vrot.slane %v2632, %v2636
    %v2638 = vlaneseq
    %v2639 = vshrl.u32 %v2638, 7
    %v2640 = vsub.s32 1, %v2639
    %v2641 = vrot.slane %v2632, %v2640
    %v2644 = vmul.f32 %v2362, %v2637
    %v2645 = vmul.f32 %v2362, %v2641
    %v2646 = vmul.f32 %v2365, %v2637
    %v2647 = vmul.f32 %v2365, %v2641
    %v2648 = vmul.f32 %v2368, %v2637
    %v2649 = vmul.f32 %v2368, %v2641
    %v2650 = vmul.f32 %v2371, %v2637
    %v2651 = vmul.f32 %v2371, %v2641
    %v2652 = vmul.f32 %v2374, %v2637
    %v2653 = vmul.f32 %v2374, %v2641
    %v2654 = vmul.f32 %v2377, %v2637
    %v2655 = vmul.f32 %v2377, %v2641
    %v2656 = vadd.f32 %v2598, %v2644
    %v2657 = vadd.f32 %v2600, %v2645
    %v2658 = vadd.f32 %v2604, %v2646
    %v2659 = vadd.f32 %v2606, %v2647
    %v2660 = vadd.f32 %v2610, %v2648
    %v2661 = vadd.f32 %v2612, %v2649
    %v2662 = vadd.f32 %v2616, %v2650
    %v2663 = vadd.f32 %v2618, %v2651
    %v2664 = vadd.f32 %v2622, %v2652
    %v2665 = vadd.f32 %v2624, %v2653
    %v2666 = vadd.f32 %v2628, %v2654
    %v2667 = vadd.f32 %v2630, %v2655
    %v2668 = vld [vmem:[%s51] sm:$0x3]
    %v2670 = vlaneseq
    %v2671 = vshrl.u32 %v2670, 7
    %v2672 = vsub.s32 0, %v2671
    %v2673 = vrot.slane %v2668, %v2672
    %v2674 = vlaneseq
    %v2675 = vshrl.u32 %v2674, 7
    %v2676 = vsub.s32 1, %v2675
    %v2677 = vrot.slane %v2668, %v2676
    %v2680 = vadd.f32 %v2656, %v2673
    %v2681 = vadd.f32 %v2657, %v2677
    %v2682 = vadd.f32 %v2658, %v2673
    %v2683 = vadd.f32 %v2659, %v2677
    %v2684 = vadd.f32 %v2660, %v2673
    %v2685 = vadd.f32 %v2661, %v2677
    %v2686 = vadd.f32 %v2662, %v2673
    %v2687 = vadd.f32 %v2663, %v2677
    %v2688 = vadd.f32 %v2664, %v2673
    %v2689 = vadd.f32 %v2665, %v2677
    %v2690 = vadd.f32 %v2666, %v2673
    %v2691 = vadd.f32 %v2667, %v2677
    %v2692 = vmul.f32 %v2680, 0.5
    %v2693 = vmul.f32 %v2681, 0.5
    %v2694 = vmul.f32 %v2682, 0.5
    %v2695 = vmul.f32 %v2683, 0.5
    %v2696 = vmul.f32 %v2684, 0.5
    %v2697 = vmul.f32 %v2685, 0.5
    %v2698 = vmul.f32 %v2686, 0.5
    %v2699 = vmul.f32 %v2687, 0.5
    %v2700 = vmul.f32 %v2688, 0.5
    %v2701 = vmul.f32 %v2689, 0.5
    %v2702 = vmul.f32 %v2690, 0.5
    %v2703 = vmul.f32 %v2691, 0.5
    %v2704 = vtanh.pop %v2692
    %v2705 = vtanh.pop %v2693
    %v2706 = vtanh.pop %v2694
    %v2707 = vtanh.pop %v2695
    %v2708 = vtanh.pop %v2696
    %v2709 = vtanh.pop %v2697
    %v2710 = vtanh.pop %v2698
    %v2711 = vtanh.pop %v2699
    %v2712 = vtanh.pop %v2700
    %v2713 = vtanh.pop %v2701
    %v2714 = vtanh.pop %v2702
    %v2715 = vtanh.pop %v2703
    %v2716 = vmul.f32 %v2704, 0.5
    %v2717 = vmul.f32 %v2705, 0.5
    %v2718 = vmul.f32 %v2706, 0.5
    %v2719 = vmul.f32 %v2707, 0.5
    %v2720 = vmul.f32 %v2708, 0.5
    %v2721 = vmul.f32 %v2709, 0.5
    %v2722 = vmul.f32 %v2710, 0.5
    %v2723 = vmul.f32 %v2711, 0.5
    %v2724 = vmul.f32 %v2712, 0.5
    %v2725 = vmul.f32 %v2713, 0.5
    %v2726 = vmul.f32 %v2714, 0.5
    %v2727 = vmul.f32 %v2715, 0.5
    %v2728 = vadd.f32 %v2716, 0.5
    %v2729 = vadd.f32 %v2717, 0.5
    %v2730 = vadd.f32 %v2718, 0.5
    %v2731 = vadd.f32 %v2719, 0.5
    %v2732 = vadd.f32 %v2720, 0.5
    %v2733 = vadd.f32 %v2721, 0.5
    %v2734 = vadd.f32 %v2722, 0.5
    %v2735 = vadd.f32 %v2723, 0.5
    %v2736 = vadd.f32 %v2724, 0.5
    %v2737 = vadd.f32 %v2725, 0.5
    %v2738 = vadd.f32 %v2726, 0.5
    %v2739 = vadd.f32 %v2727, 0.5
    %v2740 = vmul.f32 %v2680, %v2728
    %v2741 = vmul.f32 %v2681, %v2729
    %v2742 = vmul.f32 %v2682, %v2730
    %v2743 = vmul.f32 %v2683, %v2731
    %v2744 = vmul.f32 %v2684, %v2732
    %v2745 = vmul.f32 %v2685, %v2733
    %v2746 = vmul.f32 %v2686, %v2734
    %v2747 = vmul.f32 %v2687, %v2735
    %v2748 = vmul.f32 %v2688, %v2736
    %v2749 = vmul.f32 %v2689, %v2737
    %v2750 = vmul.f32 %v2690, %v2738
    %v2751 = vmul.f32 %v2691, %v2739
    %v2752 = vld [vmem:[%s53] sm:$0xff]
    %v2753 = vld [vmem:[%s53 + $0x8] sm:$0xff]
    %v2754 = vld [vmem:[%s53 + $0x10] sm:$0xff]
    %v2755 = vld [vmem:[%s53 + $0x18] sm:$0xff]
    %v2756 = vld [vmem:[%s53 + $0x20] sm:$0xff]
    %v2757 = vld [vmem:[%s53 + $0x28] sm:$0xff]
    %v2758 = vld [vmem:[%s53 + $0x30] sm:$0xff]
    %v2759 = vld [vmem:[%s53 + $0x38] sm:$0xff]
    %v2760 = vld [vmem:[%s53 + $0x40] sm:$0xff]
    %v2761 = vld [vmem:[%s53 + $0x48] sm:$0xff]
    %v2762 = vld [vmem:[%s53 + $0x50] sm:$0xff]
    %v2763 = vld [vmem:[%s53 + $0x58] sm:$0xff]
    %v2764 = vld [vmem:[%s53 + $0x60] sm:$0xff]
    %v2765 = vld [vmem:[%s53 + $0x68] sm:$0xff]
    %v2766 = vld [vmem:[%s53 + $0x70] sm:$0xff]
    %v2767 = vld [vmem:[%s53 + $0x78] sm:$0xff]
    %v2768 = vld [vmem:[%s53 + $0x80] sm:$0x3]
    %v2769 = vld [vmem:[%s55] sm:$0x1]
    %v2771 = vlaneseq
    %v2772 = vshrl.u32 %v2771, 7
    %v2773 = vsub.s32 0, %v2772
    %v2774 = vrot.slane %v2769, %v2773
    %v2777 = vsel %vm1239, %v2741, 0
    %v2780 = vsel %vm1239, %v2743, 0
    %v2783 = vsel %vm1239, %v2745, 0
    %v2786 = vsel %vm1239, %v2747, 0
    %v2789 = vsel %vm1239, %v2749, 0
    %v2792 = vsel %vm1239, %v2751, 0
    %v2795 = vsel %vm1258, %v2768, 0
    %2797 = vmatprep.subr.mxu0 0.0
    %2798 = vmatpush1.msra.mxu0 %v2752
    %2799 = vmatprep.subr.mxu0 0.0
    %2800 = vmatpush1.msra.mxu0 %v2753
    %2801 = vmatprep.subr.mxu0 0.0
    %2802 = vmatpush1.msra.mxu0 %v2754
    %2803 = vmatprep.subr.mxu0 0.0
    %2804 = vmatpush1.msra.mxu0 %v2755
    %2805 = vmatprep.subr.mxu0 0.0
    %2806 = vmatpush1.msra.mxu0 %v2756
    %2807 = vmatprep.subr.mxu0 0.0
    %2808 = vmatpush1.msra.mxu0 %v2757
    %2809 = vmatprep.subr.mxu0 0.0
    %2810 = vmatpush1.msra.mxu0 %v2758
    %2811 = vmatprep.subr.mxu0 0.0
    %2812 = vmatpush1.msra.mxu0 %v2759
    %2813 = vmatprep.subr.mxu0 0.0
    %2814 = vmatpush1.msra.mxu0 %v2760
    %2815 = vmatprep.subr.mxu0 0.0
    %2816 = vmatpush1.msra.mxu0 %v2761
    %2817 = vmatprep.subr.mxu0 0.0
    %2818 = vmatpush1.msra.mxu0 %v2762
    %2819 = vmatprep.subr.mxu0 0.0
    %2820 = vmatpush1.msra.mxu0 %v2763
    %2821 = vmatprep.subr.mxu0 0.0
    %2822 = vmatpush1.msra.mxu0 %v2764
    %2823 = vmatprep.subr.mxu0 0.0
    %2824 = vmatpush1.msra.mxu0 %v2765
    %2825 = vmatprep.subr.mxu0 0.0
    %2826 = vmatpush1.msra.mxu0 %v2766
    %2827 = vmatprep.subr.mxu0 0.0
    %2828 = vmatpush1.msra.mxu0 %v2767
    %2829 = vmatprep.subr.mxu0 0.0
    %2830 = vmatpush1.msra.mxu0 %v2795
    %2831 = vmatprep.subr.mxu0 0.0
    %2832 = vmatpush1.msra.mxu0 0.0
    %2833 = vmatprep.subr.mxu0 0.0
    %2834 = vmatpush1.msra.mxu0 0.0
    %2835 = vmatprep.subr.mxu0 0.0
    %2836 = vmatpush1.msra.mxu0 0.0
    %2837 = vmatprep.subr.mxu0 0.0
    %2838 = vmatpush1.msra.mxu0 0.0
    %2839 = vmatprep.subr.mxu0 0.0
    %2840 = vmatpush1.msra.mxu0 0.0
    %2841 = vmatprep.subr.mxu0 0.0
    %2842 = vmatpush1.msra.mxu0 0.0
    %2843 = vmatprep.subr.mxu0 0.0
    %2844 = vmatpush1.msra.mxu0 0.0
    %2845 = vmatprep.subr.mxu0 0.0
    %2846 = vmatpush1.msra.mxu0 0.0
    %2847 = vmatprep.subr.mxu0 0.0
    %2848 = vmatpush1.msra.mxu0 0.0
    %2849 = vmatprep.subr.mxu0 0.0
    %2850 = vmatpush1.msra.mxu0 0.0
    %2851 = vmatprep.subr.mxu0 0.0
    %2852 = vmatpush1.msra.mxu0 0.0
    %2853 = vmatprep.subr.mxu0 0.0
    %2854 = vmatpush1.msra.mxu0 0.0
    %2855 = vmatprep.subr.mxu0 0.0
    %2856 = vmatpush1.msra.mxu0 0.0
    %2857 = vmatprep.subr.mxu0 0.0
    %2858 = vmatpush1.msra.mxu0 0.0
    %2859 = vmatprep.subr.mxu0 0.0
    %2860 = vmatpush1.msra.mxu0 0.0
    %2861 = vmatprep.mubr.f32.mxu0 %v2777
    %2862 = vmatmul.mubr.f32.gmra.mrb[0].mxu0 %v2740
    %v2863 = vpop.f32.mrb[0].mxu0
    %v2864 = vadd.f32 %v2774, %v2863
    %v2865 = vpop.f32.mrb[0].mxu0
    %2866 = vmatprep.mubr.f32.mxu0 %v2780
    %2867 = vmatmul.mubr.f32.gmra.mrb[0].mxu0 %v2742
    %v2868 = vpop.f32.mrb[0].mxu0
    %v2869 = vadd.f32 %v2774, %v2868
    %v2870 = vpop.f32.mrb[0].mxu0
    %2871 = vmatprep.mubr.f32.mxu0 %v2783
    %2872 = vmatmul.mubr.f32.gmra.mrb[0].mxu0 %v2744
    %v2873 = vpop.f32.mrb[0].mxu0
    %v2874 = vadd.f32 %v2774, %v2873
    %v2875 = vpop.f32.mrb[0].mxu0
    %2876 = vmatprep.mubr.f32.mxu0 %v2786
    %2877 = vmatmul.mubr.f32.gmra.mrb[0].mxu0 %v2746
    %v2878 = vpop.f32.mrb[0].mxu0
    %v2879 = vadd.f32 %v2774, %v2878
    %v2880 = vpop.f32.mrb[0].mxu0
    %2881 = vmatprep.mubr.f32.mxu0 %v2789
    %2882 = vmatmul.mubr.f32.gmra.mrb[0].mxu0 %v2748
    %v2883 = vpop.f32.mrb[0].mxu0
    %v2884 = vadd.f32 %v2774, %v2883
    %v2885 = vpop.f32.mrb[0].mxu0
    %2886 = vmatprep.mubr.f32.mxu0 %v2792
    %2887 = vmatmul.mubr.f32.gmra.mrb[0].mxu0 %v2750
    %v2888 = vpop.f32.mrb[0].mxu0
    %v2889 = vadd.f32 %v2774, %v2888
    %v2890 = vpop.f32.mrb[0].mxu0
    %2891 = vdwg.mxu0
    %v2892 = vmul.f32 %v2864, 0.5
    %v2893 = vmul.f32 %v2869, 0.5
    %v2894 = vmul.f32 %v2874, 0.5
    %v2895 = vmul.f32 %v2879, 0.5
    %v2896 = vmul.f32 %v2884, 0.5
    %v2897 = vmul.f32 %v2889, 0.5
    %v2898 = vtanh.pop %v2892
    %v2899 = vtanh.pop %v2893
    %v2900 = vtanh.pop %v2894
    %v2901 = vtanh.pop %v2895
    %v2902 = vtanh.pop %v2896
    %v2903 = vtanh.pop %v2897
    %v2904 = vmul.f32 %v2898, 0.5
    %v2905 = vmul.f32 %v2899, 0.5
    %v2906 = vmul.f32 %v2900, 0.5
    %v2907 = vmul.f32 %v2901, 0.5
    %v2908 = vmul.f32 %v2902, 0.5
    %v2909 = vmul.f32 %v2903, 0.5
    %v2910 = vadd.f32 %v2904, 0.5
    %v2911 = vadd.f32 %v2905, 0.5
    %v2912 = vadd.f32 %v2906, 0.5
    %v2913 = vadd.f32 %v2907, 0.5
    %v2914 = vadd.f32 %v2908, 0.5
    %v2915 = vadd.f32 %v2909, 0.5
    %v2916 = vmul.f32 %v2864, %v2910
    %v2917 = vmul.f32 %v2869, %v2911
    %v2918 = vmul.f32 %v2874, %v2912
    %v2919 = vmul.f32 %v2879, %v2913
    %v2920 = vmul.f32 %v2884, %v2914
    %v2921 = vmul.f32 %v2889, %v2915
    %v2922 = vld [vmem:[#allocation24] sm:$0xff]
    %v2923 = vld [vmem:[#allocation24 + $0x8] sm:$0xff]
    %v2924 = vld [vmem:[%s59] sm:$0x1]
    %v2926 = vlaneseq
    %v2927 = vshrl.u32 %v2926, 7
    %v2928 = vsub.s32 0, %v2927
    %v2929 = vrot.slane %v2924, %v2928
    %v2932 = vsel %vm624, %v2916, 0
    %v2935 = vsel %vm624, %v2917, 0
    %v2938 = vsel %vm624, %v2918, 0
    %v2941 = vsel %vm624, %v2919, 0
    %v2944 = vsel %vm624, %v2920, 0
    %v2947 = vsel %vm624, %v2921, 0
    %2949 = vmatprep.subr.mxu0 0.0
    %2950 = vmatpush1.msra.mxu0 %v2922
    %2951 = vmatprep.subr.mxu0 0.0
    %2952 = vmatpush1.msra.mxu0 %v2923
    %2953 = vmatprep.subr.mxu0 0.0
    %2954 = vmatpush1.msra.mxu0 0.0
    %2955 = vmatprep.subr.mxu0 0.0
    %2956 = vmatpush1.msra.mxu0 0.0
    %2957 = vmatprep.subr.mxu0 0.0
    %2958 = vmatpush1.msra.mxu0 0.0
    %2959 = vmatprep.subr.mxu0 0.0
    %2960 = vmatpush1.msra.mxu0 0.0
    %2961 = vmatprep.subr.mxu0 0.0
    %2962 = vmatpush1.msra.mxu0 0.0
    %2963 = vmatprep.subr.mxu0 0.0
    %2964 = vmatpush1.msra.mxu0 0.0
    %2965 = vmatprep.subr.mxu0 0.0
    %2966 = vmatpush1.msra.mxu0 0.0
    %2967 = vmatprep.subr.mxu0 0.0
    %2968 = vmatpush1.msra.mxu0 0.0
    %2969 = vmatprep.subr.mxu0 0.0
    %2970 = vmatpush1.msra.mxu0 0.0
    %2971 = vmatprep.subr.mxu0 0.0
    %2972 = vmatpush1.msra.mxu0 0.0
    %2973 = vmatprep.subr.mxu0 0.0
    %2974 = vmatpush1.msra.mxu0 0.0
    %2975 = vmatprep.subr.mxu0 0.0
    %2976 = vmatpush1.msra.mxu0 0.0
    %2977 = vmatprep.subr.mxu0 0.0
    %2978 = vmatpush1.msra.mxu0 0.0
    %2979 = vmatprep.subr.mxu0 0.0
    %2980 = vmatpush1.msra.mxu0 0.0
    %2981 = vmatprep.subr.mxu0 0.0
    %2982 = vmatpush1.msra.mxu0 0.0
    %2983 = vmatprep.subr.mxu0 0.0
    %2984 = vmatpush1.msra.mxu0 0.0
    %2985 = vmatprep.subr.mxu0 0.0
    %2986 = vmatpush1.msra.mxu0 0.0
    %2987 = vmatprep.subr.mxu0 0.0
    %2988 = vmatpush1.msra.mxu0 0.0
    %2989 = vmatprep.subr.mxu0 0.0
    %2990 = vmatpush1.msra.mxu0 0.0
    %2991 = vmatprep.subr.mxu0 0.0
    %2992 = vmatpush1.msra.mxu0 0.0
    %2993 = vmatprep.subr.mxu0 0.0
    %2994 = vmatpush1.msra.mxu0 0.0
    %2995 = vmatprep.subr.mxu0 0.0
    %2996 = vmatpush1.msra.mxu0 0.0
    %2997 = vmatprep.subr.mxu0 0.0
    %2998 = vmatpush1.msra.mxu0 0.0
    %2999 = vmatprep.subr.mxu0 0.0
    %3000 = vmatpush1.msra.mxu0 0.0
    %3001 = vmatprep.subr.mxu0 0.0
    %3002 = vmatpush1.msra.mxu0 0.0
    %3003 = vmatprep.subr.mxu0 0.0
    %3004 = vmatpush1.msra.mxu0 0.0
    %3005 = vmatprep.subr.mxu0 0.0
    %3006 = vmatpush1.msra.mxu0 0.0
    %3007 = vmatprep.subr.mxu0 0.0
    %3008 = vmatpush1.msra.mxu0 0.0
    %3009 = vmatprep.subr.mxu0 0.0
    %3010 = vmatpush1.msra.mxu0 0.0
    %3011 = vmatprep.subr.mxu0 0.0
    %3012 = vmatpush1.msra.mxu0 0.0
    %3013 = vmatprep.mubr.f32.mxu0 0.0
    %3014 = vmatmul.mubr.f32.gmra.mrb[0].mxu0 %v2932
    %v3015 = vpop.f32.mrb[0].mxu0
    %v3016 = vadd.f32 %v2929, %v3015
    %v3017 = vpop.f32.mrb[0].mxu0
    %3018 = vmatprep.mubr.f32.mxu0 0.0
    %3019 = vmatmul.mubr.f32.gmra.mrb[0].mxu0 %v2935
    %v3020 = vpop.f32.mrb[0].mxu0
    %v3021 = vadd.f32 %v2929, %v3020
    %v3022 = vpop.f32.mrb[0].mxu0
    %3023 = vmatprep.mubr.f32.mxu0 0.0
    %3024 = vmatmul.mubr.f32.gmra.mrb[0].mxu0 %v2938
    %v3025 = vpop.f32.mrb[0].mxu0
    %v3026 = vadd.f32 %v2929, %v3025
    %v3027 = vpop.f32.mrb[0].mxu0
    %3028 = vmatprep.mubr.f32.mxu0 0.0
    %3029 = vmatmul.mubr.f32.gmra.mrb[0].mxu0 %v2941
    %v3030 = vpop.f32.mrb[0].mxu0
    %v3031 = vadd.f32 %v2929, %v3030
    %v3032 = vpop.f32.mrb[0].mxu0
    %3033 = vmatprep.mubr.f32.mxu0 0.0
    %3034 = vmatmul.mubr.f32.gmra.mrb[0].mxu0 %v2944
    %v3035 = vpop.f32.mrb[0].mxu0
    %v3036 = vadd.f32 %v2929, %v3035
    %v3037 = vpop.f32.mrb[0].mxu0
    %3038 = vmatprep.mubr.f32.mxu0 0.0
    %3039 = vmatmul.mubr.f32.gmra.mrb[0].mxu0 %v2947
    %v3040 = vpop.f32.mrb[0].mxu0
    %v3041 = vadd.f32 %v2929, %v3040
    %v3042 = vpop.f32.mrb[0].mxu0
    %3043 = vdwg.mxu0
    %v3044 = vmul.f32 %v3016, 0.5
    %v3045 = vmul.f32 %v3021, 0.5
    %v3046 = vmul.f32 %v3026, 0.5
    %v3047 = vmul.f32 %v3031, 0.5
    %v3048 = vmul.f32 %v3036, 0.5
    %v3049 = vmul.f32 %v3041, 0.5
    %v3050 = vtanh.pop %v3044
    %v3051 = vtanh.pop %v3045
    %v3052 = vtanh.pop %v3046
    %v3053 = vtanh.pop %v3047
    %v3054 = vtanh.pop %v3048
    %v3055 = vtanh.pop %v3049
    %v3056 = vmul.f32 %v3050, 0.5
    %v3057 = vmul.f32 %v3051, 0.5
    %v3058 = vmul.f32 %v3052, 0.5
    %v3059 = vmul.f32 %v3053, 0.5
    %v3060 = vmul.f32 %v3054, 0.5
    %v3061 = vmul.f32 %v3055, 0.5
    %v3062 = vadd.f32 %v3056, 0.5
    %v3063 = vadd.f32 %v3057, 0.5
    %v3064 = vadd.f32 %v3058, 0.5
    %v3065 = vadd.f32 %v3059, 0.5
    %v3066 = vadd.f32 %v3060, 0.5
    %v3067 = vadd.f32 %v3061, 0.5
    %v3068 = vmul.f32 %v3016, %v3062
    %v3069 = vmul.f32 %v3021, %v3063
    %v3070 = vmul.f32 %v3026, %v3064
    %v3071 = vmul.f32 %v3031, %v3065
    %v3072 = vmul.f32 %v3036, %v3066
    %v3073 = vmul.f32 %v3041, %v3067
    %v3074 = vld [vmem:[#allocation26] sm:$0x1]
    %v3076 = vlaneseq
    %v3077 = vshrl.u32 %v3076, 7
    %v3078 = vsub.s32 0, %v3077
    %v3079 = vrot.slane %v3074, %v3078
    %v3081 = vmul.f32 %v3068, %v3079
    %v3082 = vmul.f32 %v3069, %v3079
    %v3083 = vmul.f32 %v3070, %v3079
    %v3084 = vmul.f32 %v3071, %v3079
    %v3085 = vmul.f32 %v3072, %v3079
    %v3086 = vmul.f32 %v3073, %v3079
    %v3087 = vsel %vm1552, %v3081, 0.0
    %3088 = vadd.xlane.f32.xlu0 %v3087
    %v3089 = vpop.xlane.xlu0 %3088
    %v3090 = vsel %vm1552, %v3082, 0.0
    %3091 = vadd.xlane.f32.xlu0 %v3090
    %v3092 = vpop.xlane.xlu0 %3091
    %v3093 = vsel %vm1552, %v3083, 0.0
    %3094 = vadd.xlane.f32.xlu0 %v3093
    %v3095 = vpop.xlane.xlu0 %3094
    %v3096 = vsel %vm1552, %v3084, 0.0
    %3097 = vadd.xlane.f32.xlu0 %v3096
    %v3098 = vpop.xlane.xlu0 %3097
    %v3099 = vsel %vm1552, %v3085, 0.0
    %3100 = vadd.xlane.f32.xlu0 %v3099
    %v3101 = vpop.xlane.xlu0 %3100
    %v3102 = vsel %vm1552, %v3086, 0.0
    %3103 = vadd.xlane.f32.xlu0 %v3102
    %v3104 = vpop.xlane.xlu0 %3103
    %v3105 = vld [vmem:[#allocation3] sm:$0x1]
    %v3107 = vlaneseq
    %v3108 = vshrl.u32 %v3107, 7
    %v3109 = vsub.s32 0, %v3108
    %v3110 = vrot.slane %v3105, %v3109
    %v3112 = vadd.f32 %v3089, %v3110
    %v3113 = vadd.f32 %v3092, %v3110
    %v3114 = vadd.f32 %v3095, %v3110
    %v3115 = vadd.f32 %v3098, %v3110
    %v3116 = vadd.f32 %v3101, %v3110
    %v3117 = vadd.f32 %v3104, %v3110
    %3119 = vset.pattern.permute.xlu0 0
    %3120 = vperm.xlu0 %3119, %v3112
    %v3121 = vpop.permute.xlu0 %3120
    %3124 = vset.pattern.permute.xlu0 0
    %3125 = vperm.xlu0 %3124, %v3113
    %v3126 = vpop.permute.xlu0 %3125
    %3129 = vset.pattern.permute.xlu0 0
    %3130 = vperm.xlu0 %3129, %v3114
    %v3131 = vpop.permute.xlu0 %3130
    %3134 = vset.pattern.permute.xlu0 0
    %3135 = vperm.xlu0 %3134, %v3115
    %v3136 = vpop.permute.xlu0 %3135
    %3139 = vset.pattern.permute.xlu0 0
    %3140 = vperm.xlu0 %3139, %v3116
    %v3141 = vpop.permute.xlu0 %3140
    %3144 = vset.pattern.permute.xlu0 0
    %3145 = vperm.xlu0 %3144, %v3117
    %v3146 = vpop.permute.xlu0 %3145
    %v3148 = vmul.f32 %v3121, %v2324
    %v3149 = vmul.f32 %v3126, %v2325
    %v3150 = vmul.f32 %v3131, %v2326
    %v3151 = vmul.f32 %v3136, %v2327
    %v3152 = vmul.f32 %v3141, %v2328
    %v3153 = vmul.f32 %v3146, %v2329
    %3160 = vrot.lane.b32.xlu0 %v3148, 112
    %v3161 = vpop.permute.xlu0 %3160
    %3162 = vrot.lane.b32.xlu0 %v3149, 112
    %v3163 = vpop.permute.xlu0 %3162
    %3164 = vrot.lane.b32.xlu0 %v3150, 112
    %v3165 = vpop.permute.xlu0 %3164
    %3166 = vrot.lane.b32.xlu0 %v3151, 112
    %v3167 = vpop.permute.xlu0 %3166
    %3168 = vrot.lane.b32.xlu0 %v3152, 112
    %v3169 = vpop.permute.xlu0 %3168
    %3170 = vrot.lane.b32.xlu0 %v3153, 112
    %v3171 = vpop.permute.xlu0 %3170
    %v3178 = vsel %vm624, %v2916, %v3161
    %v3179 = vsel %vm624, %v2917, %v3163
    %v3180 = vsel %vm624, %v2918, %v3165
    %v3181 = vsel %vm624, %v2919, %v3167
    %v3182 = vsel %vm624, %v2920, %v3169
    %v3183 = vsel %vm624, %v2921, %v3171
    %3184 = vmatprep.subr.mxu0 0.0
    %3185 = vmatpush1.msra.mxu0 %v3178
    %3186 = vmatprep.subr.mxu0 0.0
    %3187 = vmatpush1.msra.mxu0 %v3179
    %3188 = vmatprep.subr.mxu0 0.0
    %3189 = vmatpush1.msra.mxu0 %v3180
    %3190 = vmatprep.subr.mxu0 0.0
    %3191 = vmatpush1.msra.mxu0 %v3181
    %3192 = vmatprep.subr.mxu0 0.0
    %3193 = vmatpush1.msra.mxu0 %v3182
    %3194 = vmatprep.subr.mxu0 0.0
    %3195 = vmatpush1.msra.mxu0 %v3183
    %3196 = vmatprep.subr.mxu0 0.0
    %3197 = vmatpush1.msra.mxu0 0.0
    %3198 = vmatprep.subr.mxu0 0.0
    %3199 = vmatpush1.msra.mxu0 0.0
    %3200 = vmatprep.subr.mxu0 0.0
    %3201 = vmatpush1.msra.mxu0 0.0
    %3202 = vmatprep.subr.mxu0 0.0
    %3203 = vmatpush1.msra.mxu0 0.0
    %3204 = vmatprep.subr.mxu0 0.0
    %3205 = vmatpush1.msra.mxu0 0.0
    %3206 = vmatprep.subr.mxu0 0.0
    %3207 = vmatpush1.msra.mxu0 0.0
    %3208 = vmatprep.subr.mxu0 0.0
    %3209 = vmatpush1.msra.mxu0 0.0
    %3210 = vmatprep.subr.mxu0 0.0
    %3211 = vmatpush1.msra.mxu0 0.0
    %3212 = vmatprep.subr.mxu0 0.0
    %3213 = vmatpush1.msra.mxu0 0.0
    %3214 = vmatprep.subr.mxu0 0.0
    %3215 = vmatpush1.msra.mxu0 0.0
    %3216 = vmatprep.subr.mxu0 0.0
    %3217 = vmatpush1.msra.mxu0 0.0
    %3218 = vmatprep.subr.mxu0 0.0
    %3219 = vmatpush1.msra.mxu0 0.0
    %3220 = vmatprep.subr.mxu0 0.0
    %3221 = vmatpush1.msra.mxu0 0.0
    %3222 = vmatprep.subr.mxu0 0.0
    %3223 = vmatpush1.msra.mxu0 0.0
    %3224 = vmatprep.subr.mxu0 0.0
    %3225 = vmatpush1.msra.mxu0 0.0
    %3226 = vmatprep.subr.mxu0 0.0
    %3227 = vmatpush1.msra.mxu0 0.0
    %3228 = vmatprep.subr.mxu0 0.0
    %3229 = vmatpush1.msra.mxu0 0.0
    %3230 = vmatprep.subr.mxu0 0.0
    %3231 = vmatpush1.msra.mxu0 0.0
    %3232 = vmatprep.subr.mxu0 0.0
    %3233 = vmatpush1.msra.mxu0 0.0
    %3234 = vmatprep.subr.mxu0 0.0
    %3235 = vmatpush1.msra.mxu0 0.0
    %3236 = vmatprep.subr.mxu0 0.0
    %3237 = vmatpush1.msra.mxu0 0.0
    %3238 = vmatprep.subr.mxu0 0.0
    %3239 = vmatpush1.msra.mxu0 0.0
    %3240 = vmatprep.subr.mxu0 0.0
    %3241 = vmatpush1.msra.mxu0 0.0
    %3242 = vmatprep.subr.mxu0 0.0
    %3243 = vmatpush1.msra.mxu0 0.0
    %3244 = vmatprep.subr.mxu0 0.0
    %3245 = vmatpush1.msra.mxu0 0.0
    %3246 = vmatprep.subr.mxu0 0.0
    %3247 = vmatpush1.msra.mxu0 0.0
    %3248 = vmatprep.mubr.f32.mxu0 0.0
    %3249 = vmatmul.mubr.f32.gmra.mrb[0].mxu0 %v1684
    %v3250 = vpop.f32.mrb[0].mxu0
    %v3251 = vadd.f32 0.0, %v3250
    %v3252 = vpop.f32.mrb[0].mxu0
    %3253 = vmatprep.mubr.f32.mxu0 0.0
    %3254 = vmatmul.mubr.f32.gmra.mrb[0].mxu0 %v1687
    %v3255 = vpop.f32.mrb[0].mxu0
    %v3256 = vadd.f32 0.0, %v3255
    %v3257 = vpop.f32.mrb[0].mxu0
    %3258 = vdwg.mxu0
    %3261 = vrot.lane.b32.xlu0 %v3251, 112
    %v3262 = vpop.permute.xlu0 %3261
    %3263 = vrot.lane.b32.xlu0 %v3256, 112
    %v3264 = vpop.permute.xlu0 %3263
    %v3267 = vadd.f32 %v1772, %v3262
    %v3268 = vadd.f32 %v1773, %v3264
    %v3269 = vmul.f32 %v2187, %v1777
    %v3270 = vmul.f32 %v2188, %v1782
    %v3271 = vsel %vm621, %v3269, 0.0
    %3272 = vadd.xlane.f32.xlu0 %v3271
    %v3273 = vpop.xlane.xlu0 %3272
    %v3274 = vsel %vm621, %v3270, 0.0
    %3275 = vadd.xlane.f32.xlu0 %v3274
    %v3276 = vpop.xlane.xlu0 %3275
    %v3277 = vadd.f32 %v3273, %v3276
    %v3278 = vrot.slane %v3277, 4
    %v3279 = vadd.f32 %v3277, %v3278
    %v3280 = vrot.slane %v3279, 2
    %v3281 = vadd.f32 %v3279, %v3280
    %v3282 = vrot.slane %v3281, 1
    %v3283 = vadd.f32 %v3281, %v3282
    %v3284 = vmul.f32 %v3283, %v1799
    %v3285 = vmul.f32 %v582, %v3284
    %v3286 = vmul.f32 %v583, %v3284
    %v3287 = vadd.f32 %v3285, 0.0
    %v3288 = vadd.f32 %v3286, 0.0
    %v3289 = vmul.f32 %v2187, %v1808
    %v3290 = vmul.f32 %v2188, %v1813
    %v3291 = vsel %vm621, %v3289, 0.0
    %3292 = vadd.xlane.f32.xlu0 %v3291
    %v3293 = vpop.xlane.xlu0 %3292
    %v3294 = vsel %vm621, %v3290, 0.0
    %3295 = vadd.xlane.f32.xlu0 %v3294
    %v3296 = vpop.xlane.xlu0 %3295
    %v3297 = vadd.f32 %v3293, %v3296
    %v3298 = vrot.slane %v3297, 4
    %v3299 = vadd.f32 %v3297, %v3298
    %v3300 = vrot.slane %v3299, 2
    %v3301 = vadd.f32 %v3299, %v3300
    %v3302 = vrot.slane %v3301, 1
    %v3303 = vadd.f32 %v3301, %v3302
    %v3304 = vmul.f32 %v3303, %v1830
    %v3305 = vmul.f32 %v600, %v3304
    %v3306 = vmul.f32 %v601, %v3304
    %v3307 = vadd.f32 %v3287, %v3305
    %v3308 = vadd.f32 %v3288, %v3306
    %3310 = vset.pattern.permute.xlu0 0
    %3311 = vperm.xlu0 %3310, %v3307
    %v3312 = vpop.permute.xlu0 %3311
    %3315 = vset.pattern.permute.xlu0 0
    %3316 = vperm.xlu0 %3315, %v3308
    %v3317 = vpop.permute.xlu0 %3316
    %v3319 = vsub.f32 %v2187, %v3312
    %v3320 = vsub.f32 %v2188, %v3317
    %v3321 = vmul.f32 %v3319, %v3319
    %v3322 = vmul.f32 %v3320, %v3320
    %v3323 = vmul.f32 %v3321, %v1777
    %v3324 = vmul.f32 %v3322, %v1782
    %v3325 = vsel %vm621, %v3323, 0.0
    %3326 = vadd.xlane.f32.xlu0 %v3325
    %v3327 = vpop.xlane.xlu0 %3326
    %v3328 = vsel %vm621, %v3324, 0.0
    %3329 = vadd.xlane.f32.xlu0 %v3328
    %v3330 = vpop.xlane.xlu0 %3329
    %v3331 = vadd.f32 %v3327, %v3330
    %v3332 = vrot.slane %v3331, 4
    %v3333 = vadd.f32 %v3331, %v3332
    %v3334 = vrot.slane %v3333, 2
    %v3335 = vadd.f32 %v3333, %v3334
    %v3336 = vrot.slane %v3335, 1
    %v3337 = vadd.f32 %v3335, %v3336
    %v3338 = vmul.f32 %v3337, %v1799
    %v3339 = vmul.f32 %v582, %v3338
    %v3340 = vmul.f32 %v583, %v3338
    %v3341 = vadd.f32 %v3339, 0.0
    %v3342 = vadd.f32 %v3340, 0.0
    %v3343 = vmul.f32 %v3321, %v1808
    %v3344 = vmul.f32 %v3322, %v1813
    %v3345 = vsel %vm621, %v3343, 0.0
    %3346 = vadd.xlane.f32.xlu0 %v3345
    %v3347 = vpop.xlane.xlu0 %3346
    %v3348 = vsel %vm621, %v3344, 0.0
    %3349 = vadd.xlane.f32.xlu0 %v3348
    %v3350 = vpop.xlane.xlu0 %3349
    %v3351 = vadd.f32 %v3347, %v3350
    %v3352 = vrot.slane %v3351, 4
    %v3353 = vadd.f32 %v3351, %v3352
    %v3354 = vrot.slane %v3353, 2
    %v3355 = vadd.f32 %v3353, %v3354
    %v3356 = vrot.slane %v3355, 1
    %v3357 = vadd.f32 %v3355, %v3356
    %v3358 = vmul.f32 %v3357, %v1830
    %v3359 = vmul.f32 %v600, %v3358
    %v3360 = vmul.f32 %v601, %v3358
    %v3361 = vadd.f32 %v3341, %v3359
    %v3362 = vadd.f32 %v3342, %v3360
    %v3363 = vadd.f32 %v3361, 1e-05
    %v3364 = vadd.f32 %v3362, 1e-05
    %v3365 = vrsqrt.pop %v3363
    %v3366 = vrsqrt.pop %v3364
    %3368 = vset.pattern.permute.xlu0 0
    %3369 = vperm.xlu0 %3368, %v3365
    %v3370 = vpop.permute.xlu0 %3369
    %3373 = vset.pattern.permute.xlu0 0
    %3374 = vperm.xlu0 %3373, %v3366
    %v3375 = vpop.permute.xlu0 %3374
    %v3377 = vmul.f32 %v3319, %v3370
    %v3378 = vmul.f32 %v3320, %v3375
    %v3379 = vld [vmem:[#allocation27] sm:$0xff]
    %v3380 = vld [vmem:[#allocation27 + $0x8] sm:$0xff]
    %v3381 = vld [vmem:[#allocation27 + $0x10] sm:$0xff]
    %v3382 = vld [vmem:[#allocation27 + $0x18] sm:$0xff]
    %v3383 = vld [vmem:[#allocation29] sm:$0xff]
    %v3384 = vld [vmem:[#allocation29 + $0x8] sm:$0xff]
    %v3385 = vsel %vm624, %v3251, 0
    %v3387 = vsel %vm624, %v3256, 0
    %3389 = vmatprep.subr.mxu0 0.0
    %3390 = vmatpush1.msra.mxu0 %v3383
    %3391 = vmatprep.subr.mxu0 0.0
    %3392 = vmatpush1.msra.mxu0 %v3384
    %3393 = vmatprep.subr.mxu0 0.0
    %3394 = vmatpush1.msra.mxu0 0.0
    %3395 = vmatprep.subr.mxu0 0.0
    %3396 = vmatpush1.msra.mxu0 0.0
    %3397 = vmatprep.subr.mxu0 0.0
    %3398 = vmatpush1.msra.mxu0 0.0
    %3399 = vmatprep.subr.mxu0 0.0
    %3400 = vmatpush1.msra.mxu0 0.0
    %3401 = vmatprep.subr.mxu0 0.0
    %3402 = vmatpush1.msra.mxu0 0.0
    %3403 = vmatprep.subr.mxu0 0.0
    %3404 = vmatpush1.msra.mxu0 0.0
    %3405 = vmatprep.subr.mxu0 0.0
    %3406 = vmatpush1.msra.mxu0 0.0
    %3407 = vmatprep.subr.mxu0 0.0
    %3408 = vmatpush1.msra.mxu0 0.0
    %3409 = vmatprep.subr.mxu0 0.0
    %3410 = vmatpush1.msra.mxu0 0.0
    %3411 = vmatprep.subr.mxu0 0.0
    %3412 = vmatpush1.msra.mxu0 0.0
    %3413 = vmatprep.subr.mxu0 0.0
    %3414 = vmatpush1.msra.mxu0 0.0
    %3415 = vmatprep.subr.mxu0 0.0
    %3416 = vmatpush1.msra.mxu0 0.0
    %3417 = vmatprep.subr.mxu0 0.0
    %3418 = vmatpush1.msra.mxu0 0.0
    %3419 = vmatprep.subr.mxu0 0.0
    %3420 = vmatpush1.msra.mxu0 0.0
    %3421 = vmatprep.subr.mxu0 0.0
    %3422 = vmatpush1.msra.mxu0 0.0
    %3423 = vmatprep.subr.mxu0 0.0
    %3424 = vmatpush1.msra.mxu0 0.0
    %3425 = vmatprep.subr.mxu0 0.0
    %3426 = vmatpush1.msra.mxu0 0.0
    %3427 = vmatprep.subr.mxu0 0.0
    %3428 = vmatpush1.msra.mxu0 0.0
    %3429 = vmatprep.subr.mxu0 0.0
    %3430 = vmatpush1.msra.mxu0 0.0
    %3431 = vmatprep.subr.mxu0 0.0
    %3432 = vmatpush1.msra.mxu0 0.0
    %3433 = vmatprep.subr.mxu0 0.0
    %3434 = vmatpush1.msra.mxu0 0.0
    %3435 = vmatprep.subr.mxu0 0.0
    %3436 = vmatpush1.msra.mxu0 0.0
    %3437 = vmatprep.subr.mxu0 0.0
    %3438 = vmatpush1.msra.mxu0 0.0
    %3439 = vmatprep.subr.mxu0 0.0
    %3440 = vmatpush1.msra.mxu0 0.0
    %3441 = vmatprep.subr.mxu0 0.0
    %3442 = vmatpush1.msra.mxu0 0.0
    %3443 = vmatprep.subr.mxu0 0.0
    %3444 = vmatpush1.msra.mxu0 0.0
    %3445 = vmatprep.subr.mxu0 0.0
    %3446 = vmatpush1.msra.mxu0 0.0
    %3447 = vmatprep.subr.mxu0 0.0
    %3448 = vmatpush1.msra.mxu0 0.0
    %3449 = vmatprep.subr.mxu0 0.0
    %3450 = vmatpush1.msra.mxu0 0.0
    %3451 = vmatprep.subr.mxu0 0.0
    %3452 = vmatpush1.msra.mxu0 0.0
    %3453 = vmatprep.mubr.f32.mxu0 0.0
    %3454 = vmatmul.mubr.f32.gmra.mrb[0].mxu0 %v3385
    %v3455 = vpop.f32.mrb[0].mxu0
    %v3456 = vadd.f32 0.0, %v3455
    %v3457 = vpop.f32.mrb[0].mxu0
    %3458 = vmatprep.mubr.f32.mxu0 0.0
    %3459 = vmatmul.mubr.f32.gmra.mrb[0].mxu0 %v3387
    %v3460 = vpop.f32.mrb[0].mxu0
    %v3461 = vadd.f32 0.0, %v3460
    %v3462 = vpop.f32.mrb[0].mxu0
    %3463 = vdwg.mxu0
    %v3465 = vsel %vm621, %v3377, 0
    %v3468 = vsel %vm621, %v3378, 0
    %3470 = vmatprep.subr.mxu0 0.0
    %3471 = vmatpush1.msra.mxu0 %v3379
    %3472 = vmatprep.subr.mxu0 0.0
    %3473 = vmatpush1.msra.mxu0 %v3380
    %3474 = vmatprep.subr.mxu0 0.0
    %3475 = vmatpush1.msra.mxu0 %v3381
    %3476 = vmatprep.subr.mxu0 0.0
    %3477 = vmatpush1.msra.mxu0 %v3382
    %3478 = vmatprep.subr.mxu0 0.0
    %3479 = vmatpush1.msra.mxu0 0.0
    %3480 = vmatprep.subr.mxu0 0.0
    %3481 = vmatpush1.msra.mxu0 0.0
    %3482 = vmatprep.subr.mxu0 0.0
    %3483 = vmatpush1.msra.mxu0 0.0
    %3484 = vmatprep.subr.mxu0 0.0
    %3485 = vmatpush1.msra.mxu0 0.0
    %3486 = vmatprep.subr.mxu0 0.0
    %3487 = vmatpush1.msra.mxu0 0.0
    %3488 = vmatprep.subr.mxu0 0.0
    %3489 = vmatpush1.msra.mxu0 0.0
    %3490 = vmatprep.subr.mxu0 0.0
    %3491 = vmatpush1.msra.mxu0 0.0
    %3492 = vmatprep.subr.mxu0 0.0
    %3493 = vmatpush1.msra.mxu0 0.0
    %3494 = vmatprep.subr.mxu0 0.0
    %3495 = vmatpush1.msra.mxu0 0.0
    %3496 = vmatprep.subr.mxu0 0.0
    %3497 = vmatpush1.msra.mxu0 0.0
    %3498 = vmatprep.subr.mxu0 0.0
    %3499 = vmatpush1.msra.mxu0 0.0
    %3500 = vmatprep.subr.mxu0 0.0
    %3501 = vmatpush1.msra.mxu0 0.0
    %3502 = vmatprep.subr.mxu0 0.0
    %3503 = vmatpush1.msra.mxu0 0.0
    %3504 = vmatprep.subr.mxu0 0.0
    %3505 = vmatpush1.msra.mxu0 0.0
    %3506 = vmatprep.subr.mxu0 0.0
    %3507 = vmatpush1.msra.mxu0 0.0
    %3508 = vmatprep.subr.mxu0 0.0
    %3509 = vmatpush1.msra.mxu0 0.0
    %3510 = vmatprep.subr.mxu0 0.0
    %3511 = vmatpush1.msra.mxu0 0.0
    %3512 = vmatprep.subr.mxu0 0.0
    %3513 = vmatpush1.msra.mxu0 0.0
    %3514 = vmatprep.subr.mxu0 0.0
    %3515 = vmatpush1.msra.mxu0 0.0
    %3516 = vmatprep.subr.mxu0 0.0
    %3517 = vmatpush1.msra.mxu0 0.0
    %3518 = vmatprep.subr.mxu0 0.0
    %3519 = vmatpush1.msra.mxu0 0.0
    %3520 = vmatprep.subr.mxu0 0.0
    %3521 = vmatpush1.msra.mxu0 0.0
    %3522 = vmatprep.subr.mxu0 0.0
    %3523 = vmatpush1.msra.mxu0 0.0
    %3524 = vmatprep.subr.mxu0 0.0
    %3525 = vmatpush1.msra.mxu0 0.0
    %3526 = vmatprep.subr.mxu0 0.0
    %3527 = vmatpush1.msra.mxu0 0.0
    %3528 = vmatprep.subr.mxu0 0.0
    %3529 = vmatpush1.msra.mxu0 0.0
    %3530 = vmatprep.subr.mxu0 0.0
    %3531 = vmatpush1.msra.mxu0 0.0
    %3532 = vmatprep.subr.mxu0 0.0
    %3533 = vmatpush1.msra.mxu0 0.0
    %3534 = vmatprep.mubr.f32.mxu0 0.0
    %3535 = vmatmul.mubr.f32.gmra.mrb[0].mxu0 %v3465
    %v3536 = vpop.f32.mrb[0].mxu0
    %v3537 = vadd.f32 %v3456, %v3536
    %v3538 = vpop.f32.mrb[0].mxu0
    %3539 = vmatprep.mubr.f32.mxu0 0.0
    %3540 = vmatmul.mubr.f32.gmra.mrb[0].mxu0 %v3468
    %v3541 = vpop.f32.mrb[0].mxu0
    %v3542 = vadd.f32 %v3461, %v3541
    %v3543 = vpop.f32.mrb[0].mxu0
    %3544 = vdwg.mxu0
    %v3545 = vld [vmem:[%s69] sm:$0x1]
    %v3547 = vlaneseq
    %v3548 = vshrl.u32 %v3547, 7
    %v3549 = vsub.s32 0, %v3548
    %v3550 = vrot.slane %v3545, %v3549
    %v3552 = vadd.f32 %v3537, %v3550
    %v3553 = vadd.f32 %v3542, %v3550
    %v3554 = vmul.f32 %v3552, 0.5
    %v3555 = vmul.f32 %v3553, 0.5
    %v3556 = vtanh.pop %v3554
    %v3557 = vtanh.pop %v3555
    %v3558 = vmul.f32 %v3556, 0.5
    %v3559 = vmul.f32 %v3557, 0.5
    %v3560 = vadd.f32 %v3558, 0.5
    %v3561 = vadd.f32 %v3559, 0.5
    %v3562 = vmul.f32 %v3552, %v3560
    %v3563 = vmul.f32 %v3553, %v3561
    %v3564 = vld [vmem:[#allocation30] sm:$0xff]
    %v3565 = vld [vmem:[#allocation30 + $0x8] sm:$0xff]
    %v3566 = vld [vmem:[#allocation30 + $0x10] sm:$0xff]
    %v3567 = vld [vmem:[#allocation30 + $0x18] sm:$0xff]
    %v3568 = vld [vmem:[#allocation30 + $0x20] sm:$0xff]
    %v3569 = vld [vmem:[#allocation30 + $0x28] sm:$0xff]
    %v3570 = vld [vmem:[#allocation30 + $0x30] sm:$0xff]
    %v3571 = vld [vmem:[#allocation30 + $0x38] sm:$0xff]
    %v3572 = vld [vmem:[%s73] sm:$0x1]
    %v3574 = vlaneseq
    %v3575 = vshrl.u32 %v3574, 7
    %v3576 = vsub.s32 0, %v3575
    %v3577 = vrot.slane %v3572, %v3576
    %v3580 = vsel %vm1552, %v3562, 0
    %v3583 = vsel %vm1552, %v3563, 0
    %3585 = vmatprep.subr.mxu0 0.0
    %3586 = vmatpush1.msra.mxu0 %v3564
    %3587 = vmatprep.subr.mxu0 0.0
    %3588 = vmatpush1.msra.mxu0 %v3565
    %3589 = vmatprep.subr.mxu0 0.0
    %3590 = vmatpush1.msra.mxu0 %v3566
    %3591 = vmatprep.subr.mxu0 0.0
    %3592 = vmatpush1.msra.mxu0 %v3567
    %3593 = vmatprep.subr.mxu0 0.0
    %3594 = vmatpush1.msra.mxu0 %v3568
    %3595 = vmatprep.subr.mxu0 0.0
    %3596 = vmatpush1.msra.mxu0 %v3569
    %3597 = vmatprep.subr.mxu0 0.0
    %3598 = vmatpush1.msra.mxu0 %v3570
    %3599 = vmatprep.subr.mxu0 0.0
    %3600 = vmatpush1.msra.mxu0 %v3571
    %3601 = vmatprep.subr.mxu0 0.0
    %3602 = vmatpush1.msra.mxu0 0.0
    %3603 = vmatprep.subr.mxu0 0.0
    %3604 = vmatpush1.msra.mxu0 0.0
    %3605 = vmatprep.subr.mxu0 0.0
    %3606 = vmatpush1.msra.mxu0 0.0
    %3607 = vmatprep.subr.mxu0 0.0
    %3608 = vmatpush1.msra.mxu0 0.0
    %3609 = vmatprep.subr.mxu0 0.0
    %3610 = vmatpush1.msra.mxu0 0.0
    %3611 = vmatprep.subr.mxu0 0.0
    %3612 = vmatpush1.msra.mxu0 0.0
    %3613 = vmatprep.subr.mxu0 0.0
    %3614 = vmatpush1.msra.mxu0 0.0
    %3615 = vmatprep.subr.mxu0 0.0
    %3616 = vmatpush1.msra.mxu0 0.0
    %3617 = vmatprep.subr.mxu0 0.0
    %3618 = vmatpush1.msra.mxu0 0.0
    %3619 = vmatprep.subr.mxu0 0.0
    %3620 = vmatpush1.msra.mxu0 0.0
    %3621 = vmatprep.subr.mxu0 0.0
    %3622 = vmatpush1.msra.mxu0 0.0
    %3623 = vmatprep.subr.mxu0 0.0
    %3624 = vmatpush1.msra.mxu0 0.0
    %3625 = vmatprep.subr.mxu0 0.0
    %3626 = vmatpush1.msra.mxu0 0.0
    %3627 = vmatprep.subr.mxu0 0.0
    %3628 = vmatpush1.msra.mxu0 0.0
    %3629 = vmatprep.subr.mxu0 0.0
    %3630 = vmatpush1.msra.mxu0 0.0
    %3631 = vmatprep.subr.mxu0 0.0
    %3632 = vmatpush1.msra.mxu0 0.0
    %3633 = vmatprep.subr.mxu0 0.0
    %3634 = vmatpush1.msra.mxu0 0.0
    %3635 = vmatprep.subr.mxu0 0.0
    %3636 = vmatpush1.msra.mxu0 0.0
    %3637 = vmatprep.subr.mxu0 0.0
    %3638 = vmatpush1.msra.mxu0 0.0
    %3639 = vmatprep.subr.mxu0 0.0
    %3640 = vmatpush1.msra.mxu0 0.0
    %3641 = vmatprep.subr.mxu0 0.0
    %3642 = vmatpush1.msra.mxu0 0.0
    %3643 = vmatprep.subr.mxu0 0.0
    %3644 = vmatpush1.msra.mxu0 0.0
    %3645 = vmatprep.subr.mxu0 0.0
    %3646 = vmatpush1.msra.mxu0 0.0
    %3647 = vmatprep.subr.mxu0 0.0
    %3648 = vmatpush1.msra.mxu0 0.0
    %3649 = vmatprep.mubr.f32.mxu0 0.0
    %3650 = vmatmul.mubr.f32.gmra.mrb[0].mxu0 %v3580
    %v3651 = vpop.f32.mrb[0].mxu0
    %v3652 = vadd.f32 %v3577, %v3651
    %v3653 = vpop.f32.mrb[0].mxu0
    %3654 = vmatprep.mubr.f32.mxu0 0.0
    %3655 = vmatmul.mubr.f32.gmra.mrb[0].mxu0 %v3583
    %v3656 = vpop.f32.mrb[0].mxu0
    %v3657 = vadd.f32 %v3577, %v3656
    %v3658 = vpop.f32.mrb[0].mxu0
    %3659 = vdwg.mxu0
    %v3660 = vadd.f32 %v2187, %v3652
    %v3661 = vadd.f32 %v2188, %v3657
    %3664 = vrot.lane.b32.xlu0 %v3267, 32
    %v3665 = vpop.permute.xlu0 %3664
    %3666 = vrot.lane.b32.xlu0 %v3268, 32
    %v3667 = vpop.permute.xlu0 %3666
    %v3670 = vsel %vm621, %v3660, %v3665
    %v3671 = vsel %vm621, %v3661, %v3667
    %vm3672 = vcmask 285696
    %3673 = vst.msk [vmem:[%s75] sm:$0xff] %vm3672, %v3670
    %3674 = vst.msk [vmem:[%s75 + $0x8] sm:$0xff] %vm3672, %v3671
    // Predicated region
    $region222: #{_lambda_.1} parent=1 // pred_check
      _
    $region223: #{_lambda_.1} parent=1 // pred_check_branch
      %3676 = sbr.rel (0) target = $region225
    $region224: #{_lambda_.1} parent=1 // pred_region
      _
    $region225: #{_lambda_.1} parent=1 // pred_fallthru
      _
    // Predicated region
    $region226: #{_lambda_.1} parent=1 // pred_check
      _
    $region227: #{_lambda_.1} parent=1 // pred_check_branch
      %3678 = sbr.rel (0) target = $region229
    $region228: #{_lambda_.1} parent=1 // pred_region
      _
    $region229: #{_lambda_.1} parent=1 // pred_fallthru
      _
    %3679 = vsyncpa [#allocation5], 1
    %3680 = vsyncpa [#allocation7], 1
    %3681 = vsyncpa [#allocation10], 1
    %3682 = vsyncpa [#allocation13], 1
    %3683 = vsyncpa [#allocation16], 1
    %3684 = vsyncpa [#allocation19], 1
    %3685 = vsyncpa [#allocation22], 1
    %3686 = vsyncpa [#allocation25], 1
    %3687 = vsyncpa [#allocation28], 1
    %3688 = vsyncpa [#allocation31], 1

</llo_original>
